<compile_context>
chip_gen: v6e
topology: v6e:2x2x1
jax: 0.10.0
libtpu: 0.0.40
codegen_flags: <defaults>
</compile_context>

<pallas_src>
import functools

import jax
import jax.numpy as jnp
from jax.experimental import pallas as pl
from jax.experimental.pallas import tpu as pltpu

_LANE_CHUNK = 128   # feature-axis chunk (one vreg of lanes)
_SUB_ROWS = 8       # batch sub-tile processed with register-resident accumulators
_OUT_GROUP = 16     # dilation/erosion outputs processed per pass (multiple of 8)


def _round_up(a: int, m: int) -> int:
    return (a + m - 1) // m * m


def _choose_batch_tile(batch: int, batch_tile: int) -> int:
    """Batch tile: multiple of 8, bounded padding waste, >=2 grid steps when
    the batch is large enough for v7x's two TensorCores to split the work."""
    b8 = _round_up(max(batch, 1), 8)
    cap = max(8, _round_up(batch_tile, 8))
    if b8 <= cap:
        # The whole batch fits one tile: split into two grid steps when each
        # half still has >= 64 rows (keeps both v7x TCs busy).
        if b8 >= 128:
            return _round_up((b8 + 1) // 2, 8)
        return b8
    # Several tiles: pick the largest candidate with <= 12.5% padded rows.
    for tb in (cap, 512, 256, 128, 64, 32, 16, 8):
        if tb > cap or tb % 8:
            continue
        padded = _round_up(b8, tb)
        if (padded - b8) * 8 <= padded:
            return tb
    return 8


def _denmo_kernel(x_ref, dilT_ref, eroT_ref, dlast_ref, elast_ref,
                  we_ref, wd_ref, b_ref, out_ref, dil_scr, ero_scr,
                  *, lane_chunk, sub_rows, out_group):
    """One batch tile.

    x_ref    : (TB, F_pad)   flattened inputs (zero-padded features if any)
    dilT_ref : (D, F_pad)    dilation weights (real-feature rows), transposed
    eroT_ref : (E, F_pad)    erosion weights (real-feature rows), transposed
    dlast_ref: (1, D)        dilation weight row for the appended zero feature
    elast_ref: (1, E)        erosion  weight row for the appended zero feature
    we_ref   : (E, O_pad)    linear weights for the eroded half (lane-padded)
    wd_ref   : (D, O_pad)    linear weights for the dilated half (lane-padded)
    b_ref    : (1, O_pad)    linear bias (lane-padded)
    out_ref  : (TB, O_pad)
    dil_scr  : (TB, D) f32   VMEM scratch (per-sub-tile dilation results)
    ero_scr  : (TB, E) f32   VMEM scratch (per-sub-tile erosion results)
    """
    TB, F_pad = x_ref.shape
    CF = lane_chunk
    SUB = sub_rows
    n_chunks = F_pad // CF
    n_sub = TB // SUB

    def tropical_pass(r, wT_ref, last_ref, scr_ref, dilate):
        # Max-plus (dilate=True) or min-minus (dilate=False) for SUB batch rows
        # starting at row r, walking the output axis in small groups so the
        # running accumulator stays register-resident.
        n_out = wT_ref.shape[0]
        for g0 in range(0, n_out, out_group):
            gsz = min(out_group, n_out - g0)
            acc = None
            for c in range(n_chunks):
                off = c * CF
                xc = x_ref[pl.ds(r, SUB), pl.ds(off, CF)][:, None, :]   # (SUB,1,CF)
                wc = wT_ref[pl.ds(g0, gsz), pl.ds(off, CF)][None, :, :]  # (1,gsz,CF)
                t = xc + wc if dilate else xc - wc                       # (SUB,gsz,CF)
                if acc is None:
                    acc = t
                elif dilate:
                    acc = jnp.maximum(acc, t)
                else:
                    acc = jnp.minimum(acc, t)
            # Lane reduce per group (overlaps XLU with the next group's VALU),
            # then fold the module's appended zero feature via the last weight
            # row: max with dlast for dilation, min with -elast for erosion.
            if dilate:
                red = jnp.maximum(jnp.max(acc, axis=-1).astype(jnp.float32),
                                  last_ref[:, pl.ds(g0, gsz)])
            else:
                red = jnp.minimum(jnp.min(acc, axis=-1).astype(jnp.float32),
                                  -last_ref[:, pl.ds(g0, gsz)])
            scr_ref[pl.ds(r, SUB), pl.ds(g0, gsz)] = red

    def sub_tile_body(s, carry):
        r = pl.multiple_of(s * SUB, SUB)
        tropical_pass(r, dilT_ref, dlast_ref, dil_scr, dilate=True)
        tropical_pass(r, eroT_ref, elast_ref, ero_scr, dilate=False)
        return carry

    jax.lax.fori_loop(0, n_sub, sub_tile_body, 0)

    # Linear combination on the MXU over the whole batch tile; the split
    # matmul avoids materializing/concatenating `combined`.
    out = (
        jnp.dot(ero_scr[...], we_ref[...], preferred_element_type=jnp.float32)
        + jnp.dot(dil_scr[...], wd_ref[...], preferred_element_type=jnp.float32)
        + b_ref[...]
    )
    out_ref[...] = out.astype(out_ref.dtype)


def denmo_forward(x, dil_w, ero_w, lin_w, lin_b, *, batch_tile=256,
                  use_bf16=False):
    """JAX glue around the Pallas kernel.

    x      : (B, C, H, W) float32
    dil_w  : (F+1, D)  dilation weights (F = C*H*W)
    ero_w  : (F+1, E)  erosion weights
    lin_w  : (O, E+D)  torch-style linear weight
    lin_b  : (O,)      linear bias
    batch_tile : max rows per grid step (v7x-safe default 256; v5e/v6e with
                 128 MiB VMEM can use 512-1024)
    use_bf16   : bf16 accumulation for the max/min loop (v6e/v7x only; lowers
                 morphological-output precision to ~bf16)
    returns (B, O)
    """
    B = x.shape[0]
    F1, D = dil_w.shape
    E = ero_w.shape[1]
    F = F1 - 1
    O = lin_w.shape[0]
    assert D > 0 and E > 0, "kernel requires both dilations and erosions"

    compute_dtype = jnp.bfloat16 if use_bf16 else jnp.float32

    flat = x.reshape(B, -1).astype(jnp.float32)                  # (B, F)
    assert flat.shape[1] == F

    # --- feature axis: keep it a multiple of 128 lanes (no bias column) ---
    F_pad = max(_LANE_CHUNK, _round_up(F, _LANE_CHUNK))
    dilT = dil_w[:F].T.astype(jnp.float32)                       # (D, F)
    eroT = ero_w[:F].T.astype(jnp.float32)                       # (E, F)
    if F_pad != F:
        flat = jnp.pad(flat, ((0, 0), (0, F_pad - F)))
        # padded x cols are 0; pad weights with -1e30 so max/min ignore them
        dilT = jnp.pad(dilT, ((0, 0), (0, F_pad - F)), constant_values=-1e30)
        eroT = jnp.pad(eroT, ((0, 0), (0, F_pad - F)), constant_values=-1e30)
    dlast = dil_w[F].astype(jnp.float32)[None, :]                # (1, D)
    elast = ero_w[F].astype(jnp.float32)[None, :]                # (1, E)

    flat = flat.astype(compute_dtype)
    dilT = dilT.astype(compute_dtype)
    eroT = eroT.astype(compute_dtype)

    # --- output lanes: pad to 128 so stores are unmasked (lane-dense) ---
    O_pad = _round_up(O, 128)
    w_t = lin_w.T.astype(jnp.float32)                            # (E+D, O)
    b = lin_b.astype(jnp.float32)
    if O_pad != O:
        w_t = jnp.pad(w_t, ((0, 0), (0, O_pad - O)))
        b = jnp.pad(b, (0, O_pad - O))
    w_e = w_t[:E]                                                # (E, O_pad)
    w_d = w_t[E:]                                                # (D, O_pad)
    b2d = b[None, :]                                             # (1, O_pad)

    # --- batch tiling (multiple of 8, bounded padding, >=2 steps if large) ---
    TB = _choose_batch_tile(B, batch_tile)
    B_pad = _round_up(max(B, 1), TB)
    if B_pad != B:
        flat = jnp.pad(flat, ((0, B_pad - B), (0, 0)))
    grid = (B_pad // TB,)

    kernel = functools.partial(_denmo_kernel, lane_chunk=_LANE_CHUNK,
                               sub_rows=_SUB_ROWS, out_group=_OUT_GROUP)

    out = pl.pallas_call(
        kernel,
        out_shape=jax.ShapeDtypeStruct((B_pad, O_pad), jnp.float32),
        grid_spec=pltpu.PrefetchScalarGridSpec(
            num_scalar_prefetch=0,
            grid=grid,
            in_specs=[
                pl.BlockSpec((TB, F_pad), lambda i: (i, 0)),   # x tile
                pl.BlockSpec((D, F_pad), lambda i: (0, 0)),    # dilT (resident)
                pl.BlockSpec((E, F_pad), lambda i: (0, 0)),    # eroT (resident)
                pl.BlockSpec((1, D), lambda i: (0, 0)),        # dil bias row
                pl.BlockSpec((1, E), lambda i: (0, 0)),        # ero bias row
                pl.BlockSpec((E, O_pad), lambda i: (0, 0)),    # linear (eroded)
                pl.BlockSpec((D, O_pad), lambda i: (0, 0)),    # linear (dilated)
                pl.BlockSpec((1, O_pad), lambda i: (0, 0)),    # linear bias
            ],
            out_specs=pl.BlockSpec((TB, O_pad), lambda i: (i, 0)),
            scratch_shapes=[
                pltpu.VMEM((TB, D), jnp.float32),              # dilated scratch
                pltpu.VMEM((TB, E), jnp.float32),              # eroded  scratch
            ],
        ),
        compiler_params=pltpu.CompilerParams(
            dimension_semantics=("parallel",),
            vmem_limit_bytes=32 * 1024 * 1024,
        ),
    )(flat, dilT, eroT, dlast, elast, w_e, w_d, b2d)

    return out[:B, :O]


def denmo_reference(x, dil_w, ero_w, lin_w, lin_b):
    """Pure-JAX reference mirroring the PyTorch forward pass."""
    B = x.shape[0]
    flat = x.reshape(B, -1).astype(jnp.float32)
    x_wb = jnp.concatenate([flat, jnp.zeros((B, 1), flat.dtype)], axis=1)
    dilated = jnp.max(x_wb[:, :, None] + dil_w[None, :, :], axis=1)
    eroded = jnp.min(x_wb[:, :, None] - ero_w[None, :, :], axis=1)
    combined = jnp.concatenate([eroded, dilated], axis=1)
    return combined @ lin_w.T + lin_b


def xavier_uniform(key, shape):
    # torch.nn.init.xavier_uniform_ for a 2-D tensor.
    fan_out, fan_in = shape[0], shape[1]
    bound = (6.0 / (fan_in + fan_out)) ** 0.5
    return jax.random.uniform(key, shape, jnp.float32, -bound, bound)


if __name__ == "__main__":
    # Small, module-consistent shapes.
    B, C, H, W = 2, 4, 16, 16
    input_space_dim = C * H * W          # 1024
    number_dilations = 32
    number_erosions = 32
    output_space_dim = 10

    key = jax.random.PRNGKey(0)
    k_x, k_d, k_e, k_w, k_b, k_x2 = jax.random.split(key, 6)

    x = jax.random.normal(k_x, (B, C, H, W), jnp.float32)

    # DilateErode parameters (deterministic xavier-uniform init).
    dil_w = xavier_uniform(k_d, (input_space_dim + 1, number_dilations))
    ero_w = xavier_uniform(k_e, (input_space_dim + 1, number_erosions))

    # Linear layer parameters (deterministic uniform init, torch-like bound).
    lc_size = number_dilations + number_erosions
    lin_bound = 1.0 / (lc_size ** 0.5)
    lin_w = jax.random.uniform(
        k_w, (output_space_dim, lc_size), jnp.float32, -lin_bound, lin_bound)
    lin_b = jax.random.uniform(
        k_b, (output_space_dim,), jnp.float32, -lin_bound, lin_bound)

    out = denmo_forward(x, dil_w, ero_w, lin_w, lin_b)
    out = jax.block_until_ready(out)

    ref = denmo_reference(x, dil_w, ero_w, lin_w, lin_b)
    assert out.shape == (B, output_space_dim)
    assert jnp.allclose(out, ref, atol=1e-5, rtol=1e-5), "mismatch vs reference"

    # Secondary check: a batch large enough to exercise the in-kernel 8-row
    # sub-tile loop and a multi-step "parallel" grid (2 steps of TB=104 rows).
    B2 = 200
    x2 = jax.random.normal(k_x2, (B2, C, H, W), jnp.float32)
    out2 = jax.block_until_ready(denmo_forward(x2, dil_w, ero_w, lin_w, lin_b))
    ref2 = denmo_reference(x2, dil_w, ero_w, lin_w, lin_b)
    assert out2.shape == (B2, output_space_dim)
    assert jnp.allclose(out2, ref2, atol=1e-5, rtol=1e-5), "mismatch vs reference (large batch)"

    print("KERNEL_OK")
</pallas_src>

<mosaic_0001>
module attributes {stable_mosaic.version = 11 : i64} {
  func.func @_denmo_kernel(%arg0: i32, %arg1: memref<8x1024xf32, #tpu.memory_space<vmem>>, %arg2: memref<32x1024xf32, #tpu.memory_space<vmem>>, %arg3: memref<32x1024xf32, #tpu.memory_space<vmem>>, %arg4: memref<1x32xf32, #tpu.memory_space<vmem>>, %arg5: memref<1x32xf32, #tpu.memory_space<vmem>>, %arg6: memref<32x128xf32, #tpu.memory_space<vmem>>, %arg7: memref<32x128xf32, #tpu.memory_space<vmem>>, %arg8: memref<1x128xf32, #tpu.memory_space<vmem>>, %arg9: memref<8x128xf32, #tpu.memory_space<vmem>>, %arg10: memref<8x32xf32, #tpu.memory_space<vmem>>, %arg11: memref<8x32xf32, #tpu.memory_space<vmem>>) attributes {dimension_semantics = [#tpu.dimension_semantics<parallel>], iteration_bounds = array<i64: 1>, scalar_prefetch = 0 : i64, scratch_operands = 2 : i64, tpu.core_type = #tpu.core_type<tc>, window_params = [{transform_indices = @transform_0, window_bounds = array<i64: 8, 1024>}, {pipeline_mode = #tpu.pipeline_mode<synchronous>, transform_indices = @transform_1, window_bounds = array<i64: 32, 1024>}, {pipeline_mode = #tpu.pipeline_mode<synchronous>, transform_indices = @transform_2, window_bounds = array<i64: 32, 1024>}, {pipeline_mode = #tpu.pipeline_mode<synchronous>, transform_indices = @transform_3, window_bounds = array<i64: 1, 32>}, {pipeline_mode = #tpu.pipeline_mode<synchronous>, transform_indices = @transform_4, window_bounds = array<i64: 1, 32>}, {pipeline_mode = #tpu.pipeline_mode<synchronous>, transform_indices = @transform_5, window_bounds = array<i64: 32, 128>}, {pipeline_mode = #tpu.pipeline_mode<synchronous>, transform_indices = @transform_6, window_bounds = array<i64: 32, 128>}, {pipeline_mode = #tpu.pipeline_mode<synchronous>, transform_indices = @transform_7, window_bounds = array<i64: 1, 128>}, {transform_indices = @transform_8, window_bounds = array<i64: 8, 128>}]} {
    %c0_i32 = arith.constant 0 : i32
    %c8_i32 = arith.constant 8 : i32
    %0 = arith.muli %c0_i32, %c8_i32 : i32
    %1 = tpu.assume_multiple %0, 8 : i32
    %2 = arith.index_cast %1 : i32 to index
    %c0 = arith.constant 0 : index
    %3 = vector.load %arg1[%2, %c0] : memref<8x1024xf32, #tpu.memory_space<vmem>>, vector<8x128xf32>
    %4 = vector.shape_cast %3 : vector<8x128xf32> to vector<8x1x128xf32>
    %c0_0 = arith.constant 0 : index
    %c0_1 = arith.constant 0 : index
    %5 = vector.load %arg2[%c0_0, %c0_1] : memref<32x1024xf32, #tpu.memory_space<vmem>>, vector<16x128xf32>
    %6 = vector.shape_cast %5 : vector<16x128xf32> to vector<1x16x128xf32>
    %7 = vector.broadcast %4 : vector<8x1x128xf32> to vector<8x16x128xf32>
    %8 = vector.broadcast %6 : vector<1x16x128xf32> to vector<8x16x128xf32>
    %9 = arith.addf %7, %8 : vector<8x16x128xf32>
    %10 = arith.index_cast %1 : i32 to index
    %c128 = arith.constant 128 : index
    %11 = vector.load %arg1[%10, %c128] : memref<8x1024xf32, #tpu.memory_space<vmem>>, vector<8x128xf32>
    %12 = vector.shape_cast %11 : vector<8x128xf32> to vector<8x1x128xf32>
    %c0_2 = arith.constant 0 : index
    %c128_3 = arith.constant 128 : index
    %13 = vector.load %arg2[%c0_2, %c128_3] : memref<32x1024xf32, #tpu.memory_space<vmem>>, vector<16x128xf32>
    %14 = vector.shape_cast %13 : vector<16x128xf32> to vector<1x16x128xf32>
    %15 = vector.broadcast %12 : vector<8x1x128xf32> to vector<8x16x128xf32>
    %16 = vector.broadcast %14 : vector<1x16x128xf32> to vector<8x16x128xf32>
    %17 = arith.addf %15, %16 : vector<8x16x128xf32>
    %18 = arith.maximumf %9, %17 : vector<8x16x128xf32>
    %19 = arith.index_cast %1 : i32 to index
    %c256 = arith.constant 256 : index
    %20 = vector.load %arg1[%19, %c256] : memref<8x1024xf32, #tpu.memory_space<vmem>>, vector<8x128xf32>
    %21 = vector.shape_cast %20 : vector<8x128xf32> to vector<8x1x128xf32>
    %c0_4 = arith.constant 0 : index
    %c256_5 = arith.constant 256 : index
    %22 = vector.load %arg2[%c0_4, %c256_5] : memref<32x1024xf32, #tpu.memory_space<vmem>>, vector<16x128xf32>
    %23 = vector.shape_cast %22 : vector<16x128xf32> to vector<1x16x128xf32>
    %24 = vector.broadcast %21 : vector<8x1x128xf32> to vector<8x16x128xf32>
    %25 = vector.broadcast %23 : vector<1x16x128xf32> to vector<8x16x128xf32>
    %26 = arith.addf %24, %25 : vector<8x16x128xf32>
    %27 = arith.maximumf %18, %26 : vector<8x16x128xf32>
    %28 = arith.index_cast %1 : i32 to index
    %c384 = arith.constant 384 : index
    %29 = vector.load %arg1[%28, %c384] : memref<8x1024xf32, #tpu.memory_space<vmem>>, vector<8x128xf32>
    %30 = vector.shape_cast %29 : vector<8x128xf32> to vector<8x1x128xf32>
    %c0_6 = arith.constant 0 : index
    %c384_7 = arith.constant 384 : index
    %31 = vector.load %arg2[%c0_6, %c384_7] : memref<32x1024xf32, #tpu.memory_space<vmem>>, vector<16x128xf32>
    %32 = vector.shape_cast %31 : vector<16x128xf32> to vector<1x16x128xf32>
    %33 = vector.broadcast %30 : vector<8x1x128xf32> to vector<8x16x128xf32>
    %34 = vector.broadcast %32 : vector<1x16x128xf32> to vector<8x16x128xf32>
    %35 = arith.addf %33, %34 : vector<8x16x128xf32>
    %36 = arith.maximumf %27, %35 : vector<8x16x128xf32>
    %37 = arith.index_cast %1 : i32 to index
    %c512 = arith.constant 512 : index
    %38 = vector.load %arg1[%37, %c512] : memref<8x1024xf32, #tpu.memory_space<vmem>>, vector<8x128xf32>
    %39 = vector.shape_cast %38 : vector<8x128xf32> to vector<8x1x128xf32>
    %c0_8 = arith.constant 0 : index
    %c512_9 = arith.constant 512 : index
    %40 = vector.load %arg2[%c0_8, %c512_9] : memref<32x1024xf32, #tpu.memory_space<vmem>>, vector<16x128xf32>
    %41 = vector.shape_cast %40 : vector<16x128xf32> to vector<1x16x128xf32>
    %42 = vector.broadcast %39 : vector<8x1x128xf32> to vector<8x16x128xf32>
    %43 = vector.broadcast %41 : vector<1x16x128xf32> to vector<8x16x128xf32>
    %44 = arith.addf %42, %43 : vector<8x16x128xf32>
    %45 = arith.maximumf %36, %44 : vector<8x16x128xf32>
    %46 = arith.index_cast %1 : i32 to index
    %c640 = arith.constant 640 : index
    %47 = vector.load %arg1[%46, %c640] : memref<8x1024xf32, #tpu.memory_space<vmem>>, vector<8x128xf32>
    %48 = vector.shape_cast %47 : vector<8x128xf32> to vector<8x1x128xf32>
    %c0_10 = arith.constant 0 : index
    %c640_11 = arith.constant 640 : index
    %49 = vector.load %arg2[%c0_10, %c640_11] : memref<32x1024xf32, #tpu.memory_space<vmem>>, vector<16x128xf32>
    %50 = vector.shape_cast %49 : vector<16x128xf32> to vector<1x16x128xf32>
    %51 = vector.broadcast %48 : vector<8x1x128xf32> to vector<8x16x128xf32>
    %52 = vector.broadcast %50 : vector<1x16x128xf32> to vector<8x16x128xf32>
    %53 = arith.addf %51, %52 : vector<8x16x128xf32>
    %54 = arith.maximumf %45, %53 : vector<8x16x128xf32>
    %55 = arith.index_cast %1 : i32 to index
    %c768 = arith.constant 768 : index
    %56 = vector.load %arg1[%55, %c768] : memref<8x1024xf32, #tpu.memory_space<vmem>>, vector<8x128xf32>
    %57 = vector.shape_cast %56 : vector<8x128xf32> to vector<8x1x128xf32>
    %c0_12 = arith.constant 0 : index
    %c768_13 = arith.constant 768 : index
    %58 = vector.load %arg2[%c0_12, %c768_13] : memref<32x1024xf32, #tpu.memory_space<vmem>>, vector<16x128xf32>
    %59 = vector.shape_cast %58 : vector<16x128xf32> to vector<1x16x128xf32>
    %60 = vector.broadcast %57 : vector<8x1x128xf32> to vector<8x16x128xf32>
    %61 = vector.broadcast %59 : vector<1x16x128xf32> to vector<8x16x128xf32>
    %62 = arith.addf %60, %61 : vector<8x16x128xf32>
    %63 = arith.maximumf %54, %62 : vector<8x16x128xf32>
    %64 = arith.index_cast %1 : i32 to index
    %c896 = arith.constant 896 : index
    %65 = vector.load %arg1[%64, %c896] : memref<8x1024xf32, #tpu.memory_space<vmem>>, vector<8x128xf32>
    %66 = vector.shape_cast %65 : vector<8x128xf32> to vector<8x1x128xf32>
    %c0_14 = arith.constant 0 : index
    %c896_15 = arith.constant 896 : index
    %67 = vector.load %arg2[%c0_14, %c896_15] : memref<32x1024xf32, #tpu.memory_space<vmem>>, vector<16x128xf32>
    %68 = vector.shape_cast %67 : vector<16x128xf32> to vector<1x16x128xf32>
    %69 = vector.broadcast %66 : vector<8x1x128xf32> to vector<8x16x128xf32>
    %70 = vector.broadcast %68 : vector<1x16x128xf32> to vector<8x16x128xf32>
    %71 = arith.addf %69, %70 : vector<8x16x128xf32>
    %72 = arith.maximumf %63, %71 : vector<8x16x128xf32>
    %cst = arith.constant dense<0xFF800000> : vector<8x16xf32>
    %73 = vector.multi_reduction <maximumf>, %72, %cst [2] : vector<8x16x128xf32> to vector<8x16xf32>
    %c0_16 = arith.constant 0 : index
    %c0_17 = arith.constant 0 : index
    %74 = vector.load %arg4[%c0_16, %c0_17] : memref<1x32xf32, #tpu.memory_space<vmem>>, vector<1x16xf32>
    %75 = vector.broadcast %74 : vector<1x16xf32> to vector<8x16xf32>
    %76 = arith.maximumf %73, %75 : vector<8x16xf32>
    %77 = arith.index_cast %1 : i32 to index
    %c0_18 = arith.constant 0 : index
    %78 = vector.load %arg10[%77, %c0_18] : memref<8x32xf32, #tpu.memory_space<vmem>>, vector<8x16xf32>
    tpu.vector_store %arg10[%77, %c0_18], %76 {strides = array<i32>} : memref<8x32xf32, #tpu.memory_space<vmem>>, vector<8x16xf32>,
    %79 = arith.index_cast %1 : i32 to index
    %c0_19 = arith.constant 0 : index
    %80 = vector.load %arg1[%79, %c0_19] : memref<8x1024xf32, #tpu.memory_space<vmem>>, vector<8x128xf32>
    %81 = vector.shape_cast %80 : vector<8x128xf32> to vector<8x1x128xf32>
    %c16 = arith.constant 16 : index
    %c0_20 = arith.constant 0 : index
    %82 = vector.load %arg2[%c16, %c0_20] : memref<32x1024xf32, #tpu.memory_space<vmem>>, vector<16x128xf32>
    %83 = vector.shape_cast %82 : vector<16x128xf32> to vector<1x16x128xf32>
    %84 = vector.broadcast %81 : vector<8x1x128xf32> to vector<8x16x128xf32>
    %85 = vector.broadcast %83 : vector<1x16x128xf32> to vector<8x16x128xf32>
    %86 = arith.addf %84, %85 : vector<8x16x128xf32>
    %87 = arith.index_cast %1 : i32 to index
    %c128_21 = arith.constant 128 : index
    %88 = vector.load %arg1[%87, %c128_21] : memref<8x1024xf32, #tpu.memory_space<vmem>>, vector<8x128xf32>
    %89 = vector.shape_cast %88 : vector<8x128xf32> to vector<8x1x128xf32>
    %c16_22 = arith.constant 16 : index
    %c128_23 = arith.constant 128 : index
    %90 = vector.load %arg2[%c16_22, %c128_23] : memref<32x1024xf32, #tpu.memory_space<vmem>>, vector<16x128xf32>
    %91 = vector.shape_cast %90 : vector<16x128xf32> to vector<1x16x128xf32>
    %92 = vector.broadcast %89 : vector<8x1x128xf32> to vector<8x16x128xf32>
    %93 = vector.broadcast %91 : vector<1x16x128xf32> to vector<8x16x128xf32>
    %94 = arith.addf %92, %93 : vector<8x16x128xf32>
    %95 = arith.maximumf %86, %94 : vector<8x16x128xf32>
    %96 = arith.index_cast %1 : i32 to index
    %c256_24 = arith.constant 256 : index
    %97 = vector.load %arg1[%96, %c256_24] : memref<8x1024xf32, #tpu.memory_space<vmem>>, vector<8x128xf32>
    %98 = vector.shape_cast %97 : vector<8x128xf32> to vector<8x1x128xf32>
    %c16_25 = arith.constant 16 : index
    %c256_26 = arith.constant 256 : index
    %99 = vector.load %arg2[%c16_25, %c256_26] : memref<32x1024xf32, #tpu.memory_space<vmem>>, vector<16x128xf32>
    %100 = vector.shape_cast %99 : vector<16x128xf32> to vector<1x16x128xf32>
    %101 = vector.broadcast %98 : vector<8x1x128xf32> to vector<8x16x128xf32>
    %102 = vector.broadcast %100 : vector<1x16x128xf32> to vector<8x16x128xf32>
    %103 = arith.addf %101, %102 : vector<8x16x128xf32>
    %104 = arith.maximumf %95, %103 : vector<8x16x128xf32>
    %105 = arith.index_cast %1 : i32 to index
    %c384_27 = arith.constant 384 : index
    %106 = vector.load %arg1[%105, %c384_27] : memref<8x1024xf32, #tpu.memory_space<vmem>>, vector<8x128xf32>
    %107 = vector.shape_cast %106 : vector<8x128xf32> to vector<8x1x128xf32>
    %c16_28 = arith.constant 16 : index
    %c384_29 = arith.constant 384 : index
    %108 = vector.load %arg2[%c16_28, %c384_29] : memref<32x1024xf32, #tpu.memory_space<vmem>>, vector<16x128xf32>
    %109 = vector.shape_cast %108 : vector<16x128xf32> to vector<1x16x128xf32>
    %110 = vector.broadcast %107 : vector<8x1x128xf32> to vector<8x16x128xf32>
    %111 = vector.broadcast %109 : vector<1x16x128xf32> to vector<8x16x128xf32>
    %112 = arith.addf %110, %111 : vector<8x16x128xf32>
    %113 = arith.maximumf %104, %112 : vector<8x16x128xf32>
    %114 = arith.index_cast %1 : i32 to index
    %c512_30 = arith.constant 512 : index
    %115 = vector.load %arg1[%114, %c512_30] : memref<8x1024xf32, #tpu.memory_space<vmem>>, vector<8x128xf32>
    %116 = vector.shape_cast %115 : vector<8x128xf32> to vector<8x1x128xf32>
    %c16_31 = arith.constant 16 : index
    %c512_32 = arith.constant 512 : index
    %117 = vector.load %arg2[%c16_31, %c512_32] : memref<32x1024xf32, #tpu.memory_space<vmem>>, vector<16x128xf32>
    %118 = vector.shape_cast %117 : vector<16x128xf32> to vector<1x16x128xf32>
    %119 = vector.broadcast %116 : vector<8x1x128xf32> to vector<8x16x128xf32>
    %120 = vector.broadcast %118 : vector<1x16x128xf32> to vector<8x16x128xf32>
    %121 = arith.addf %119, %120 : vector<8x16x128xf32>
    %122 = arith.maximumf %113, %121 : vector<8x16x128xf32>
    %123 = arith.index_cast %1 : i32 to index
    %c640_33 = arith.constant 640 : index
    %124 = vector.load %arg1[%123, %c640_33] : memref<8x1024xf32, #tpu.memory_space<vmem>>, vector<8x128xf32>
    %125 = vector.shape_cast %124 : vector<8x128xf32> to vector<8x1x128xf32>
    %c16_34 = arith.constant 16 : index
    %c640_35 = arith.constant 640 : index
    %126 = vector.load %arg2[%c16_34, %c640_35] : memref<32x1024xf32, #tpu.memory_space<vmem>>, vector<16x128xf32>
    %127 = vector.shape_cast %126 : vector<16x128xf32> to vector<1x16x128xf32>
    %128 = vector.broadcast %125 : vector<8x1x128xf32> to vector<8x16x128xf32>
    %129 = vector.broadcast %127 : vector<1x16x128xf32> to vector<8x16x128xf32>
    %130 = arith.addf %128, %129 : vector<8x16x128xf32>
    %131 = arith.maximumf %122, %130 : vector<8x16x128xf32>
    %132 = arith.index_cast %1 : i32 to index
    %c768_36 = arith.constant 768 : index
    %133 = vector.load %arg1[%132, %c768_36] : memref<8x1024xf32, #tpu.memory_space<vmem>>, vector<8x128xf32>
    %134 = vector.shape_cast %133 : vector<8x128xf32> to vector<8x1x128xf32>
    %c16_37 = arith.constant 16 : index
    %c768_38 = arith.constant 768 : index
    %135 = vector.load %arg2[%c16_37, %c768_38] : memref<32x1024xf32, #tpu.memory_space<vmem>>, vector<16x128xf32>
    %136 = vector.shape_cast %135 : vector<16x128xf32> to vector<1x16x128xf32>
    %137 = vector.broadcast %134 : vector<8x1x128xf32> to vector<8x16x128xf32>
    %138 = vector.broadcast %136 : vector<1x16x128xf32> to vector<8x16x128xf32>
    %139 = arith.addf %137, %138 : vector<8x16x128xf32>
    %140 = arith.maximumf %131, %139 : vector<8x16x128xf32>
    %141 = arith.index_cast %1 : i32 to index
    %c896_39 = arith.constant 896 : index
    %142 = vector.load %arg1[%141, %c896_39] : memref<8x1024xf32, #tpu.memory_space<vmem>>, vector<8x128xf32>
    %143 = vector.shape_cast %142 : vector<8x128xf32> to vector<8x1x128xf32>
    %c16_40 = arith.constant 16 : index
    %c896_41 = arith.constant 896 : index
    %144 = vector.load %arg2[%c16_40, %c896_41] : memref<32x1024xf32, #tpu.memory_space<vmem>>, vector<16x128xf32>
    %145 = vector.shape_cast %144 : vector<16x128xf32> to vector<1x16x128xf32>
    %146 = vector.broadcast %143 : vector<8x1x128xf32> to vector<8x16x128xf32>
    %147 = vector.broadcast %145 : vector<1x16x128xf32> to vector<8x16x128xf32>
    %148 = arith.addf %146, %147 : vector<8x16x128xf32>
    %149 = arith.maximumf %140, %148 : vector<8x16x128xf32>
    %cst_42 = arith.constant dense<0xFF800000> : vector<8x16xf32>
    %150 = vector.multi_reduction <maximumf>, %149, %cst_42 [2] : vector<8x16x128xf32> to vector<8x16xf32>
    %c0_43 = arith.constant 0 : index
    %c16_44 = arith.constant 16 : index
    %151 = vector.load %arg4[%c0_43, %c16_44] : memref<1x32xf32, #tpu.memory_space<vmem>>, vector<1x16xf32>
    %152 = vector.broadcast %151 : vector<1x16xf32> to vector<8x16xf32>
    %153 = arith.maximumf %150, %152 : vector<8x16xf32>
    %154 = arith.index_cast %1 : i32 to index
    %c16_45 = arith.constant 16 : index
    %155 = vector.load %arg10[%154, %c16_45] : memref<8x32xf32, #tpu.memory_space<vmem>>, vector<8x16xf32>
    tpu.vector_store %arg10[%154, %c16_45], %153 {strides = array<i32>} : memref<8x32xf32, #tpu.memory_space<vmem>>, vector<8x16xf32>,
    %156 = arith.index_cast %1 : i32 to index
    %c0_46 = arith.constant 0 : index
    %157 = vector.load %arg1[%156, %c0_46] : memref<8x1024xf32, #tpu.memory_space<vmem>>, vector<8x128xf32>
    %158 = vector.shape_cast %157 : vector<8x128xf32> to vector<8x1x128xf32>
    %c0_47 = arith.constant 0 : index
    %c0_48 = arith.constant 0 : index
    %159 = vector.load %arg3[%c0_47, %c0_48] : memref<32x1024xf32, #tpu.memory_space<vmem>>, vector<16x128xf32>
    %160 = vector.shape_cast %159 : vector<16x128xf32> to vector<1x16x128xf32>
    %161 = vector.broadcast %158 : vector<8x1x128xf32> to vector<8x16x128xf32>
    %162 = vector.broadcast %160 : vector<1x16x128xf32> to vector<8x16x128xf32>
    %163 = arith.subf %161, %162 : vector<8x16x128xf32>
    %164 = arith.index_cast %1 : i32 to index
    %c128_49 = arith.constant 128 : index
    %165 = vector.load %arg1[%164, %c128_49] : memref<8x1024xf32, #tpu.memory_space<vmem>>, vector<8x128xf32>
    %166 = vector.shape_cast %165 : vector<8x128xf32> to vector<8x1x128xf32>
    %c0_50 = arith.constant 0 : index
    %c128_51 = arith.constant 128 : index
    %167 = vector.load %arg3[%c0_50, %c128_51] : memref<32x1024xf32, #tpu.memory_space<vmem>>, vector<16x128xf32>
    %168 = vector.shape_cast %167 : vector<16x128xf32> to vector<1x16x128xf32>
    %169 = vector.broadcast %166 : vector<8x1x128xf32> to vector<8x16x128xf32>
    %170 = vector.broadcast %168 : vector<1x16x128xf32> to vector<8x16x128xf32>
    %171 = arith.subf %169, %170 : vector<8x16x128xf32>
    %172 = arith.minimumf %163, %171 : vector<8x16x128xf32>
    %173 = arith.index_cast %1 : i32 to index
    %c256_52 = arith.constant 256 : index
    %174 = vector.load %arg1[%173, %c256_52] : memref<8x1024xf32, #tpu.memory_space<vmem>>, vector<8x128xf32>
    %175 = vector.shape_cast %174 : vector<8x128xf32> to vector<8x1x128xf32>
    %c0_53 = arith.constant 0 : index
    %c256_54 = arith.constant 256 : index
    %176 = vector.load %arg3[%c0_53, %c256_54] : memref<32x1024xf32, #tpu.memory_space<vmem>>, vector<16x128xf32>
    %177 = vector.shape_cast %176 : vector<16x128xf32> to vector<1x16x128xf32>
    %178 = vector.broadcast %175 : vector<8x1x128xf32> to vector<8x16x128xf32>
    %179 = vector.broadcast %177 : vector<1x16x128xf32> to vector<8x16x128xf32>
    %180 = arith.subf %178, %179 : vector<8x16x128xf32>
    %181 = arith.minimumf %172, %180 : vector<8x16x128xf32>
    %182 = arith.index_cast %1 : i32 to index
    %c384_55 = arith.constant 384 : index
    %183 = vector.load %arg1[%182, %c384_55] : memref<8x1024xf32, #tpu.memory_space<vmem>>, vector<8x128xf32>
    %184 = vector.shape_cast %183 : vector<8x128xf32> to vector<8x1x128xf32>
    %c0_56 = arith.constant 0 : index
    %c384_57 = arith.constant 384 : index
    %185 = vector.load %arg3[%c0_56, %c384_57] : memref<32x1024xf32, #tpu.memory_space<vmem>>, vector<16x128xf32>
    %186 = vector.shape_cast %185 : vector<16x128xf32> to vector<1x16x128xf32>
    %187 = vector.broadcast %184 : vector<8x1x128xf32> to vector<8x16x128xf32>
    %188 = vector.broadcast %186 : vector<1x16x128xf32> to vector<8x16x128xf32>
    %189 = arith.subf %187, %188 : vector<8x16x128xf32>
    %190 = arith.minimumf %181, %189 : vector<8x16x128xf32>
    %191 = arith.index_cast %1 : i32 to index
    %c512_58 = arith.constant 512 : index
    %192 = vector.load %arg1[%191, %c512_58] : memref<8x1024xf32, #tpu.memory_space<vmem>>, vector<8x128xf32>
    %193 = vector.shape_cast %192 : vector<8x128xf32> to vector<8x1x128xf32>
    %c0_59 = arith.constant 0 : index
    %c512_60 = arith.constant 512 : index
    %194 = vector.load %arg3[%c0_59, %c512_60] : memref<32x1024xf32, #tpu.memory_space<vmem>>, vector<16x128xf32>
    %195 = vector.shape_cast %194 : vector<16x128xf32> to vector<1x16x128xf32>
    %196 = vector.broadcast %193 : vector<8x1x128xf32> to vector<8x16x128xf32>
    %197 = vector.broadcast %195 : vector<1x16x128xf32> to vector<8x16x128xf32>
    %198 = arith.subf %196, %197 : vector<8x16x128xf32>
    %199 = arith.minimumf %190, %198 : vector<8x16x128xf32>
    %200 = arith.index_cast %1 : i32 to index
    %c640_61 = arith.constant 640 : index
    %201 = vector.load %arg1[%200, %c640_61] : memref<8x1024xf32, #tpu.memory_space<vmem>>, vector<8x128xf32>
    %202 = vector.shape_cast %201 : vector<8x128xf32> to vector<8x1x128xf32>
    %c0_62 = arith.constant 0 : index
    %c640_63 = arith.constant 640 : index
    %203 = vector.load %arg3[%c0_62, %c640_63] : memref<32x1024xf32, #tpu.memory_space<vmem>>, vector<16x128xf32>
    %204 = vector.shape_cast %203 : vector<16x128xf32> to vector<1x16x128xf32>
    %205 = vector.broadcast %202 : vector<8x1x128xf32> to vector<8x16x128xf32>
    %206 = vector.broadcast %204 : vector<1x16x128xf32> to vector<8x16x128xf32>
    %207 = arith.subf %205, %206 : vector<8x16x128xf32>
    %208 = arith.minimumf %199, %207 : vector<8x16x128xf32>
    %209 = arith.index_cast %1 : i32 to index
    %c768_64 = arith.constant 768 : index
    %210 = vector.load %arg1[%209, %c768_64] : memref<8x1024xf32, #tpu.memory_space<vmem>>, vector<8x128xf32>
    %211 = vector.shape_cast %210 : vector<8x128xf32> to vector<8x1x128xf32>
    %c0_65 = arith.constant 0 : index
    %c768_66 = arith.constant 768 : index
    %212 = vector.load %arg3[%c0_65, %c768_66] : memref<32x1024xf32, #tpu.memory_space<vmem>>, vector<16x128xf32>
    %213 = vector.shape_cast %212 : vector<16x128xf32> to vector<1x16x128xf32>
    %214 = vector.broadcast %211 : vector<8x1x128xf32> to vector<8x16x128xf32>
    %215 = vector.broadcast %213 : vector<1x16x128xf32> to vector<8x16x128xf32>
    %216 = arith.subf %214, %215 : vector<8x16x128xf32>
    %217 = arith.minimumf %208, %216 : vector<8x16x128xf32>
    %218 = arith.index_cast %1 : i32 to index
    %c896_67 = arith.constant 896 : index
    %219 = vector.load %arg1[%218, %c896_67] : memref<8x1024xf32, #tpu.memory_space<vmem>>, vector<8x128xf32>
    %220 = vector.shape_cast %219 : vector<8x128xf32> to vector<8x1x128xf32>
    %c0_68 = arith.constant 0 : index
    %c896_69 = arith.constant 896 : index
    %221 = vector.load %arg3[%c0_68, %c896_69] : memref<32x1024xf32, #tpu.memory_space<vmem>>, vector<16x128xf32>
    %222 = vector.shape_cast %221 : vector<16x128xf32> to vector<1x16x128xf32>
    %223 = vector.broadcast %220 : vector<8x1x128xf32> to vector<8x16x128xf32>
    %224 = vector.broadcast %222 : vector<1x16x128xf32> to vector<8x16x128xf32>
    %225 = arith.subf %223, %224 : vector<8x16x128xf32>
    %226 = arith.minimumf %217, %225 : vector<8x16x128xf32>
    %cst_70 = arith.constant dense<0x7F800000> : vector<8x16xf32>
    %227 = vector.multi_reduction <minimumf>, %226, %cst_70 [2] : vector<8x16x128xf32> to vector<8x16xf32>
    %c0_71 = arith.constant 0 : index
    %c0_72 = arith.constant 0 : index
    %228 = vector.load %arg5[%c0_71, %c0_72] : memref<1x32xf32, #tpu.memory_space<vmem>>, vector<1x16xf32>
    %cst_73 = arith.constant 0.000000e+00 : f32
    %229 = vector.broadcast %cst_73 : f32 to vector<1x16xf32>
    %230 = arith.subf %229, %228 : vector<1x16xf32>
    %231 = vector.broadcast %230 : vector<1x16xf32> to vector<8x16xf32>
    %232 = arith.minimumf %227, %231 : vector<8x16xf32>
    %233 = arith.index_cast %1 : i32 to index
    %c0_74 = arith.constant 0 : index
    %234 = vector.load %arg11[%233, %c0_74] : memref<8x32xf32, #tpu.memory_space<vmem>>, vector<8x16xf32>
    tpu.vector_store %arg11[%233, %c0_74], %232 {strides = array<i32>} : memref<8x32xf32, #tpu.memory_space<vmem>>, vector<8x16xf32>,
    %235 = arith.index_cast %1 : i32 to index
    %c0_75 = arith.constant 0 : index
    %236 = vector.load %arg1[%235, %c0_75] : memref<8x1024xf32, #tpu.memory_space<vmem>>, vector<8x128xf32>
    %237 = vector.shape_cast %236 : vector<8x128xf32> to vector<8x1x128xf32>
    %c16_76 = arith.constant 16 : index
    %c0_77 = arith.constant 0 : index
    %238 = vector.load %arg3[%c16_76, %c0_77] : memref<32x1024xf32, #tpu.memory_space<vmem>>, vector<16x128xf32>
    %239 = vector.shape_cast %238 : vector<16x128xf32> to vector<1x16x128xf32>
    %240 = vector.broadcast %237 : vector<8x1x128xf32> to vector<8x16x128xf32>
    %241 = vector.broadcast %239 : vector<1x16x128xf32> to vector<8x16x128xf32>
    %242 = arith.subf %240, %241 : vector<8x16x128xf32>
    %243 = arith.index_cast %1 : i32 to index
    %c128_78 = arith.constant 128 : index
    %244 = vector.load %arg1[%243, %c128_78] : memref<8x1024xf32, #tpu.memory_space<vmem>>, vector<8x128xf32>
    %245 = vector.shape_cast %244 : vector<8x128xf32> to vector<8x1x128xf32>
    %c16_79 = arith.constant 16 : index
    %c128_80 = arith.constant 128 : index
    %246 = vector.load %arg3[%c16_79, %c128_80] : memref<32x1024xf32, #tpu.memory_space<vmem>>, vector<16x128xf32>
    %247 = vector.shape_cast %246 : vector<16x128xf32> to vector<1x16x128xf32>
    %248 = vector.broadcast %245 : vector<8x1x128xf32> to vector<8x16x128xf32>
    %249 = vector.broadcast %247 : vector<1x16x128xf32> to vector<8x16x128xf32>
    %250 = arith.subf %248, %249 : vector<8x16x128xf32>
    %251 = arith.minimumf %242, %250 : vector<8x16x128xf32>
    %252 = arith.index_cast %1 : i32 to index
    %c256_81 = arith.constant 256 : index
    %253 = vector.load %arg1[%252, %c256_81] : memref<8x1024xf32, #tpu.memory_space<vmem>>, vector<8x128xf32>
    %254 = vector.shape_cast %253 : vector<8x128xf32> to vector<8x1x128xf32>
    %c16_82 = arith.constant 16 : index
    %c256_83 = arith.constant 256 : index
    %255 = vector.load %arg3[%c16_82, %c256_83] : memref<32x1024xf32, #tpu.memory_space<vmem>>, vector<16x128xf32>
    %256 = vector.shape_cast %255 : vector<16x128xf32> to vector<1x16x128xf32>
    %257 = vector.broadcast %254 : vector<8x1x128xf32> to vector<8x16x128xf32>
    %258 = vector.broadcast %256 : vector<1x16x128xf32> to vector<8x16x128xf32>
    %259 = arith.subf %257, %258 : vector<8x16x128xf32>
    %260 = arith.minimumf %251, %259 : vector<8x16x128xf32>
    %261 = arith.index_cast %1 : i32 to index
    %c384_84 = arith.constant 384 : index
    %262 = vector.load %arg1[%261, %c384_84] : memref<8x1024xf32, #tpu.memory_space<vmem>>, vector<8x128xf32>
    %263 = vector.shape_cast %262 : vector<8x128xf32> to vector<8x1x128xf32>
    %c16_85 = arith.constant 16 : index
    %c384_86 = arith.constant 384 : index
    %264 = vector.load %arg3[%c16_85, %c384_86] : memref<32x1024xf32, #tpu.memory_space<vmem>>, vector<16x128xf32>
    %265 = vector.shape_cast %264 : vector<16x128xf32> to vector<1x16x128xf32>
    %266 = vector.broadcast %263 : vector<8x1x128xf32> to vector<8x16x128xf32>
    %267 = vector.broadcast %265 : vector<1x16x128xf32> to vector<8x16x128xf32>
    %268 = arith.subf %266, %267 : vector<8x16x128xf32>
    %269 = arith.minimumf %260, %268 : vector<8x16x128xf32>
    %270 = arith.index_cast %1 : i32 to index
    %c512_87 = arith.constant 512 : index
    %271 = vector.load %arg1[%270, %c512_87] : memref<8x1024xf32, #tpu.memory_space<vmem>>, vector<8x128xf32>
    %272 = vector.shape_cast %271 : vector<8x128xf32> to vector<8x1x128xf32>
    %c16_88 = arith.constant 16 : index
    %c512_89 = arith.constant 512 : index
    %273 = vector.load %arg3[%c16_88, %c512_89] : memref<32x1024xf32, #tpu.memory_space<vmem>>, vector<16x128xf32>
    %274 = vector.shape_cast %273 : vector<16x128xf32> to vector<1x16x128xf32>
    %275 = vector.broadcast %272 : vector<8x1x128xf32> to vector<8x16x128xf32>
    %276 = vector.broadcast %274 : vector<1x16x128xf32> to vector<8x16x128xf32>
    %277 = arith.subf %275, %276 : vector<8x16x128xf32>
    %278 = arith.minimumf %269, %277 : vector<8x16x128xf32>
    %279 = arith.index_cast %1 : i32 to index
    %c640_90 = arith.constant 640 : index
    %280 = vector.load %arg1[%279, %c640_90] : memref<8x1024xf32, #tpu.memory_space<vmem>>, vector<8x128xf32>
    %281 = vector.shape_cast %280 : vector<8x128xf32> to vector<8x1x128xf32>
    %c16_91 = arith.constant 16 : index
    %c640_92 = arith.constant 640 : index
    %282 = vector.load %arg3[%c16_91, %c640_92] : memref<32x1024xf32, #tpu.memory_space<vmem>>, vector<16x128xf32>
    %283 = vector.shape_cast %282 : vector<16x128xf32> to vector<1x16x128xf32>
    %284 = vector.broadcast %281 : vector<8x1x128xf32> to vector<8x16x128xf32>
    %285 = vector.broadcast %283 : vector<1x16x128xf32> to vector<8x16x128xf32>
    %286 = arith.subf %284, %285 : vector<8x16x128xf32>
    %287 = arith.minimumf %278, %286 : vector<8x16x128xf32>
    %288 = arith.index_cast %1 : i32 to index
    %c768_93 = arith.constant 768 : index
    %289 = vector.load %arg1[%288, %c768_93] : memref<8x1024xf32, #tpu.memory_space<vmem>>, vector<8x128xf32>
    %290 = vector.shape_cast %289 : vector<8x128xf32> to vector<8x1x128xf32>
    %c16_94 = arith.constant 16 : index
    %c768_95 = arith.constant 768 : index
    %291 = vector.load %arg3[%c16_94, %c768_95] : memref<32x1024xf32, #tpu.memory_space<vmem>>, vector<16x128xf32>
    %292 = vector.shape_cast %291 : vector<16x128xf32> to vector<1x16x128xf32>
    %293 = vector.broadcast %290 : vector<8x1x128xf32> to vector<8x16x128xf32>
    %294 = vector.broadcast %292 : vector<1x16x128xf32> to vector<8x16x128xf32>
    %295 = arith.subf %293, %294 : vector<8x16x128xf32>
    %296 = arith.minimumf %287, %295 : vector<8x16x128xf32>
    %297 = arith.index_cast %1 : i32 to index
    %c896_96 = arith.constant 896 : index
    %298 = vector.load %arg1[%297, %c896_96] : memref<8x1024xf32, #tpu.memory_space<vmem>>, vector<8x128xf32>
    %299 = vector.shape_cast %298 : vector<8x128xf32> to vector<8x1x128xf32>
    %c16_97 = arith.constant 16 : index
    %c896_98 = arith.constant 896 : index
    %300 = vector.load %arg3[%c16_97, %c896_98] : memref<32x1024xf32, #tpu.memory_space<vmem>>, vector<16x128xf32>
    %301 = vector.shape_cast %300 : vector<16x128xf32> to vector<1x16x128xf32>
    %302 = vector.broadcast %299 : vector<8x1x128xf32> to vector<8x16x128xf32>
    %303 = vector.broadcast %301 : vector<1x16x128xf32> to vector<8x16x128xf32>
    %304 = arith.subf %302, %303 : vector<8x16x128xf32>
    %305 = arith.minimumf %296, %304 : vector<8x16x128xf32>
    %cst_99 = arith.constant dense<0x7F800000> : vector<8x16xf32>
    %306 = vector.multi_reduction <minimumf>, %305, %cst_99 [2] : vector<8x16x128xf32> to vector<8x16xf32>
    %c0_100 = arith.constant 0 : index
    %c16_101 = arith.constant 16 : index
    %307 = vector.load %arg5[%c0_100, %c16_101] : memref<1x32xf32, #tpu.memory_space<vmem>>, vector<1x16xf32>
    %cst_102 = arith.constant 0.000000e+00 : f32
    %308 = vector.broadcast %cst_102 : f32 to vector<1x16xf32>
    %309 = arith.subf %308, %307 : vector<1x16xf32>
    %310 = vector.broadcast %309 : vector<1x16xf32> to vector<8x16xf32>
    %311 = arith.minimumf %306, %310 : vector<8x16xf32>
    %312 = arith.index_cast %1 : i32 to index
    %c16_103 = arith.constant 16 : index
    %313 = vector.load %arg11[%312, %c16_103] : memref<8x32xf32, #tpu.memory_space<vmem>>, vector<8x16xf32>
    tpu.vector_store %arg11[%312, %c16_103], %311 {strides = array<i32>} : memref<8x32xf32, #tpu.memory_space<vmem>>, vector<8x16xf32>,
    %c1_i32 = arith.constant 1 : i32
    %c0_104 = arith.constant 0 : index
    %c0_105 = arith.constant 0 : index
    %314 = vector.load %arg11[%c0_104, %c0_105] : memref<8x32xf32, #tpu.memory_space<vmem>>, vector<8x32xf32>
    %c0_106 = arith.constant 0 : index
    %c0_107 = arith.constant 0 : index
    %315 = vector.load %arg6[%c0_106, %c0_107] : memref<32x128xf32, #tpu.memory_space<vmem>>, vector<32x128xf32>
    %cst_108 = arith.constant dense<0.000000e+00> : vector<8x128xf32>
    %316 = tpu.matmul %314, %315, %cst_108 {dimension_numbers = #tpu.dot_dimension_numbers<[1], [0], [0], [1], [0, 0, 1, 1], [], []>} : vector<8x32xf32>, vector<32x128xf32>, vector<8x128xf32> -> vector<8x128xf32>
    %c0_109 = arith.constant 0 : index
    %c0_110 = arith.constant 0 : index
    %317 = vector.load %arg10[%c0_109, %c0_110] : memref<8x32xf32, #tpu.memory_space<vmem>>, vector<8x32xf32>
    %c0_111 = arith.constant 0 : index
    %c0_112 = arith.constant 0 : index
    %318 = vector.load %arg7[%c0_111, %c0_112] : memref<32x128xf32, #tpu.memory_space<vmem>>, vector<32x128xf32>
    %cst_113 = arith.constant dense<0.000000e+00> : vector<8x128xf32>
    %319 = tpu.matmul %317, %318, %cst_113 {dimension_numbers = #tpu.dot_dimension_numbers<[1], [0], [0], [1], [0, 0, 1, 1], [], []>} : vector<8x32xf32>, vector<32x128xf32>, vector<8x128xf32> -> vector<8x128xf32>
    %320 = arith.addf %316, %319 : vector<8x128xf32>
    %c0_114 = arith.constant 0 : index
    %c0_115 = arith.constant 0 : index
    %321 = vector.load %arg8[%c0_114, %c0_115] : memref<1x128xf32, #tpu.memory_space<vmem>>, vector<1x128xf32>
    %322 = vector.broadcast %321 : vector<1x128xf32> to vector<8x128xf32>
    %323 = arith.addf %320, %322 : vector<8x128xf32>
    %c0_116 = arith.constant 0 : index
    %c0_117 = arith.constant 0 : index
    %324 = vector.load %arg9[%c0_116, %c0_117] : memref<8x128xf32, #tpu.memory_space<vmem>>, vector<8x128xf32>
    tpu.vector_store %arg9[%c0_116, %c0_117], %323 {strides = array<i32>} : memref<8x128xf32, #tpu.memory_space<vmem>>, vector<8x128xf32>,
    return
  }
  func.func @transform_0(%arg0: i32) -> (i32, i32) {
    %c0_i32 = arith.constant 0 : i32
    %c0_i32_0 = arith.constant 0 : i32
    return %arg0, %c0_i32 : i32, i32
  }
  func.func @transform_1(%arg0: i32) -> (i32, i32) {
    %c0_i32 = arith.constant 0 : i32
    %c0_i32_0 = arith.constant 0 : i32
    %c0_i32_1 = arith.constant 0 : i32
    return %c0_i32, %c0_i32_0 : i32, i32
  }
  func.func @transform_2(%arg0: i32) -> (i32, i32) {
    %c0_i32 = arith.constant 0 : i32
    %c0_i32_0 = arith.constant 0 : i32
    %c0_i32_1 = arith.constant 0 : i32
    return %c0_i32, %c0_i32_0 : i32, i32
  }
  func.func @transform_3(%arg0: i32) -> (i32, i32) {
    %c0_i32 = arith.constant 0 : i32
    %c0_i32_0 = arith.constant 0 : i32
    %c0_i32_1 = arith.constant 0 : i32
    return %c0_i32, %c0_i32_0 : i32, i32
  }
  func.func @transform_4(%arg0: i32) -> (i32, i32) {
    %c0_i32 = arith.constant 0 : i32
    %c0_i32_0 = arith.constant 0 : i32
    %c0_i32_1 = arith.constant 0 : i32
    return %c0_i32, %c0_i32_0 : i32, i32
  }
  func.func @transform_5(%arg0: i32) -> (i32, i32) {
    %c0_i32 = arith.constant 0 : i32
    %c0_i32_0 = arith.constant 0 : i32
    %c0_i32_1 = arith.constant 0 : i32
    return %c0_i32, %c0_i32_0 : i32, i32
  }
  func.func @transform_6(%arg0: i32) -> (i32, i32) {
    %c0_i32 = arith.constant 0 : i32
    %c0_i32_0 = arith.constant 0 : i32
    %c0_i32_1 = arith.constant 0 : i32
    return %c0_i32, %c0_i32_0 : i32, i32
  }
  func.func @transform_7(%arg0: i32) -> (i32, i32) {
    %c0_i32 = arith.constant 0 : i32
    %c0_i32_0 = arith.constant 0 : i32
    %c0_i32_1 = arith.constant 0 : i32
    return %c0_i32, %c0_i32_0 : i32, i32
  }
  func.func @transform_8(%arg0: i32) -> (i32, i32) {
    %c0_i32 = arith.constant 0 : i32
    %c0_i32_0 = arith.constant 0 : i32
    return %arg0, %c0_i32 : i32, i32
  }
}

</mosaic_0001>

<llo_original>
// kernel: tpu_custom_call.1
$region0: #{tpu_custom_call.1}
  #allocation0 [shape = 'u32[]', space=smem, size = 0x4, offset = 0x4, fixed_abs, tag = 'smem constant byte address 0x4 - core index']
  #allocation1 [shape = 'u32[144,128]{1,0:T(1,128)}', space=vmem, size = 0x12000, scoped, tag = 'internal scratch']
  #allocation2 [shape = 'f32[8,32]{1,0:T(8,128)}', space=vmem, size = 0x1000, scoped, tag = 'scratch operand']
  #allocation3 [shape = 'f32[8,32]{1,0:T(8,128)}', space=vmem, size = 0x1000, scoped, tag = 'scratch operand']
  %s0 = inlined_call_operand.hbm [shape: f32[8,1024], index: 0, kind: input, shape index: {}]
  %s1 = inlined_call_operand.hbm [shape: f32[32,1024], index: 1, kind: input, shape index: {}]
  %s2 = inlined_call_operand.hbm [shape: f32[32,1024], index: 2, kind: input, shape index: {}]
  %s3 = inlined_call_operand.vmem [shape: f32[1,32], index: 3, kind: input, shape index: {}]
  %s4 = inlined_call_operand.vmem [shape: f32[1,32], index: 4, kind: input, shape index: {}]
  %s5 = inlined_call_operand.hbm [shape: f32[32,128], index: 5, kind: input, shape index: {}]
  %s6 = inlined_call_operand.hbm [shape: f32[32,128], index: 6, kind: input, shape index: {}]
  %s7 = inlined_call_operand.vmem [shape: f32[1,128], index: 7, kind: input, shape index: {}]
  %s8 = inlined_call_operand.hbm [shape: f32[8,128], index: 8, kind: output, shape index: {}]
  %s9 = sld [smem:[#allocation0]]
  $region62: #{tpu_custom_call.1} parent=0
    _
  %s11 = ssub.s32 1, %s9
  %s12 = scalar_select 0, %s11, %s9
  $region1: #{tpu_custom_call.1} parent=0
    #allocation4 [shape = 'u8[32768]{0}', space=vmem, size = 0x8000, scoped, tag = 'input window, operand 0, single buffered']
    #allocation5 [shape = 's32[1]{0}', space=sflag, size = 0x4, scoped, tag = 'scoped memory for tpu_custom_call.1']
    #allocation6 [shape = 's32[1]{0}', space=sflag, size = 0x4, scoped, tag = 'scoped memory for tpu_custom_call.1']
    #allocation7 [shape = 'u8[131072]{0}', space=vmem, size = 0x20000, scoped, tag = 'input window, operand 1, single buffered']
    #allocation8 [shape = 's32[1]{0}', space=sflag, size = 0x4, scoped, tag = 'scoped memory for tpu_custom_call.1']
    #allocation9 [shape = 'u8[131072]{0}', space=vmem, size = 0x20000, scoped, tag = 'input window, operand 2, single buffered']
    #allocation10 [shape = 'u8[16384]{0}', space=vmem, size = 0x4000, scoped, tag = 'input window, operand 5, single buffered']
    #allocation11 [shape = 's32[1]{0}', space=sflag, size = 0x4, scoped, tag = 'scoped memory for tpu_custom_call.1']
    #allocation12 [shape = 'u8[16384]{0}', space=vmem, size = 0x4000, scoped, tag = 'input window, operand 6, single buffered']
    #allocation13 [shape = 'u8[4096]{0}', space=vmem, size = 0x1000, scoped, tag = 'output window, operand 0, single buffered']
    %13 = vsyncpa [#allocation5], 0
    %14 = vsyncpa [#allocation8], 0
    %15 = vsyncpa [#allocation11], 0
    %16 = vsyncpa [#allocation6], 0
    // Predicated region
    $region2: #{tpu_custom_call.1} parent=1 // pred_check
      _
    $region3: #{tpu_custom_call.1} parent=1 // pred_check_branch
      %18 = sbr.rel (0) target = $region5
    $region4: #{tpu_custom_call.1} parent=1 // pred_region
      %s20 = ssub.s32 1024, 1024
      %21 = vsyncadd [#allocation5], %s20
      %s23 = sshll.u32 [#allocation4], 4
      %s24 = int_to_ptr.vmem [resolvable:$true] %s23
      %26 = dma.hbm_to_vmem [thread:$0]  %s0, 1024, %s24, [#allocation5]
    $region5: #{tpu_custom_call.1} parent=1 // pred_fallthru
      _
    // Predicated region
    $region6: #{tpu_custom_call.1} parent=1 // pred_check
      _
    $region7: #{tpu_custom_call.1} parent=1 // pred_check_branch
      %28 = sbr.rel (0) target = $region9
    $region8: #{tpu_custom_call.1} parent=1 // pred_region
      %s30 = ssub.s32 4096, 4096
      %31 = vsyncadd [#allocation8], %s30
      %s32 = sshll.u32 [#allocation7], 4
      %s33 = int_to_ptr.vmem [resolvable:$true] %s32
      %38 = dma.hbm_to_vmem [thread:$0]  %s1, 4096, %s33, [#allocation8], 1024, 1024, 64
    $region9: #{tpu_custom_call.1} parent=1 // pred_fallthru
      _
    // Predicated region
    $region10: #{tpu_custom_call.1} parent=1 // pred_check
      _
    $region11: #{tpu_custom_call.1} parent=1 // pred_check_branch
      %40 = sbr.rel (0) target = $region13
    $region12: #{tpu_custom_call.1} parent=1 // pred_region
      %s42 = ssub.s32 4096, 4096
      %43 = vsyncadd [#allocation8], %s42
      %s44 = sshll.u32 [#allocation9], 4
      %s45 = int_to_ptr.vmem [resolvable:$true] %s44
      %50 = dma.hbm_to_vmem [thread:$0]  %s2, 4096, %s45, [#allocation8], 1024, 1024, 64
    $region13: #{tpu_custom_call.1} parent=1 // pred_fallthru
      _
    // Predicated region
    $region14: #{tpu_custom_call.1} parent=1 // pred_check
      _
    $region15: #{tpu_custom_call.1} parent=1 // pred_check_branch
      %52 = sbr.rel (0) target = $region17
    $region16: #{tpu_custom_call.1} parent=1 // pred_region
      _
    $region17: #{tpu_custom_call.1} parent=1 // pred_fallthru
      _
    // Predicated region
    $region18: #{tpu_custom_call.1} parent=1 // pred_check
      _
    $region19: #{tpu_custom_call.1} parent=1 // pred_check_branch
      %54 = sbr.rel (0) target = $region21
    $region20: #{tpu_custom_call.1} parent=1 // pred_region
      _
    $region21: #{tpu_custom_call.1} parent=1 // pred_fallthru
      _
    // Predicated region
    $region22: #{tpu_custom_call.1} parent=1 // pred_check
      _
    $region23: #{tpu_custom_call.1} parent=1 // pred_check_branch
      %56 = sbr.rel (0) target = $region25
    $region24: #{tpu_custom_call.1} parent=1 // pred_region
      %s58 = ssub.s32 512, 512
      %59 = vsyncadd [#allocation11], %s58
      %s60 = sshll.u32 [#allocation10], 4
      %s61 = int_to_ptr.vmem [resolvable:$true] %s60
      %66 = dma.hbm_to_vmem [thread:$0]  %s5, 512, %s61, [#allocation11], 128, 128, 8
    $region25: #{tpu_custom_call.1} parent=1 // pred_fallthru
      _
    // Predicated region
    $region26: #{tpu_custom_call.1} parent=1 // pred_check
      _
    $region27: #{tpu_custom_call.1} parent=1 // pred_check_branch
      %68 = sbr.rel (0) target = $region29
    $region28: #{tpu_custom_call.1} parent=1 // pred_region
      %s70 = ssub.s32 512, 512
      %71 = vsyncadd [#allocation11], %s70
      %s72 = sshll.u32 [#allocation12], 4
      %s73 = int_to_ptr.vmem [resolvable:$true] %s72
      %78 = dma.hbm_to_vmem [thread:$0]  %s6, 512, %s73, [#allocation11], 128, 128, 8
    $region29: #{tpu_custom_call.1} parent=1 // pred_fallthru
      _
    // Predicated region
    $region30: #{tpu_custom_call.1} parent=1 // pred_check
      _
    $region31: #{tpu_custom_call.1} parent=1 // pred_check_branch
      %80 = sbr.rel (0) target = $region33
    $region32: #{tpu_custom_call.1} parent=1 // pred_region
      _
    $region33: #{tpu_custom_call.1} parent=1 // pred_fallthru
      _
    // Predicated region
    $region34: #{tpu_custom_call.1} parent=1 // pred_check
      _
    $region35: #{tpu_custom_call.1} parent=1 // pred_check_branch
      %82 = sbr.rel (0) target = $region37
    $region36: #{tpu_custom_call.1} parent=1 // pred_region
      %83 = dma.done [#allocation5], 1024
    $region37: #{tpu_custom_call.1} parent=1 // pred_fallthru
      _
    // Predicated region
    $region38: #{tpu_custom_call.1} parent=1 // pred_check
      _
    $region39: #{tpu_custom_call.1} parent=1 // pred_check_branch
      %85 = sbr.rel (0) target = $region41
    $region40: #{tpu_custom_call.1} parent=1 // pred_region
      %86 = dma.done [#allocation8], 4096
    $region41: #{tpu_custom_call.1} parent=1 // pred_fallthru
      _
    // Predicated region
    $region42: #{tpu_custom_call.1} parent=1 // pred_check
      _
    $region43: #{tpu_custom_call.1} parent=1 // pred_check_branch
      %88 = sbr.rel (0) target = $region45
    $region44: #{tpu_custom_call.1} parent=1 // pred_region
      %89 = dma.done [#allocation8], 4096
    $region45: #{tpu_custom_call.1} parent=1 // pred_fallthru
      _
    // Predicated region
    $region46: #{tpu_custom_call.1} parent=1 // pred_check
      _
    $region47: #{tpu_custom_call.1} parent=1 // pred_check_branch
      %91 = sbr.rel (0) target = $region49
    $region48: #{tpu_custom_call.1} parent=1 // pred_region
      %92 = dma.done [#allocation11], 512
    $region49: #{tpu_custom_call.1} parent=1 // pred_fallthru
      _
    // Predicated region
    $region50: #{tpu_custom_call.1} parent=1 // pred_check
      _
    $region51: #{tpu_custom_call.1} parent=1 // pred_check_branch
      %94 = sbr.rel (0) target = $region53
    $region52: #{tpu_custom_call.1} parent=1 // pred_region
      %95 = dma.done [#allocation11], 512
    $region53: #{tpu_custom_call.1} parent=1 // pred_fallthru
      _
    %s96 = smul.u32 0, 8
    %s97 = smul.addr %s96, 8
    %s98 = scalar_lea.vmem [#allocation4], %s97
    %v99 = vld [vmem:[%s98] sm:$0xff]
    %v101 = vcombine.high %v99, %v99
    %v103 = vunpack.c.l.s4 1966171168
    %v104 = vunpack.c.0.s8 %v103
    %v105 = vlaneseq
    %v106 = vshrl.u32 %v105, 7
    %v107 = vsub.s32 %v104, %v106
    %v108 = vrot.slane %v99, %v107
    %v110 = vunpack.c.l.s4 1966171168
    %v111 = vunpack.c.0.s8 %v110
    %v112 = vlaneseq
    %v113 = vshrl.u32 %v112, 7
    %v114 = vsub.s32 %v111, %v113
    %v115 = vrot.slane %v101, %v114
    %v116 = vcombine.high %v108, %v108
    %v117 = vcombine.high %v115, %v115
    %v119 = vunpack.c.l.s4 1966171168
    %v120 = vunpack.c.0.s8 %v119
    %v121 = vlaneseq
    %v122 = vshrl.u32 %v121, 7
    %v123 = vsub.s32 %v120, %v122
    %v124 = vrot.slane %v108, %v123
    %v126 = vunpack.c.l.s4 1966171168
    %v127 = vunpack.c.0.s8 %v126
    %v128 = vlaneseq
    %v129 = vshrl.u32 %v128, 7
    %v130 = vsub.s32 %v127, %v129
    %v131 = vrot.slane %v115, %v130
    %v133 = vunpack.c.l.s4 1966171168
    %v134 = vunpack.c.0.s8 %v133
    %v135 = vlaneseq
    %v136 = vshrl.u32 %v135, 7
    %v137 = vsub.s32 %v134, %v136
    %v138 = vrot.slane %v116, %v137
    %v140 = vunpack.c.l.s4 1966171168
    %v141 = vunpack.c.0.s8 %v140
    %v142 = vlaneseq
    %v143 = vshrl.u32 %v142, 7
    %v144 = vsub.s32 %v141, %v143
    %v145 = vrot.slane %v117, %v144
    %v146 = vcombine.high %v124, %v124
    %v147 = vcombine.high %v131, %v131
    %v148 = vcombine.high %v138, %v138
    %v149 = vcombine.high %v145, %v145
    %v150 = vld [vmem:[#allocation7] sm:$0xff]
    %v151 = vld [vmem:[#allocation7 + $0x40] sm:$0xff]
    %v152 = vlaneseq
    %v153 = vshrl.u32 %v152, 7
    %v154 = vsub.s32 0, %v153
    %v155 = vrot.slane %v124, %v154
    %v156 = vlaneseq
    %v157 = vshrl.u32 %v156, 7
    %v158 = vsub.s32 0, %v157
    %v159 = vrot.slane %v138, %v158
    %v160 = vlaneseq
    %v161 = vshrl.u32 %v160, 7
    %v162 = vsub.s32 0, %v161
    %v163 = vrot.slane %v146, %v162
    %v164 = vlaneseq
    %v165 = vshrl.u32 %v164, 7
    %v166 = vsub.s32 0, %v165
    %v167 = vrot.slane %v148, %v166
    %v168 = vlaneseq
    %v169 = vshrl.u32 %v168, 7
    %v170 = vsub.s32 0, %v169
    %v171 = vrot.slane %v131, %v170
    %v172 = vlaneseq
    %v173 = vshrl.u32 %v172, 7
    %v174 = vsub.s32 0, %v173
    %v175 = vrot.slane %v145, %v174
    %v176 = vlaneseq
    %v177 = vshrl.u32 %v176, 7
    %v178 = vsub.s32 0, %v177
    %v179 = vrot.slane %v147, %v178
    %v180 = vlaneseq
    %v181 = vshrl.u32 %v180, 7
    %v182 = vsub.s32 0, %v181
    %v183 = vrot.slane %v149, %v182
    %v192 = vadd.f32 %v155, %v150
    %v193 = vadd.f32 %v155, %v151
    %v194 = vadd.f32 %v159, %v150
    %v195 = vadd.f32 %v159, %v151
    %v196 = vadd.f32 %v163, %v150
    %v197 = vadd.f32 %v163, %v151
    %v198 = vadd.f32 %v167, %v150
    %v199 = vadd.f32 %v167, %v151
    %v200 = vadd.f32 %v171, %v150
    %v201 = vadd.f32 %v171, %v151
    %v202 = vadd.f32 %v175, %v150
    %v203 = vadd.f32 %v175, %v151
    %v204 = vadd.f32 %v179, %v150
    %v205 = vadd.f32 %v179, %v151
    %v206 = vadd.f32 %v183, %v150
    %v207 = vadd.f32 %v183, %v151
    %v208 = vld [vmem:[%s98 + $0x8] sm:$0xff]
    %v210 = vcombine.high %v208, %v208
    %v212 = vunpack.c.l.s4 1966171168
    %v213 = vunpack.c.0.s8 %v212
    %v214 = vlaneseq
    %v215 = vshrl.u32 %v214, 7
    %v216 = vsub.s32 %v213, %v215
    %v217 = vrot.slane %v208, %v216
    %v219 = vunpack.c.l.s4 1966171168
    %v220 = vunpack.c.0.s8 %v219
    %v221 = vlaneseq
    %v222 = vshrl.u32 %v221, 7
    %v223 = vsub.s32 %v220, %v222
    %v224 = vrot.slane %v210, %v223
    %v225 = vcombine.high %v217, %v217
    %v226 = vcombine.high %v224, %v224
    %v228 = vunpack.c.l.s4 1966171168
    %v229 = vunpack.c.0.s8 %v228
    %v230 = vlaneseq
    %v231 = vshrl.u32 %v230, 7
    %v232 = vsub.s32 %v229, %v231
    %v233 = vrot.slane %v217, %v232
    %v235 = vunpack.c.l.s4 1966171168
    %v236 = vunpack.c.0.s8 %v235
    %v237 = vlaneseq
    %v238 = vshrl.u32 %v237, 7
    %v239 = vsub.s32 %v236, %v238
    %v240 = vrot.slane %v224, %v239
    %v242 = vunpack.c.l.s4 1966171168
    %v243 = vunpack.c.0.s8 %v242
    %v244 = vlaneseq
    %v245 = vshrl.u32 %v244, 7
    %v246 = vsub.s32 %v243, %v245
    %v247 = vrot.slane %v225, %v246
    %v249 = vunpack.c.l.s4 1966171168
    %v250 = vunpack.c.0.s8 %v249
    %v251 = vlaneseq
    %v252 = vshrl.u32 %v251, 7
    %v253 = vsub.s32 %v250, %v252
    %v254 = vrot.slane %v226, %v253
    %v255 = vcombine.high %v233, %v233
    %v256 = vcombine.high %v240, %v240
    %v257 = vcombine.high %v247, %v247
    %v258 = vcombine.high %v254, %v254
    %v259 = vld [vmem:[#allocation7 + $0x8] sm:$0xff]
    %v260 = vld [vmem:[#allocation7 + $0x48] sm:$0xff]
    %v261 = vlaneseq
    %v262 = vshrl.u32 %v261, 7
    %v263 = vsub.s32 0, %v262
    %v264 = vrot.slane %v233, %v263
    %v265 = vlaneseq
    %v266 = vshrl.u32 %v265, 7
    %v267 = vsub.s32 0, %v266
    %v268 = vrot.slane %v247, %v267
    %v269 = vlaneseq
    %v270 = vshrl.u32 %v269, 7
    %v271 = vsub.s32 0, %v270
    %v272 = vrot.slane %v255, %v271
    %v273 = vlaneseq
    %v274 = vshrl.u32 %v273, 7
    %v275 = vsub.s32 0, %v274
    %v276 = vrot.slane %v257, %v275
    %v277 = vlaneseq
    %v278 = vshrl.u32 %v277, 7
    %v279 = vsub.s32 0, %v278
    %v280 = vrot.slane %v240, %v279
    %v281 = vlaneseq
    %v282 = vshrl.u32 %v281, 7
    %v283 = vsub.s32 0, %v282
    %v284 = vrot.slane %v254, %v283
    %v285 = vlaneseq
    %v286 = vshrl.u32 %v285, 7
    %v287 = vsub.s32 0, %v286
    %v288 = vrot.slane %v256, %v287
    %v289 = vlaneseq
    %v290 = vshrl.u32 %v289, 7
    %v291 = vsub.s32 0, %v290
    %v292 = vrot.slane %v258, %v291
    %v301 = vadd.f32 %v264, %v259
    %v302 = vadd.f32 %v264, %v260
    %v303 = vadd.f32 %v268, %v259
    %v304 = vadd.f32 %v268, %v260
    %v305 = vadd.f32 %v272, %v259
    %v306 = vadd.f32 %v272, %v260
    %v307 = vadd.f32 %v276, %v259
    %v308 = vadd.f32 %v276, %v260
    %v309 = vadd.f32 %v280, %v259
    %v310 = vadd.f32 %v280, %v260
    %v311 = vadd.f32 %v284, %v259
    %v312 = vadd.f32 %v284, %v260
    %v313 = vadd.f32 %v288, %v259
    %v314 = vadd.f32 %v288, %v260
    %v315 = vadd.f32 %v292, %v259
    %v316 = vadd.f32 %v292, %v260
    %v317 = vmax.f32 %v192, %v301
    %v318 = vmax.f32 %v193, %v302
    %v319 = vmax.f32 %v194, %v303
    %v320 = vmax.f32 %v195, %v304
    %v321 = vmax.f32 %v196, %v305
    %v322 = vmax.f32 %v197, %v306
    %v323 = vmax.f32 %v198, %v307
    %v324 = vmax.f32 %v199, %v308
    %v325 = vmax.f32 %v200, %v309
    %v326 = vmax.f32 %v201, %v310
    %v327 = vmax.f32 %v202, %v311
    %v328 = vmax.f32 %v203, %v312
    %v329 = vmax.f32 %v204, %v313
    %v330 = vmax.f32 %v205, %v314
    %v331 = vmax.f32 %v206, %v315
    %v332 = vmax.f32 %v207, %v316
    %v333 = vld [vmem:[%s98 + $0x10] sm:$0xff]
    %v335 = vcombine.high %v333, %v333
    %v337 = vunpack.c.l.s4 1966171168
    %v338 = vunpack.c.0.s8 %v337
    %v339 = vlaneseq
    %v340 = vshrl.u32 %v339, 7
    %v341 = vsub.s32 %v338, %v340
    %v342 = vrot.slane %v333, %v341
    %v344 = vunpack.c.l.s4 1966171168
    %v345 = vunpack.c.0.s8 %v344
    %v346 = vlaneseq
    %v347 = vshrl.u32 %v346, 7
    %v348 = vsub.s32 %v345, %v347
    %v349 = vrot.slane %v335, %v348
    %v350 = vcombine.high %v342, %v342
    %v351 = vcombine.high %v349, %v349
    %v353 = vunpack.c.l.s4 1966171168
    %v354 = vunpack.c.0.s8 %v353
    %v355 = vlaneseq
    %v356 = vshrl.u32 %v355, 7
    %v357 = vsub.s32 %v354, %v356
    %v358 = vrot.slane %v342, %v357
    %v360 = vunpack.c.l.s4 1966171168
    %v361 = vunpack.c.0.s8 %v360
    %v362 = vlaneseq
    %v363 = vshrl.u32 %v362, 7
    %v364 = vsub.s32 %v361, %v363
    %v365 = vrot.slane %v349, %v364
    %v367 = vunpack.c.l.s4 1966171168
    %v368 = vunpack.c.0.s8 %v367
    %v369 = vlaneseq
    %v370 = vshrl.u32 %v369, 7
    %v371 = vsub.s32 %v368, %v370
    %v372 = vrot.slane %v350, %v371
    %v374 = vunpack.c.l.s4 1966171168
    %v375 = vunpack.c.0.s8 %v374
    %v376 = vlaneseq
    %v377 = vshrl.u32 %v376, 7
    %v378 = vsub.s32 %v375, %v377
    %v379 = vrot.slane %v351, %v378
    %v380 = vcombine.high %v358, %v358
    %v381 = vcombine.high %v365, %v365
    %v382 = vcombine.high %v372, %v372
    %v383 = vcombine.high %v379, %v379
    %v384 = vld [vmem:[#allocation7 + $0x10] sm:$0xff]
    %v385 = vld [vmem:[#allocation7 + $0x50] sm:$0xff]
    %v386 = vlaneseq
    %v387 = vshrl.u32 %v386, 7
    %v388 = vsub.s32 0, %v387
    %v389 = vrot.slane %v358, %v388
    %v390 = vlaneseq
    %v391 = vshrl.u32 %v390, 7
    %v392 = vsub.s32 0, %v391
    %v393 = vrot.slane %v372, %v392
    %v394 = vlaneseq
    %v395 = vshrl.u32 %v394, 7
    %v396 = vsub.s32 0, %v395
    %v397 = vrot.slane %v380, %v396
    %v398 = vlaneseq
    %v399 = vshrl.u32 %v398, 7
    %v400 = vsub.s32 0, %v399
    %v401 = vrot.slane %v382, %v400
    %v402 = vlaneseq
    %v403 = vshrl.u32 %v402, 7
    %v404 = vsub.s32 0, %v403
    %v405 = vrot.slane %v365, %v404
    %v406 = vlaneseq
    %v407 = vshrl.u32 %v406, 7
    %v408 = vsub.s32 0, %v407
    %v409 = vrot.slane %v379, %v408
    %v410 = vlaneseq
    %v411 = vshrl.u32 %v410, 7
    %v412 = vsub.s32 0, %v411
    %v413 = vrot.slane %v381, %v412
    %v414 = vlaneseq
    %v415 = vshrl.u32 %v414, 7
    %v416 = vsub.s32 0, %v415
    %v417 = vrot.slane %v383, %v416
    %v426 = vadd.f32 %v389, %v384
    %v427 = vadd.f32 %v389, %v385
    %v428 = vadd.f32 %v393, %v384
    %v429 = vadd.f32 %v393, %v385
    %v430 = vadd.f32 %v397, %v384
    %v431 = vadd.f32 %v397, %v385
    %v432 = vadd.f32 %v401, %v384
    %v433 = vadd.f32 %v401, %v385
    %v434 = vadd.f32 %v405, %v384
    %v435 = vadd.f32 %v405, %v385
    %v436 = vadd.f32 %v409, %v384
    %v437 = vadd.f32 %v409, %v385
    %v438 = vadd.f32 %v413, %v384
    %v439 = vadd.f32 %v413, %v385
    %v440 = vadd.f32 %v417, %v384
    %v441 = vadd.f32 %v417, %v385
    %v442 = vmax.f32 %v317, %v426
    %v443 = vmax.f32 %v318, %v427
    %v444 = vmax.f32 %v319, %v428
    %v445 = vmax.f32 %v320, %v429
    %v446 = vmax.f32 %v321, %v430
    %v447 = vmax.f32 %v322, %v431
    %v448 = vmax.f32 %v323, %v432
    %v449 = vmax.f32 %v324, %v433
    %v450 = vmax.f32 %v325, %v434
    %v451 = vmax.f32 %v326, %v435
    %v452 = vmax.f32 %v327, %v436
    %v453 = vmax.f32 %v328, %v437
    %v454 = vmax.f32 %v329, %v438
    %v455 = vmax.f32 %v330, %v439
    %v456 = vmax.f32 %v331, %v440
    %v457 = vmax.f32 %v332, %v441
    %v458 = vld [vmem:[%s98 + $0x18] sm:$0xff]
    %v460 = vcombine.high %v458, %v458
    %v462 = vunpack.c.l.s4 1966171168
    %v463 = vunpack.c.0.s8 %v462
    %v464 = vlaneseq
    %v465 = vshrl.u32 %v464, 7
    %v466 = vsub.s32 %v463, %v465
    %v467 = vrot.slane %v458, %v466
    %v469 = vunpack.c.l.s4 1966171168
    %v470 = vunpack.c.0.s8 %v469
    %v471 = vlaneseq
    %v472 = vshrl.u32 %v471, 7
    %v473 = vsub.s32 %v470, %v472
    %v474 = vrot.slane %v460, %v473
    %v475 = vcombine.high %v467, %v467
    %v476 = vcombine.high %v474, %v474
    %v478 = vunpack.c.l.s4 1966171168
    %v479 = vunpack.c.0.s8 %v478
    %v480 = vlaneseq
    %v481 = vshrl.u32 %v480, 7
    %v482 = vsub.s32 %v479, %v481
    %v483 = vrot.slane %v467, %v482
    %v485 = vunpack.c.l.s4 1966171168
    %v486 = vunpack.c.0.s8 %v485
    %v487 = vlaneseq
    %v488 = vshrl.u32 %v487, 7
    %v489 = vsub.s32 %v486, %v488
    %v490 = vrot.slane %v474, %v489
    %v492 = vunpack.c.l.s4 1966171168
    %v493 = vunpack.c.0.s8 %v492
    %v494 = vlaneseq
    %v495 = vshrl.u32 %v494, 7
    %v496 = vsub.s32 %v493, %v495
    %v497 = vrot.slane %v475, %v496
    %v499 = vunpack.c.l.s4 1966171168
    %v500 = vunpack.c.0.s8 %v499
    %v501 = vlaneseq
    %v502 = vshrl.u32 %v501, 7
    %v503 = vsub.s32 %v500, %v502
    %v504 = vrot.slane %v476, %v503
    %v505 = vcombine.high %v483, %v483
    %v506 = vcombine.high %v490, %v490
    %v507 = vcombine.high %v497, %v497
    %v508 = vcombine.high %v504, %v504
    %v509 = vld [vmem:[#allocation7 + $0x18] sm:$0xff]
    %v510 = vld [vmem:[#allocation7 + $0x58] sm:$0xff]
    %v511 = vlaneseq
    %v512 = vshrl.u32 %v511, 7
    %v513 = vsub.s32 0, %v512
    %v514 = vrot.slane %v483, %v513
    %v515 = vlaneseq
    %v516 = vshrl.u32 %v515, 7
    %v517 = vsub.s32 0, %v516
    %v518 = vrot.slane %v497, %v517
    %v519 = vlaneseq
    %v520 = vshrl.u32 %v519, 7
    %v521 = vsub.s32 0, %v520
    %v522 = vrot.slane %v505, %v521
    %v523 = vlaneseq
    %v524 = vshrl.u32 %v523, 7
    %v525 = vsub.s32 0, %v524
    %v526 = vrot.slane %v507, %v525
    %v527 = vlaneseq
    %v528 = vshrl.u32 %v527, 7
    %v529 = vsub.s32 0, %v528
    %v530 = vrot.slane %v490, %v529
    %v531 = vlaneseq
    %v532 = vshrl.u32 %v531, 7
    %v533 = vsub.s32 0, %v532
    %v534 = vrot.slane %v504, %v533
    %v535 = vlaneseq
    %v536 = vshrl.u32 %v535, 7
    %v537 = vsub.s32 0, %v536
    %v538 = vrot.slane %v506, %v537
    %v539 = vlaneseq
    %v540 = vshrl.u32 %v539, 7
    %v541 = vsub.s32 0, %v540
    %v542 = vrot.slane %v508, %v541
    %v551 = vadd.f32 %v514, %v509
    %v552 = vadd.f32 %v514, %v510
    %v553 = vadd.f32 %v518, %v509
    %v554 = vadd.f32 %v518, %v510
    %v555 = vadd.f32 %v522, %v509
    %v556 = vadd.f32 %v522, %v510
    %v557 = vadd.f32 %v526, %v509
    %v558 = vadd.f32 %v526, %v510
    %v559 = vadd.f32 %v530, %v509
    %v560 = vadd.f32 %v530, %v510
    %v561 = vadd.f32 %v534, %v509
    %v562 = vadd.f32 %v534, %v510
    %v563 = vadd.f32 %v538, %v509
    %v564 = vadd.f32 %v538, %v510
    %v565 = vadd.f32 %v542, %v509
    %v566 = vadd.f32 %v542, %v510
    %v567 = vmax.f32 %v442, %v551
    %v568 = vmax.f32 %v443, %v552
    %v569 = vmax.f32 %v444, %v553
    %v570 = vmax.f32 %v445, %v554
    %v571 = vmax.f32 %v446, %v555
    %v572 = vmax.f32 %v447, %v556
    %v573 = vmax.f32 %v448, %v557
    %v574 = vmax.f32 %v449, %v558
    %v575 = vmax.f32 %v450, %v559
    %v576 = vmax.f32 %v451, %v560
    %v577 = vmax.f32 %v452, %v561
    %v578 = vmax.f32 %v453, %v562
    %v579 = vmax.f32 %v454, %v563
    %v580 = vmax.f32 %v455, %v564
    %v581 = vmax.f32 %v456, %v565
    %v582 = vmax.f32 %v457, %v566
    %v583 = vld [vmem:[%s98 + $0x20] sm:$0xff]
    %v585 = vcombine.high %v583, %v583
    %v587 = vunpack.c.l.s4 1966171168
    %v588 = vunpack.c.0.s8 %v587
    %v589 = vlaneseq
    %v590 = vshrl.u32 %v589, 7
    %v591 = vsub.s32 %v588, %v590
    %v592 = vrot.slane %v583, %v591
    %v594 = vunpack.c.l.s4 1966171168
    %v595 = vunpack.c.0.s8 %v594
    %v596 = vlaneseq
    %v597 = vshrl.u32 %v596, 7
    %v598 = vsub.s32 %v595, %v597
    %v599 = vrot.slane %v585, %v598
    %v600 = vcombine.high %v592, %v592
    %v601 = vcombine.high %v599, %v599
    %v603 = vunpack.c.l.s4 1966171168
    %v604 = vunpack.c.0.s8 %v603
    %v605 = vlaneseq
    %v606 = vshrl.u32 %v605, 7
    %v607 = vsub.s32 %v604, %v606
    %v608 = vrot.slane %v592, %v607
    %v610 = vunpack.c.l.s4 1966171168
    %v611 = vunpack.c.0.s8 %v610
    %v612 = vlaneseq
    %v613 = vshrl.u32 %v612, 7
    %v614 = vsub.s32 %v611, %v613
    %v615 = vrot.slane %v599, %v614
    %v617 = vunpack.c.l.s4 1966171168
    %v618 = vunpack.c.0.s8 %v617
    %v619 = vlaneseq
    %v620 = vshrl.u32 %v619, 7
    %v621 = vsub.s32 %v618, %v620
    %v622 = vrot.slane %v600, %v621
    %v624 = vunpack.c.l.s4 1966171168
    %v625 = vunpack.c.0.s8 %v624
    %v626 = vlaneseq
    %v627 = vshrl.u32 %v626, 7
    %v628 = vsub.s32 %v625, %v627
    %v629 = vrot.slane %v601, %v628
    %v630 = vcombine.high %v608, %v608
    %v631 = vcombine.high %v615, %v615
    %v632 = vcombine.high %v622, %v622
    %v633 = vcombine.high %v629, %v629
    %v634 = vld [vmem:[#allocation7 + $0x20] sm:$0xff]
    %v635 = vld [vmem:[#allocation7 + $0x60] sm:$0xff]
    %v636 = vlaneseq
    %v637 = vshrl.u32 %v636, 7
    %v638 = vsub.s32 0, %v637
    %v639 = vrot.slane %v608, %v638
    %v640 = vlaneseq
    %v641 = vshrl.u32 %v640, 7
    %v642 = vsub.s32 0, %v641
    %v643 = vrot.slane %v622, %v642
    %v644 = vlaneseq
    %v645 = vshrl.u32 %v644, 7
    %v646 = vsub.s32 0, %v645
    %v647 = vrot.slane %v630, %v646
    %v648 = vlaneseq
    %v649 = vshrl.u32 %v648, 7
    %v650 = vsub.s32 0, %v649
    %v651 = vrot.slane %v632, %v650
    %v652 = vlaneseq
    %v653 = vshrl.u32 %v652, 7
    %v654 = vsub.s32 0, %v653
    %v655 = vrot.slane %v615, %v654
    %v656 = vlaneseq
    %v657 = vshrl.u32 %v656, 7
    %v658 = vsub.s32 0, %v657
    %v659 = vrot.slane %v629, %v658
    %v660 = vlaneseq
    %v661 = vshrl.u32 %v660, 7
    %v662 = vsub.s32 0, %v661
    %v663 = vrot.slane %v631, %v662
    %v664 = vlaneseq
    %v665 = vshrl.u32 %v664, 7
    %v666 = vsub.s32 0, %v665
    %v667 = vrot.slane %v633, %v666
    %v676 = vadd.f32 %v639, %v634
    %v677 = vadd.f32 %v639, %v635
    %v678 = vadd.f32 %v643, %v634
    %v679 = vadd.f32 %v643, %v635
    %v680 = vadd.f32 %v647, %v634
    %v681 = vadd.f32 %v647, %v635
    %v682 = vadd.f32 %v651, %v634
    %v683 = vadd.f32 %v651, %v635
    %v684 = vadd.f32 %v655, %v634
    %v685 = vadd.f32 %v655, %v635
    %v686 = vadd.f32 %v659, %v634
    %v687 = vadd.f32 %v659, %v635
    %v688 = vadd.f32 %v663, %v634
    %v689 = vadd.f32 %v663, %v635
    %v690 = vadd.f32 %v667, %v634
    %v691 = vadd.f32 %v667, %v635
    %v692 = vmax.f32 %v567, %v676
    %v693 = vmax.f32 %v568, %v677
    %v694 = vmax.f32 %v569, %v678
    %v695 = vmax.f32 %v570, %v679
    %v696 = vmax.f32 %v571, %v680
    %v697 = vmax.f32 %v572, %v681
    %v698 = vmax.f32 %v573, %v682
    %v699 = vmax.f32 %v574, %v683
    %v700 = vmax.f32 %v575, %v684
    %v701 = vmax.f32 %v576, %v685
    %v702 = vmax.f32 %v577, %v686
    %v703 = vmax.f32 %v578, %v687
    %v704 = vmax.f32 %v579, %v688
    %v705 = vmax.f32 %v580, %v689
    %v706 = vmax.f32 %v581, %v690
    %v707 = vmax.f32 %v582, %v691
    %v708 = vld [vmem:[%s98 + $0x28] sm:$0xff]
    %v710 = vcombine.high %v708, %v708
    %v712 = vunpack.c.l.s4 1966171168
    %v713 = vunpack.c.0.s8 %v712
    %v714 = vlaneseq
    %v715 = vshrl.u32 %v714, 7
    %v716 = vsub.s32 %v713, %v715
    %v717 = vrot.slane %v708, %v716
    %v719 = vunpack.c.l.s4 1966171168
    %v720 = vunpack.c.0.s8 %v719
    %v721 = vlaneseq
    %v722 = vshrl.u32 %v721, 7
    %v723 = vsub.s32 %v720, %v722
    %v724 = vrot.slane %v710, %v723
    %v725 = vcombine.high %v717, %v717
    %v726 = vcombine.high %v724, %v724
    %v728 = vunpack.c.l.s4 1966171168
    %v729 = vunpack.c.0.s8 %v728
    %v730 = vlaneseq
    %v731 = vshrl.u32 %v730, 7
    %v732 = vsub.s32 %v729, %v731
    %v733 = vrot.slane %v717, %v732
    %v735 = vunpack.c.l.s4 1966171168
    %v736 = vunpack.c.0.s8 %v735
    %v737 = vlaneseq
    %v738 = vshrl.u32 %v737, 7
    %v739 = vsub.s32 %v736, %v738
    %v740 = vrot.slane %v724, %v739
    %v742 = vunpack.c.l.s4 1966171168
    %v743 = vunpack.c.0.s8 %v742
    %v744 = vlaneseq
    %v745 = vshrl.u32 %v744, 7
    %v746 = vsub.s32 %v743, %v745
    %v747 = vrot.slane %v725, %v746
    %v749 = vunpack.c.l.s4 1966171168
    %v750 = vunpack.c.0.s8 %v749
    %v751 = vlaneseq
    %v752 = vshrl.u32 %v751, 7
    %v753 = vsub.s32 %v750, %v752
    %v754 = vrot.slane %v726, %v753
    %v755 = vcombine.high %v733, %v733
    %v756 = vcombine.high %v740, %v740
    %v757 = vcombine.high %v747, %v747
    %v758 = vcombine.high %v754, %v754
    %v759 = vld [vmem:[#allocation7 + $0x28] sm:$0xff]
    %v760 = vld [vmem:[#allocation7 + $0x68] sm:$0xff]
    %v761 = vlaneseq
    %v762 = vshrl.u32 %v761, 7
    %v763 = vsub.s32 0, %v762
    %v764 = vrot.slane %v733, %v763
    %v765 = vlaneseq
    %v766 = vshrl.u32 %v765, 7
    %v767 = vsub.s32 0, %v766
    %v768 = vrot.slane %v747, %v767
    %v769 = vlaneseq
    %v770 = vshrl.u32 %v769, 7
    %v771 = vsub.s32 0, %v770
    %v772 = vrot.slane %v755, %v771
    %v773 = vlaneseq
    %v774 = vshrl.u32 %v773, 7
    %v775 = vsub.s32 0, %v774
    %v776 = vrot.slane %v757, %v775
    %v777 = vlaneseq
    %v778 = vshrl.u32 %v777, 7
    %v779 = vsub.s32 0, %v778
    %v780 = vrot.slane %v740, %v779
    %v781 = vlaneseq
    %v782 = vshrl.u32 %v781, 7
    %v783 = vsub.s32 0, %v782
    %v784 = vrot.slane %v754, %v783
    %v785 = vlaneseq
    %v786 = vshrl.u32 %v785, 7
    %v787 = vsub.s32 0, %v786
    %v788 = vrot.slane %v756, %v787
    %v789 = vlaneseq
    %v790 = vshrl.u32 %v789, 7
    %v791 = vsub.s32 0, %v790
    %v792 = vrot.slane %v758, %v791
    %v801 = vadd.f32 %v764, %v759
    %v802 = vadd.f32 %v764, %v760
    %v803 = vadd.f32 %v768, %v759
    %v804 = vadd.f32 %v768, %v760
    %v805 = vadd.f32 %v772, %v759
    %v806 = vadd.f32 %v772, %v760
    %v807 = vadd.f32 %v776, %v759
    %v808 = vadd.f32 %v776, %v760
    %v809 = vadd.f32 %v780, %v759
    %v810 = vadd.f32 %v780, %v760
    %v811 = vadd.f32 %v784, %v759
    %v812 = vadd.f32 %v784, %v760
    %v813 = vadd.f32 %v788, %v759
    %v814 = vadd.f32 %v788, %v760
    %v815 = vadd.f32 %v792, %v759
    %v816 = vadd.f32 %v792, %v760
    %v817 = vmax.f32 %v692, %v801
    %v818 = vmax.f32 %v693, %v802
    %v819 = vmax.f32 %v694, %v803
    %v820 = vmax.f32 %v695, %v804
    %v821 = vmax.f32 %v696, %v805
    %v822 = vmax.f32 %v697, %v806
    %v823 = vmax.f32 %v698, %v807
    %v824 = vmax.f32 %v699, %v808
    %v825 = vmax.f32 %v700, %v809
    %v826 = vmax.f32 %v701, %v810
    %v827 = vmax.f32 %v702, %v811
    %v828 = vmax.f32 %v703, %v812
    %v829 = vmax.f32 %v704, %v813
    %v830 = vmax.f32 %v705, %v814
    %v831 = vmax.f32 %v706, %v815
    %v832 = vmax.f32 %v707, %v816
    %v833 = vld [vmem:[%s98 + $0x30] sm:$0xff]
    %v835 = vcombine.high %v833, %v833
    %v837 = vunpack.c.l.s4 1966171168
    %v838 = vunpack.c.0.s8 %v837
    %v839 = vlaneseq
    %v840 = vshrl.u32 %v839, 7
    %v841 = vsub.s32 %v838, %v840
    %v842 = vrot.slane %v833, %v841
    %v844 = vunpack.c.l.s4 1966171168
    %v845 = vunpack.c.0.s8 %v844
    %v846 = vlaneseq
    %v847 = vshrl.u32 %v846, 7
    %v848 = vsub.s32 %v845, %v847
    %v849 = vrot.slane %v835, %v848
    %v850 = vcombine.high %v842, %v842
    %v851 = vcombine.high %v849, %v849
    %v853 = vunpack.c.l.s4 1966171168
    %v854 = vunpack.c.0.s8 %v853
    %v855 = vlaneseq
    %v856 = vshrl.u32 %v855, 7
    %v857 = vsub.s32 %v854, %v856
    %v858 = vrot.slane %v842, %v857
    %v860 = vunpack.c.l.s4 1966171168
    %v861 = vunpack.c.0.s8 %v860
    %v862 = vlaneseq
    %v863 = vshrl.u32 %v862, 7
    %v864 = vsub.s32 %v861, %v863
    %v865 = vrot.slane %v849, %v864
    %v867 = vunpack.c.l.s4 1966171168
    %v868 = vunpack.c.0.s8 %v867
    %v869 = vlaneseq
    %v870 = vshrl.u32 %v869, 7
    %v871 = vsub.s32 %v868, %v870
    %v872 = vrot.slane %v850, %v871
    %v874 = vunpack.c.l.s4 1966171168
    %v875 = vunpack.c.0.s8 %v874
    %v876 = vlaneseq
    %v877 = vshrl.u32 %v876, 7
    %v878 = vsub.s32 %v875, %v877
    %v879 = vrot.slane %v851, %v878
    %v880 = vcombine.high %v858, %v858
    %v881 = vcombine.high %v865, %v865
    %v882 = vcombine.high %v872, %v872
    %v883 = vcombine.high %v879, %v879
    %v884 = vld [vmem:[#allocation7 + $0x30] sm:$0xff]
    %v885 = vld [vmem:[#allocation7 + $0x70] sm:$0xff]
    %v886 = vlaneseq
    %v887 = vshrl.u32 %v886, 7
    %v888 = vsub.s32 0, %v887
    %v889 = vrot.slane %v858, %v888
    %v890 = vlaneseq
    %v891 = vshrl.u32 %v890, 7
    %v892 = vsub.s32 0, %v891
    %v893 = vrot.slane %v872, %v892
    %v894 = vlaneseq
    %v895 = vshrl.u32 %v894, 7
    %v896 = vsub.s32 0, %v895
    %v897 = vrot.slane %v880, %v896
    %v898 = vlaneseq
    %v899 = vshrl.u32 %v898, 7
    %v900 = vsub.s32 0, %v899
    %v901 = vrot.slane %v882, %v900
    %v902 = vlaneseq
    %v903 = vshrl.u32 %v902, 7
    %v904 = vsub.s32 0, %v903
    %v905 = vrot.slane %v865, %v904
    %v906 = vlaneseq
    %v907 = vshrl.u32 %v906, 7
    %v908 = vsub.s32 0, %v907
    %v909 = vrot.slane %v879, %v908
    %v910 = vlaneseq
    %v911 = vshrl.u32 %v910, 7
    %v912 = vsub.s32 0, %v911
    %v913 = vrot.slane %v881, %v912
    %v914 = vlaneseq
    %v915 = vshrl.u32 %v914, 7
    %v916 = vsub.s32 0, %v915
    %v917 = vrot.slane %v883, %v916
    %v926 = vadd.f32 %v889, %v884
    %v927 = vadd.f32 %v889, %v885
    %v928 = vadd.f32 %v893, %v884
    %v929 = vadd.f32 %v893, %v885
    %v930 = vadd.f32 %v897, %v884
    %v931 = vadd.f32 %v897, %v885
    %v932 = vadd.f32 %v901, %v884
    %v933 = vadd.f32 %v901, %v885
    %v934 = vadd.f32 %v905, %v884
    %v935 = vadd.f32 %v905, %v885
    %v936 = vadd.f32 %v909, %v884
    %v937 = vadd.f32 %v909, %v885
    %v938 = vadd.f32 %v913, %v884
    %v939 = vadd.f32 %v913, %v885
    %v940 = vadd.f32 %v917, %v884
    %v941 = vadd.f32 %v917, %v885
    %v942 = vmax.f32 %v817, %v926
    %v943 = vmax.f32 %v818, %v927
    %v944 = vmax.f32 %v819, %v928
    %v945 = vmax.f32 %v820, %v929
    %v946 = vmax.f32 %v821, %v930
    %v947 = vmax.f32 %v822, %v931
    %v948 = vmax.f32 %v823, %v932
    %v949 = vmax.f32 %v824, %v933
    %v950 = vmax.f32 %v825, %v934
    %v951 = vmax.f32 %v826, %v935
    %v952 = vmax.f32 %v827, %v936
    %v953 = vmax.f32 %v828, %v937
    %v954 = vmax.f32 %v829, %v938
    %v955 = vmax.f32 %v830, %v939
    %v956 = vmax.f32 %v831, %v940
    %v957 = vmax.f32 %v832, %v941
    %v958 = vld [vmem:[%s98 + $0x38] sm:$0xff]
    %v960 = vcombine.high %v958, %v958
    %v962 = vunpack.c.l.s4 1966171168
    %v963 = vunpack.c.0.s8 %v962
    %v964 = vlaneseq
    %v965 = vshrl.u32 %v964, 7
    %v966 = vsub.s32 %v963, %v965
    %v967 = vrot.slane %v958, %v966
    %v969 = vunpack.c.l.s4 1966171168
    %v970 = vunpack.c.0.s8 %v969
    %v971 = vlaneseq
    %v972 = vshrl.u32 %v971, 7
    %v973 = vsub.s32 %v970, %v972
    %v974 = vrot.slane %v960, %v973
    %v975 = vcombine.high %v967, %v967
    %v976 = vcombine.high %v974, %v974
    %v978 = vunpack.c.l.s4 1966171168
    %v979 = vunpack.c.0.s8 %v978
    %v980 = vlaneseq
    %v981 = vshrl.u32 %v980, 7
    %v982 = vsub.s32 %v979, %v981
    %v983 = vrot.slane %v967, %v982
    %v985 = vunpack.c.l.s4 1966171168
    %v986 = vunpack.c.0.s8 %v985
    %v987 = vlaneseq
    %v988 = vshrl.u32 %v987, 7
    %v989 = vsub.s32 %v986, %v988
    %v990 = vrot.slane %v974, %v989
    %v992 = vunpack.c.l.s4 1966171168
    %v993 = vunpack.c.0.s8 %v992
    %v994 = vlaneseq
    %v995 = vshrl.u32 %v994, 7
    %v996 = vsub.s32 %v993, %v995
    %v997 = vrot.slane %v975, %v996
    %v999 = vunpack.c.l.s4 1966171168
    %v1000 = vunpack.c.0.s8 %v999
    %v1001 = vlaneseq
    %v1002 = vshrl.u32 %v1001, 7
    %v1003 = vsub.s32 %v1000, %v1002
    %v1004 = vrot.slane %v976, %v1003
    %v1005 = vcombine.high %v983, %v983
    %v1006 = vcombine.high %v990, %v990
    %v1007 = vcombine.high %v997, %v997
    %v1008 = vcombine.high %v1004, %v1004
    %v1009 = vld [vmem:[#allocation7 + $0x38] sm:$0xff]
    %v1010 = vld [vmem:[#allocation7 + $0x78] sm:$0xff]
    %v1011 = vlaneseq
    %v1012 = vshrl.u32 %v1011, 7
    %v1013 = vsub.s32 0, %v1012
    %v1014 = vrot.slane %v983, %v1013
    %v1015 = vlaneseq
    %v1016 = vshrl.u32 %v1015, 7
    %v1017 = vsub.s32 0, %v1016
    %v1018 = vrot.slane %v997, %v1017
    %v1019 = vlaneseq
    %v1020 = vshrl.u32 %v1019, 7
    %v1021 = vsub.s32 0, %v1020
    %v1022 = vrot.slane %v1005, %v1021
    %v1023 = vlaneseq
    %v1024 = vshrl.u32 %v1023, 7
    %v1025 = vsub.s32 0, %v1024
    %v1026 = vrot.slane %v1007, %v1025
    %v1027 = vlaneseq
    %v1028 = vshrl.u32 %v1027, 7
    %v1029 = vsub.s32 0, %v1028
    %v1030 = vrot.slane %v990, %v1029
    %v1031 = vlaneseq
    %v1032 = vshrl.u32 %v1031, 7
    %v1033 = vsub.s32 0, %v1032
    %v1034 = vrot.slane %v1004, %v1033
    %v1035 = vlaneseq
    %v1036 = vshrl.u32 %v1035, 7
    %v1037 = vsub.s32 0, %v1036
    %v1038 = vrot.slane %v1006, %v1037
    %v1039 = vlaneseq
    %v1040 = vshrl.u32 %v1039, 7
    %v1041 = vsub.s32 0, %v1040
    %v1042 = vrot.slane %v1008, %v1041
    %v1051 = vadd.f32 %v1014, %v1009
    %v1052 = vadd.f32 %v1014, %v1010
    %v1053 = vadd.f32 %v1018, %v1009
    %v1054 = vadd.f32 %v1018, %v1010
    %v1055 = vadd.f32 %v1022, %v1009
    %v1056 = vadd.f32 %v1022, %v1010
    %v1057 = vadd.f32 %v1026, %v1009
    %v1058 = vadd.f32 %v1026, %v1010
    %v1059 = vadd.f32 %v1030, %v1009
    %v1060 = vadd.f32 %v1030, %v1010
    %v1061 = vadd.f32 %v1034, %v1009
    %v1062 = vadd.f32 %v1034, %v1010
    %v1063 = vadd.f32 %v1038, %v1009
    %v1064 = vadd.f32 %v1038, %v1010
    %v1065 = vadd.f32 %v1042, %v1009
    %v1066 = vadd.f32 %v1042, %v1010
    %v1067 = vmax.f32 %v942, %v1051
    %v1068 = vmax.f32 %v943, %v1052
    %v1069 = vmax.f32 %v944, %v1053
    %v1070 = vmax.f32 %v945, %v1054
    %v1071 = vmax.f32 %v946, %v1055
    %v1072 = vmax.f32 %v947, %v1056
    %v1073 = vmax.f32 %v948, %v1057
    %v1074 = vmax.f32 %v949, %v1058
    %v1075 = vmax.f32 %v950, %v1059
    %v1076 = vmax.f32 %v951, %v1060
    %v1077 = vmax.f32 %v952, %v1061
    %v1078 = vmax.f32 %v953, %v1062
    %v1079 = vmax.f32 %v954, %v1063
    %v1080 = vmax.f32 %v955, %v1064
    %v1081 = vmax.f32 %v956, %v1065
    %v1082 = vmax.f32 %v957, %v1066
    %1083 = vmax.xlane.f32.xlu0 %v1067
    %v1084 = vpop.xlane.xlu0 %1083
    %1085 = vmax.xlane.f32.xlu0 %v1068
    %v1086 = vpop.xlane.xlu0 %1085
    %1087 = vmax.xlane.f32.xlu0 %v1069
    %v1088 = vpop.xlane.xlu0 %1087
    %1089 = vmax.xlane.f32.xlu0 %v1070
    %v1090 = vpop.xlane.xlu0 %1089
    %1091 = vmax.xlane.f32.xlu0 %v1071
    %v1092 = vpop.xlane.xlu0 %1091
    %1093 = vmax.xlane.f32.xlu0 %v1072
    %v1094 = vpop.xlane.xlu0 %1093
    %1095 = vmax.xlane.f32.xlu0 %v1073
    %v1096 = vpop.xlane.xlu0 %1095
    %1097 = vmax.xlane.f32.xlu0 %v1074
    %v1098 = vpop.xlane.xlu0 %1097
    %1099 = vmax.xlane.f32.xlu0 %v1075
    %v1100 = vpop.xlane.xlu0 %1099
    %1101 = vmax.xlane.f32.xlu0 %v1076
    %v1102 = vpop.xlane.xlu0 %1101
    %1103 = vmax.xlane.f32.xlu0 %v1077
    %v1104 = vpop.xlane.xlu0 %1103
    %1105 = vmax.xlane.f32.xlu0 %v1078
    %v1106 = vpop.xlane.xlu0 %1105
    %1107 = vmax.xlane.f32.xlu0 %v1079
    %v1108 = vpop.xlane.xlu0 %1107
    %1109 = vmax.xlane.f32.xlu0 %v1080
    %v1110 = vpop.xlane.xlu0 %1109
    %1111 = vmax.xlane.f32.xlu0 %v1081
    %v1112 = vpop.xlane.xlu0 %1111
    %1113 = vmax.xlane.f32.xlu0 %v1082
    %v1114 = vpop.xlane.xlu0 %1113
    %v1115 = vld [vmem:[%s3] sm:$0x1]
    %v1117 = vlaneseq
    %v1118 = vshrl.u32 %v1117, 7
    %v1119 = vsub.s32 0, %v1118
    %v1120 = vrot.slane %v1115, %v1119
    %1122 = vbcast.lane.b32.xlu0 %v1120, 256
    %v1123 = vpop.permute.xlu0 %1122
    %s1125 = sor.u32 256, 8
    %1126 = vbcast.lane.b32.xlu0 %v1120, %s1125
    %v1127 = vpop.permute.xlu0 %1126
    %v1130 = vmax.f32 %v1084, %v1123
    %v1131 = vmax.f32 %v1086, %v1127
    %v1132 = vmax.f32 %v1088, %v1123
    %v1133 = vmax.f32 %v1090, %v1127
    %v1134 = vmax.f32 %v1092, %v1123
    %v1135 = vmax.f32 %v1094, %v1127
    %v1136 = vmax.f32 %v1096, %v1123
    %v1137 = vmax.f32 %v1098, %v1127
    %v1138 = vmax.f32 %v1100, %v1123
    %v1139 = vmax.f32 %v1102, %v1127
    %v1140 = vmax.f32 %v1104, %v1123
    %v1141 = vmax.f32 %v1106, %v1127
    %v1142 = vmax.f32 %v1108, %v1123
    %v1143 = vmax.f32 %v1110, %v1127
    %v1144 = vmax.f32 %v1112, %v1123
    %v1145 = vmax.f32 %v1114, %v1127
    %1162 = vset.pattern.permute.xlu0 0
    %1163 = vperm.xlu0 %1162, %v1130
    %v1164 = vpop.permute.xlu0 %1163
    %1165 = vset.pattern.permute.xlu0 0
    %1166 = vperm.xlu0 %1165, %v1131
    %v1167 = vpop.permute.xlu0 %1166
    %1168 = vset.pattern.permute.xlu0 0
    %1169 = vperm.xlu0 %1168, %v1132
    %v1170 = vpop.permute.xlu0 %1169
    %1171 = vset.pattern.permute.xlu0 0
    %1172 = vperm.xlu0 %1171, %v1133
    %v1173 = vpop.permute.xlu0 %1172
    %1174 = vset.pattern.permute.xlu0 0
    %1175 = vperm.xlu0 %1174, %v1134
    %v1176 = vpop.permute.xlu0 %1175
    %1177 = vset.pattern.permute.xlu0 0
    %1178 = vperm.xlu0 %1177, %v1135
    %v1179 = vpop.permute.xlu0 %1178
    %1180 = vset.pattern.permute.xlu0 0
    %1181 = vperm.xlu0 %1180, %v1136
    %v1182 = vpop.permute.xlu0 %1181
    %1183 = vset.pattern.permute.xlu0 0
    %1184 = vperm.xlu0 %1183, %v1137
    %v1185 = vpop.permute.xlu0 %1184
    %1186 = vset.pattern.permute.xlu0 0
    %1187 = vperm.xlu0 %1186, %v1138
    %v1188 = vpop.permute.xlu0 %1187
    %1189 = vset.pattern.permute.xlu0 0
    %1190 = vperm.xlu0 %1189, %v1139
    %v1191 = vpop.permute.xlu0 %1190
    %1192 = vset.pattern.permute.xlu0 0
    %1193 = vperm.xlu0 %1192, %v1140
    %v1194 = vpop.permute.xlu0 %1193
    %1195 = vset.pattern.permute.xlu0 0
    %1196 = vperm.xlu0 %1195, %v1141
    %v1197 = vpop.permute.xlu0 %1196
    %1198 = vset.pattern.permute.xlu0 0
    %1199 = vperm.xlu0 %1198, %v1142
    %v1200 = vpop.permute.xlu0 %1199
    %1201 = vset.pattern.permute.xlu0 0
    %1202 = vperm.xlu0 %1201, %v1143
    %v1203 = vpop.permute.xlu0 %1202
    %1204 = vset.pattern.permute.xlu0 0
    %1205 = vperm.xlu0 %1204, %v1144
    %v1206 = vpop.permute.xlu0 %1205
    %1207 = vset.pattern.permute.xlu0 0
    %1208 = vperm.xlu0 %1207, %v1145
    %v1209 = vpop.permute.xlu0 %1208
    %v1210 = vlaneseq
    %v1211 = vand.u32 %v1210, 127
    %v1212 = vlaneseq
    %v1213 = vshrl.u32 %v1212, 7
    %v1214 = vsub.s32 %v1211, %v1213
    %v1215 = vrot.slane %v1164, %v1214
    %v1216 = vadd.s32 %v1211, 4294967288
    %v1217 = vlaneseq
    %v1218 = vshrl.u32 %v1217, 7
    %v1219 = vsub.s32 %v1216, %v1218
    %v1220 = vrot.slane %v1167, %v1219
    %vm1221 = vcmask 130112
    %v1222 = vsel %vm1221, %v1220, %v1215
    %v1223 = vlaneseq
    %v1224 = vshrl.u32 %v1223, 7
    %v1225 = vsub.s32 %v1211, %v1224
    %v1226 = vrot.slane %v1170, %v1225
    %v1227 = vlaneseq
    %v1228 = vshrl.u32 %v1227, 7
    %v1229 = vsub.s32 %v1216, %v1228
    %v1230 = vrot.slane %v1173, %v1229
    %v1231 = vsel %vm1221, %v1230, %v1226
    %v1232 = vlaneseq
    %v1233 = vshrl.u32 %v1232, 7
    %v1234 = vsub.s32 %v1211, %v1233
    %v1235 = vrot.slane %v1176, %v1234
    %v1236 = vlaneseq
    %v1237 = vshrl.u32 %v1236, 7
    %v1238 = vsub.s32 %v1216, %v1237
    %v1239 = vrot.slane %v1179, %v1238
    %v1240 = vsel %vm1221, %v1239, %v1235
    %v1241 = vlaneseq
    %v1242 = vshrl.u32 %v1241, 7
    %v1243 = vsub.s32 %v1211, %v1242
    %v1244 = vrot.slane %v1182, %v1243
    %v1245 = vlaneseq
    %v1246 = vshrl.u32 %v1245, 7
    %v1247 = vsub.s32 %v1216, %v1246
    %v1248 = vrot.slane %v1185, %v1247
    %v1249 = vsel %vm1221, %v1248, %v1244
    %v1250 = vlaneseq
    %v1251 = vshrl.u32 %v1250, 7
    %v1252 = vsub.s32 %v1211, %v1251
    %v1253 = vrot.slane %v1188, %v1252
    %v1254 = vlaneseq
    %v1255 = vshrl.u32 %v1254, 7
    %v1256 = vsub.s32 %v1216, %v1255
    %v1257 = vrot.slane %v1191, %v1256
    %v1258 = vsel %vm1221, %v1257, %v1253
    %v1259 = vlaneseq
    %v1260 = vshrl.u32 %v1259, 7
    %v1261 = vsub.s32 %v1211, %v1260
    %v1262 = vrot.slane %v1194, %v1261
    %v1263 = vlaneseq
    %v1264 = vshrl.u32 %v1263, 7
    %v1265 = vsub.s32 %v1216, %v1264
    %v1266 = vrot.slane %v1197, %v1265
    %v1267 = vsel %vm1221, %v1266, %v1262
    %v1268 = vlaneseq
    %v1269 = vshrl.u32 %v1268, 7
    %v1270 = vsub.s32 %v1211, %v1269
    %v1271 = vrot.slane %v1200, %v1270
    %v1272 = vlaneseq
    %v1273 = vshrl.u32 %v1272, 7
    %v1274 = vsub.s32 %v1216, %v1273
    %v1275 = vrot.slane %v1203, %v1274
    %v1276 = vsel %vm1221, %v1275, %v1271
    %v1277 = vlaneseq
    %v1278 = vshrl.u32 %v1277, 7
    %v1279 = vsub.s32 %v1211, %v1278
    %v1280 = vrot.slane %v1206, %v1279
    %v1281 = vlaneseq
    %v1282 = vshrl.u32 %v1281, 7
    %v1283 = vsub.s32 %v1216, %v1282
    %v1284 = vrot.slane %v1209, %v1283
    %v1285 = vsel %vm1221, %v1284, %v1280
    %vm1286 = vcmask 1041409
    %v1287 = vsel %vm1286, %v1231, %v1222
    %vm1288 = vcmask 1042434
    %v1289 = vsel %vm1288, %v1240, %v1287
    %vm1290 = vcmask 1043459
    %v1291 = vsel %vm1290, %v1249, %v1289
    %vm1292 = vcmask 1044484
    %v1293 = vsel %vm1292, %v1258, %v1291
    %vm1294 = vcmask 1045509
    %v1295 = vsel %vm1294, %v1267, %v1293
    %vm1296 = vcmask 1046534
    %v1297 = vsel %vm1296, %v1276, %v1295
    %vm1298 = vcmask 1047559
    %v1299 = vsel %vm1298, %v1285, %v1297
    %vm1301 = vcmask 130048
    %1302 = vst.msk [vmem:[#allocation2] sm:$0xff] %vm1301, %v1299
    %v1303 = vld [vmem:[%s98] sm:$0xff]
    %v1305 = vcombine.high %v1303, %v1303
    %v1307 = vunpack.c.l.s4 1966171168
    %v1308 = vunpack.c.0.s8 %v1307
    %v1309 = vlaneseq
    %v1310 = vshrl.u32 %v1309, 7
    %v1311 = vsub.s32 %v1308, %v1310
    %v1312 = vrot.slane %v1303, %v1311
    %v1314 = vunpack.c.l.s4 1966171168
    %v1315 = vunpack.c.0.s8 %v1314
    %v1316 = vlaneseq
    %v1317 = vshrl.u32 %v1316, 7
    %v1318 = vsub.s32 %v1315, %v1317
    %v1319 = vrot.slane %v1305, %v1318
    %v1320 = vcombine.high %v1312, %v1312
    %v1321 = vcombine.high %v1319, %v1319
    %v1323 = vunpack.c.l.s4 1966171168
    %v1324 = vunpack.c.0.s8 %v1323
    %v1325 = vlaneseq
    %v1326 = vshrl.u32 %v1325, 7
    %v1327 = vsub.s32 %v1324, %v1326
    %v1328 = vrot.slane %v1312, %v1327
    %v1330 = vunpack.c.l.s4 1966171168
    %v1331 = vunpack.c.0.s8 %v1330
    %v1332 = vlaneseq
    %v1333 = vshrl.u32 %v1332, 7
    %v1334 = vsub.s32 %v1331, %v1333
    %v1335 = vrot.slane %v1319, %v1334
    %v1337 = vunpack.c.l.s4 1966171168
    %v1338 = vunpack.c.0.s8 %v1337
    %v1339 = vlaneseq
    %v1340 = vshrl.u32 %v1339, 7
    %v1341 = vsub.s32 %v1338, %v1340
    %v1342 = vrot.slane %v1320, %v1341
    %v1344 = vunpack.c.l.s4 1966171168
    %v1345 = vunpack.c.0.s8 %v1344
    %v1346 = vlaneseq
    %v1347 = vshrl.u32 %v1346, 7
    %v1348 = vsub.s32 %v1345, %v1347
    %v1349 = vrot.slane %v1321, %v1348
    %v1350 = vcombine.high %v1328, %v1328
    %v1351 = vcombine.high %v1335, %v1335
    %v1352 = vcombine.high %v1342, %v1342
    %v1353 = vcombine.high %v1349, %v1349
    %v1354 = vld [vmem:[#allocation7 + $0x80] sm:$0xff]
    %v1355 = vld [vmem:[#allocation7 + $0xc0] sm:$0xff]
    %v1356 = vlaneseq
    %v1357 = vshrl.u32 %v1356, 7
    %v1358 = vsub.s32 0, %v1357
    %v1359 = vrot.slane %v1328, %v1358
    %v1360 = vlaneseq
    %v1361 = vshrl.u32 %v1360, 7
    %v1362 = vsub.s32 0, %v1361
    %v1363 = vrot.slane %v1342, %v1362
    %v1364 = vlaneseq
    %v1365 = vshrl.u32 %v1364, 7
    %v1366 = vsub.s32 0, %v1365
    %v1367 = vrot.slane %v1350, %v1366
    %v1368 = vlaneseq
    %v1369 = vshrl.u32 %v1368, 7
    %v1370 = vsub.s32 0, %v1369
    %v1371 = vrot.slane %v1352, %v1370
    %v1372 = vlaneseq
    %v1373 = vshrl.u32 %v1372, 7
    %v1374 = vsub.s32 0, %v1373
    %v1375 = vrot.slane %v1335, %v1374
    %v1376 = vlaneseq
    %v1377 = vshrl.u32 %v1376, 7
    %v1378 = vsub.s32 0, %v1377
    %v1379 = vrot.slane %v1349, %v1378
    %v1380 = vlaneseq
    %v1381 = vshrl.u32 %v1380, 7
    %v1382 = vsub.s32 0, %v1381
    %v1383 = vrot.slane %v1351, %v1382
    %v1384 = vlaneseq
    %v1385 = vshrl.u32 %v1384, 7
    %v1386 = vsub.s32 0, %v1385
    %v1387 = vrot.slane %v1353, %v1386
    %v1396 = vadd.f32 %v1359, %v1354
    %v1397 = vadd.f32 %v1359, %v1355
    %v1398 = vadd.f32 %v1363, %v1354
    %v1399 = vadd.f32 %v1363, %v1355
    %v1400 = vadd.f32 %v1367, %v1354
    %v1401 = vadd.f32 %v1367, %v1355
    %v1402 = vadd.f32 %v1371, %v1354
    %v1403 = vadd.f32 %v1371, %v1355
    %v1404 = vadd.f32 %v1375, %v1354
    %v1405 = vadd.f32 %v1375, %v1355
    %v1406 = vadd.f32 %v1379, %v1354
    %v1407 = vadd.f32 %v1379, %v1355
    %v1408 = vadd.f32 %v1383, %v1354
    %v1409 = vadd.f32 %v1383, %v1355
    %v1410 = vadd.f32 %v1387, %v1354
    %v1411 = vadd.f32 %v1387, %v1355
    %v1412 = vld [vmem:[%s98 + $0x8] sm:$0xff]
    %v1414 = vcombine.high %v1412, %v1412
    %v1416 = vunpack.c.l.s4 1966171168
    %v1417 = vunpack.c.0.s8 %v1416
    %v1418 = vlaneseq
    %v1419 = vshrl.u32 %v1418, 7
    %v1420 = vsub.s32 %v1417, %v1419
    %v1421 = vrot.slane %v1412, %v1420
    %v1423 = vunpack.c.l.s4 1966171168
    %v1424 = vunpack.c.0.s8 %v1423
    %v1425 = vlaneseq
    %v1426 = vshrl.u32 %v1425, 7
    %v1427 = vsub.s32 %v1424, %v1426
    %v1428 = vrot.slane %v1414, %v1427
    %v1429 = vcombine.high %v1421, %v1421
    %v1430 = vcombine.high %v1428, %v1428
    %v1432 = vunpack.c.l.s4 1966171168
    %v1433 = vunpack.c.0.s8 %v1432
    %v1434 = vlaneseq
    %v1435 = vshrl.u32 %v1434, 7
    %v1436 = vsub.s32 %v1433, %v1435
    %v1437 = vrot.slane %v1421, %v1436
    %v1439 = vunpack.c.l.s4 1966171168
    %v1440 = vunpack.c.0.s8 %v1439
    %v1441 = vlaneseq
    %v1442 = vshrl.u32 %v1441, 7
    %v1443 = vsub.s32 %v1440, %v1442
    %v1444 = vrot.slane %v1428, %v1443
    %v1446 = vunpack.c.l.s4 1966171168
    %v1447 = vunpack.c.0.s8 %v1446
    %v1448 = vlaneseq
    %v1449 = vshrl.u32 %v1448, 7
    %v1450 = vsub.s32 %v1447, %v1449
    %v1451 = vrot.slane %v1429, %v1450
    %v1453 = vunpack.c.l.s4 1966171168
    %v1454 = vunpack.c.0.s8 %v1453
    %v1455 = vlaneseq
    %v1456 = vshrl.u32 %v1455, 7
    %v1457 = vsub.s32 %v1454, %v1456
    %v1458 = vrot.slane %v1430, %v1457
    %v1459 = vcombine.high %v1437, %v1437
    %v1460 = vcombine.high %v1444, %v1444
    %v1461 = vcombine.high %v1451, %v1451
    %v1462 = vcombine.high %v1458, %v1458
    %v1463 = vld [vmem:[#allocation7 + $0x88] sm:$0xff]
    %v1464 = vld [vmem:[#allocation7 + $0xc8] sm:$0xff]
    %v1465 = vlaneseq
    %v1466 = vshrl.u32 %v1465, 7
    %v1467 = vsub.s32 0, %v1466
    %v1468 = vrot.slane %v1437, %v1467
    %v1469 = vlaneseq
    %v1470 = vshrl.u32 %v1469, 7
    %v1471 = vsub.s32 0, %v1470
    %v1472 = vrot.slane %v1451, %v1471
    %v1473 = vlaneseq
    %v1474 = vshrl.u32 %v1473, 7
    %v1475 = vsub.s32 0, %v1474
    %v1476 = vrot.slane %v1459, %v1475
    %v1477 = vlaneseq
    %v1478 = vshrl.u32 %v1477, 7
    %v1479 = vsub.s32 0, %v1478
    %v1480 = vrot.slane %v1461, %v1479
    %v1481 = vlaneseq
    %v1482 = vshrl.u32 %v1481, 7
    %v1483 = vsub.s32 0, %v1482
    %v1484 = vrot.slane %v1444, %v1483
    %v1485 = vlaneseq
    %v1486 = vshrl.u32 %v1485, 7
    %v1487 = vsub.s32 0, %v1486
    %v1488 = vrot.slane %v1458, %v1487
    %v1489 = vlaneseq
    %v1490 = vshrl.u32 %v1489, 7
    %v1491 = vsub.s32 0, %v1490
    %v1492 = vrot.slane %v1460, %v1491
    %v1493 = vlaneseq
    %v1494 = vshrl.u32 %v1493, 7
    %v1495 = vsub.s32 0, %v1494
    %v1496 = vrot.slane %v1462, %v1495
    %v1505 = vadd.f32 %v1468, %v1463
    %v1506 = vadd.f32 %v1468, %v1464
    %v1507 = vadd.f32 %v1472, %v1463
    %v1508 = vadd.f32 %v1472, %v1464
    %v1509 = vadd.f32 %v1476, %v1463
    %v1510 = vadd.f32 %v1476, %v1464
    %v1511 = vadd.f32 %v1480, %v1463
    %v1512 = vadd.f32 %v1480, %v1464
    %v1513 = vadd.f32 %v1484, %v1463
    %v1514 = vadd.f32 %v1484, %v1464
    %v1515 = vadd.f32 %v1488, %v1463
    %v1516 = vadd.f32 %v1488, %v1464
    %v1517 = vadd.f32 %v1492, %v1463
    %v1518 = vadd.f32 %v1492, %v1464
    %v1519 = vadd.f32 %v1496, %v1463
    %v1520 = vadd.f32 %v1496, %v1464
    %v1521 = vmax.f32 %v1396, %v1505
    %v1522 = vmax.f32 %v1397, %v1506
    %v1523 = vmax.f32 %v1398, %v1507
    %v1524 = vmax.f32 %v1399, %v1508
    %v1525 = vmax.f32 %v1400, %v1509
    %v1526 = vmax.f32 %v1401, %v1510
    %v1527 = vmax.f32 %v1402, %v1511
    %v1528 = vmax.f32 %v1403, %v1512
    %v1529 = vmax.f32 %v1404, %v1513
    %v1530 = vmax.f32 %v1405, %v1514
    %v1531 = vmax.f32 %v1406, %v1515
    %v1532 = vmax.f32 %v1407, %v1516
    %v1533 = vmax.f32 %v1408, %v1517
    %v1534 = vmax.f32 %v1409, %v1518
    %v1535 = vmax.f32 %v1410, %v1519
    %v1536 = vmax.f32 %v1411, %v1520
    %v1537 = vld [vmem:[%s98 + $0x10] sm:$0xff]
    %v1539 = vcombine.high %v1537, %v1537
    %v1541 = vunpack.c.l.s4 1966171168
    %v1542 = vunpack.c.0.s8 %v1541
    %v1543 = vlaneseq
    %v1544 = vshrl.u32 %v1543, 7
    %v1545 = vsub.s32 %v1542, %v1544
    %v1546 = vrot.slane %v1537, %v1545
    %v1548 = vunpack.c.l.s4 1966171168
    %v1549 = vunpack.c.0.s8 %v1548
    %v1550 = vlaneseq
    %v1551 = vshrl.u32 %v1550, 7
    %v1552 = vsub.s32 %v1549, %v1551
    %v1553 = vrot.slane %v1539, %v1552
    %v1554 = vcombine.high %v1546, %v1546
    %v1555 = vcombine.high %v1553, %v1553
    %v1557 = vunpack.c.l.s4 1966171168
    %v1558 = vunpack.c.0.s8 %v1557
    %v1559 = vlaneseq
    %v1560 = vshrl.u32 %v1559, 7
    %v1561 = vsub.s32 %v1558, %v1560
    %v1562 = vrot.slane %v1546, %v1561
    %v1564 = vunpack.c.l.s4 1966171168
    %v1565 = vunpack.c.0.s8 %v1564
    %v1566 = vlaneseq
    %v1567 = vshrl.u32 %v1566, 7
    %v1568 = vsub.s32 %v1565, %v1567
    %v1569 = vrot.slane %v1553, %v1568
    %v1571 = vunpack.c.l.s4 1966171168
    %v1572 = vunpack.c.0.s8 %v1571
    %v1573 = vlaneseq
    %v1574 = vshrl.u32 %v1573, 7
    %v1575 = vsub.s32 %v1572, %v1574
    %v1576 = vrot.slane %v1554, %v1575
    %v1578 = vunpack.c.l.s4 1966171168
    %v1579 = vunpack.c.0.s8 %v1578
    %v1580 = vlaneseq
    %v1581 = vshrl.u32 %v1580, 7
    %v1582 = vsub.s32 %v1579, %v1581
    %v1583 = vrot.slane %v1555, %v1582
    %v1584 = vcombine.high %v1562, %v1562
    %v1585 = vcombine.high %v1569, %v1569
    %v1586 = vcombine.high %v1576, %v1576
    %v1587 = vcombine.high %v1583, %v1583
    %v1588 = vld [vmem:[#allocation7 + $0x90] sm:$0xff]
    %v1589 = vld [vmem:[#allocation7 + $0xd0] sm:$0xff]
    %v1590 = vlaneseq
    %v1591 = vshrl.u32 %v1590, 7
    %v1592 = vsub.s32 0, %v1591
    %v1593 = vrot.slane %v1562, %v1592
    %v1594 = vlaneseq
    %v1595 = vshrl.u32 %v1594, 7
    %v1596 = vsub.s32 0, %v1595
    %v1597 = vrot.slane %v1576, %v1596
    %v1598 = vlaneseq
    %v1599 = vshrl.u32 %v1598, 7
    %v1600 = vsub.s32 0, %v1599
    %v1601 = vrot.slane %v1584, %v1600
    %v1602 = vlaneseq
    %v1603 = vshrl.u32 %v1602, 7
    %v1604 = vsub.s32 0, %v1603
    %v1605 = vrot.slane %v1586, %v1604
    %v1606 = vlaneseq
    %v1607 = vshrl.u32 %v1606, 7
    %v1608 = vsub.s32 0, %v1607
    %v1609 = vrot.slane %v1569, %v1608
    %v1610 = vlaneseq
    %v1611 = vshrl.u32 %v1610, 7
    %v1612 = vsub.s32 0, %v1611
    %v1613 = vrot.slane %v1583, %v1612
    %v1614 = vlaneseq
    %v1615 = vshrl.u32 %v1614, 7
    %v1616 = vsub.s32 0, %v1615
    %v1617 = vrot.slane %v1585, %v1616
    %v1618 = vlaneseq
    %v1619 = vshrl.u32 %v1618, 7
    %v1620 = vsub.s32 0, %v1619
    %v1621 = vrot.slane %v1587, %v1620
    %v1630 = vadd.f32 %v1593, %v1588
    %v1631 = vadd.f32 %v1593, %v1589
    %v1632 = vadd.f32 %v1597, %v1588
    %v1633 = vadd.f32 %v1597, %v1589
    %v1634 = vadd.f32 %v1601, %v1588
    %v1635 = vadd.f32 %v1601, %v1589
    %v1636 = vadd.f32 %v1605, %v1588
    %v1637 = vadd.f32 %v1605, %v1589
    %v1638 = vadd.f32 %v1609, %v1588
    %v1639 = vadd.f32 %v1609, %v1589
    %v1640 = vadd.f32 %v1613, %v1588
    %v1641 = vadd.f32 %v1613, %v1589
    %v1642 = vadd.f32 %v1617, %v1588
    %v1643 = vadd.f32 %v1617, %v1589
    %v1644 = vadd.f32 %v1621, %v1588
    %v1645 = vadd.f32 %v1621, %v1589
    %v1646 = vmax.f32 %v1521, %v1630
    %v1647 = vmax.f32 %v1522, %v1631
    %v1648 = vmax.f32 %v1523, %v1632
    %v1649 = vmax.f32 %v1524, %v1633
    %v1650 = vmax.f32 %v1525, %v1634
    %v1651 = vmax.f32 %v1526, %v1635
    %v1652 = vmax.f32 %v1527, %v1636
    %v1653 = vmax.f32 %v1528, %v1637
    %v1654 = vmax.f32 %v1529, %v1638
    %v1655 = vmax.f32 %v1530, %v1639
    %v1656 = vmax.f32 %v1531, %v1640
    %v1657 = vmax.f32 %v1532, %v1641
    %v1658 = vmax.f32 %v1533, %v1642
    %v1659 = vmax.f32 %v1534, %v1643
    %v1660 = vmax.f32 %v1535, %v1644
    %v1661 = vmax.f32 %v1536, %v1645
    %v1662 = vld [vmem:[%s98 + $0x18] sm:$0xff]
    %v1664 = vcombine.high %v1662, %v1662
    %v1666 = vunpack.c.l.s4 1966171168
    %v1667 = vunpack.c.0.s8 %v1666
    %v1668 = vlaneseq
    %v1669 = vshrl.u32 %v1668, 7
    %v1670 = vsub.s32 %v1667, %v1669
    %v1671 = vrot.slane %v1662, %v1670
    %v1673 = vunpack.c.l.s4 1966171168
    %v1674 = vunpack.c.0.s8 %v1673
    %v1675 = vlaneseq
    %v1676 = vshrl.u32 %v1675, 7
    %v1677 = vsub.s32 %v1674, %v1676
    %v1678 = vrot.slane %v1664, %v1677
    %v1679 = vcombine.high %v1671, %v1671
    %v1680 = vcombine.high %v1678, %v1678
    %v1682 = vunpack.c.l.s4 1966171168
    %v1683 = vunpack.c.0.s8 %v1682
    %v1684 = vlaneseq
    %v1685 = vshrl.u32 %v1684, 7
    %v1686 = vsub.s32 %v1683, %v1685
    %v1687 = vrot.slane %v1671, %v1686
    %v1689 = vunpack.c.l.s4 1966171168
    %v1690 = vunpack.c.0.s8 %v1689
    %v1691 = vlaneseq
    %v1692 = vshrl.u32 %v1691, 7
    %v1693 = vsub.s32 %v1690, %v1692
    %v1694 = vrot.slane %v1678, %v1693
    %v1696 = vunpack.c.l.s4 1966171168
    %v1697 = vunpack.c.0.s8 %v1696
    %v1698 = vlaneseq
    %v1699 = vshrl.u32 %v1698, 7
    %v1700 = vsub.s32 %v1697, %v1699
    %v1701 = vrot.slane %v1679, %v1700
    %v1703 = vunpack.c.l.s4 1966171168
    %v1704 = vunpack.c.0.s8 %v1703
    %v1705 = vlaneseq
    %v1706 = vshrl.u32 %v1705, 7
    %v1707 = vsub.s32 %v1704, %v1706
    %v1708 = vrot.slane %v1680, %v1707
    %v1709 = vcombine.high %v1687, %v1687
    %v1710 = vcombine.high %v1694, %v1694
    %v1711 = vcombine.high %v1701, %v1701
    %v1712 = vcombine.high %v1708, %v1708
    %v1713 = vld [vmem:[#allocation7 + $0x98] sm:$0xff]
    %v1714 = vld [vmem:[#allocation7 + $0xd8] sm:$0xff]
    %v1715 = vlaneseq
    %v1716 = vshrl.u32 %v1715, 7
    %v1717 = vsub.s32 0, %v1716
    %v1718 = vrot.slane %v1687, %v1717
    %v1719 = vlaneseq
    %v1720 = vshrl.u32 %v1719, 7
    %v1721 = vsub.s32 0, %v1720
    %v1722 = vrot.slane %v1701, %v1721
    %v1723 = vlaneseq
    %v1724 = vshrl.u32 %v1723, 7
    %v1725 = vsub.s32 0, %v1724
    %v1726 = vrot.slane %v1709, %v1725
    %v1727 = vlaneseq
    %v1728 = vshrl.u32 %v1727, 7
    %v1729 = vsub.s32 0, %v1728
    %v1730 = vrot.slane %v1711, %v1729
    %v1731 = vlaneseq
    %v1732 = vshrl.u32 %v1731, 7
    %v1733 = vsub.s32 0, %v1732
    %v1734 = vrot.slane %v1694, %v1733
    %v1735 = vlaneseq
    %v1736 = vshrl.u32 %v1735, 7
    %v1737 = vsub.s32 0, %v1736
    %v1738 = vrot.slane %v1708, %v1737
    %v1739 = vlaneseq
    %v1740 = vshrl.u32 %v1739, 7
    %v1741 = vsub.s32 0, %v1740
    %v1742 = vrot.slane %v1710, %v1741
    %v1743 = vlaneseq
    %v1744 = vshrl.u32 %v1743, 7
    %v1745 = vsub.s32 0, %v1744
    %v1746 = vrot.slane %v1712, %v1745
    %v1755 = vadd.f32 %v1718, %v1713
    %v1756 = vadd.f32 %v1718, %v1714
    %v1757 = vadd.f32 %v1722, %v1713
    %v1758 = vadd.f32 %v1722, %v1714
    %v1759 = vadd.f32 %v1726, %v1713
    %v1760 = vadd.f32 %v1726, %v1714
    %v1761 = vadd.f32 %v1730, %v1713
    %v1762 = vadd.f32 %v1730, %v1714
    %v1763 = vadd.f32 %v1734, %v1713
    %v1764 = vadd.f32 %v1734, %v1714
    %v1765 = vadd.f32 %v1738, %v1713
    %v1766 = vadd.f32 %v1738, %v1714
    %v1767 = vadd.f32 %v1742, %v1713
    %v1768 = vadd.f32 %v1742, %v1714
    %v1769 = vadd.f32 %v1746, %v1713
    %v1770 = vadd.f32 %v1746, %v1714
    %v1771 = vmax.f32 %v1646, %v1755
    %v1772 = vmax.f32 %v1647, %v1756
    %v1773 = vmax.f32 %v1648, %v1757
    %v1774 = vmax.f32 %v1649, %v1758
    %v1775 = vmax.f32 %v1650, %v1759
    %v1776 = vmax.f32 %v1651, %v1760
    %v1777 = vmax.f32 %v1652, %v1761
    %v1778 = vmax.f32 %v1653, %v1762
    %v1779 = vmax.f32 %v1654, %v1763
    %v1780 = vmax.f32 %v1655, %v1764
    %v1781 = vmax.f32 %v1656, %v1765
    %v1782 = vmax.f32 %v1657, %v1766
    %v1783 = vmax.f32 %v1658, %v1767
    %v1784 = vmax.f32 %v1659, %v1768
    %v1785 = vmax.f32 %v1660, %v1769
    %v1786 = vmax.f32 %v1661, %v1770
    %v1787 = vld [vmem:[%s98 + $0x20] sm:$0xff]
    %v1789 = vcombine.high %v1787, %v1787
    %v1791 = vunpack.c.l.s4 1966171168
    %v1792 = vunpack.c.0.s8 %v1791
    %v1793 = vlaneseq
    %v1794 = vshrl.u32 %v1793, 7
    %v1795 = vsub.s32 %v1792, %v1794
    %v1796 = vrot.slane %v1787, %v1795
    %v1798 = vunpack.c.l.s4 1966171168
    %v1799 = vunpack.c.0.s8 %v1798
    %v1800 = vlaneseq
    %v1801 = vshrl.u32 %v1800, 7
    %v1802 = vsub.s32 %v1799, %v1801
    %v1803 = vrot.slane %v1789, %v1802
    %v1804 = vcombine.high %v1796, %v1796
    %v1805 = vcombine.high %v1803, %v1803
    %v1807 = vunpack.c.l.s4 1966171168
    %v1808 = vunpack.c.0.s8 %v1807
    %v1809 = vlaneseq
    %v1810 = vshrl.u32 %v1809, 7
    %v1811 = vsub.s32 %v1808, %v1810
    %v1812 = vrot.slane %v1796, %v1811
    %v1814 = vunpack.c.l.s4 1966171168
    %v1815 = vunpack.c.0.s8 %v1814
    %v1816 = vlaneseq
    %v1817 = vshrl.u32 %v1816, 7
    %v1818 = vsub.s32 %v1815, %v1817
    %v1819 = vrot.slane %v1803, %v1818
    %v1821 = vunpack.c.l.s4 1966171168
    %v1822 = vunpack.c.0.s8 %v1821
    %v1823 = vlaneseq
    %v1824 = vshrl.u32 %v1823, 7
    %v1825 = vsub.s32 %v1822, %v1824
    %v1826 = vrot.slane %v1804, %v1825
    %v1828 = vunpack.c.l.s4 1966171168
    %v1829 = vunpack.c.0.s8 %v1828
    %v1830 = vlaneseq
    %v1831 = vshrl.u32 %v1830, 7
    %v1832 = vsub.s32 %v1829, %v1831
    %v1833 = vrot.slane %v1805, %v1832
    %v1834 = vcombine.high %v1812, %v1812
    %v1835 = vcombine.high %v1819, %v1819
    %v1836 = vcombine.high %v1826, %v1826
    %v1837 = vcombine.high %v1833, %v1833
    %v1838 = vld [vmem:[#allocation7 + $0xa0] sm:$0xff]
    %v1839 = vld [vmem:[#allocation7 + $0xe0] sm:$0xff]
    %v1840 = vlaneseq
    %v1841 = vshrl.u32 %v1840, 7
    %v1842 = vsub.s32 0, %v1841
    %v1843 = vrot.slane %v1812, %v1842
    %v1844 = vlaneseq
    %v1845 = vshrl.u32 %v1844, 7
    %v1846 = vsub.s32 0, %v1845
    %v1847 = vrot.slane %v1826, %v1846
    %v1848 = vlaneseq
    %v1849 = vshrl.u32 %v1848, 7
    %v1850 = vsub.s32 0, %v1849
    %v1851 = vrot.slane %v1834, %v1850
    %v1852 = vlaneseq
    %v1853 = vshrl.u32 %v1852, 7
    %v1854 = vsub.s32 0, %v1853
    %v1855 = vrot.slane %v1836, %v1854
    %v1856 = vlaneseq
    %v1857 = vshrl.u32 %v1856, 7
    %v1858 = vsub.s32 0, %v1857
    %v1859 = vrot.slane %v1819, %v1858
    %v1860 = vlaneseq
    %v1861 = vshrl.u32 %v1860, 7
    %v1862 = vsub.s32 0, %v1861
    %v1863 = vrot.slane %v1833, %v1862
    %v1864 = vlaneseq
    %v1865 = vshrl.u32 %v1864, 7
    %v1866 = vsub.s32 0, %v1865
    %v1867 = vrot.slane %v1835, %v1866
    %v1868 = vlaneseq
    %v1869 = vshrl.u32 %v1868, 7
    %v1870 = vsub.s32 0, %v1869
    %v1871 = vrot.slane %v1837, %v1870
    %v1880 = vadd.f32 %v1843, %v1838
    %v1881 = vadd.f32 %v1843, %v1839
    %v1882 = vadd.f32 %v1847, %v1838
    %v1883 = vadd.f32 %v1847, %v1839
    %v1884 = vadd.f32 %v1851, %v1838
    %v1885 = vadd.f32 %v1851, %v1839
    %v1886 = vadd.f32 %v1855, %v1838
    %v1887 = vadd.f32 %v1855, %v1839
    %v1888 = vadd.f32 %v1859, %v1838
    %v1889 = vadd.f32 %v1859, %v1839
    %v1890 = vadd.f32 %v1863, %v1838
    %v1891 = vadd.f32 %v1863, %v1839
    %v1892 = vadd.f32 %v1867, %v1838
    %v1893 = vadd.f32 %v1867, %v1839
    %v1894 = vadd.f32 %v1871, %v1838
    %v1895 = vadd.f32 %v1871, %v1839
    %v1896 = vmax.f32 %v1771, %v1880
    %v1897 = vmax.f32 %v1772, %v1881
    %v1898 = vmax.f32 %v1773, %v1882
    %v1899 = vmax.f32 %v1774, %v1883
    %v1900 = vmax.f32 %v1775, %v1884
    %v1901 = vmax.f32 %v1776, %v1885
    %v1902 = vmax.f32 %v1777, %v1886
    %v1903 = vmax.f32 %v1778, %v1887
    %v1904 = vmax.f32 %v1779, %v1888
    %v1905 = vmax.f32 %v1780, %v1889
    %v1906 = vmax.f32 %v1781, %v1890
    %v1907 = vmax.f32 %v1782, %v1891
    %v1908 = vmax.f32 %v1783, %v1892
    %v1909 = vmax.f32 %v1784, %v1893
    %v1910 = vmax.f32 %v1785, %v1894
    %v1911 = vmax.f32 %v1786, %v1895
    %v1912 = vld [vmem:[%s98 + $0x28] sm:$0xff]
    %v1914 = vcombine.high %v1912, %v1912
    %v1916 = vunpack.c.l.s4 1966171168
    %v1917 = vunpack.c.0.s8 %v1916
    %v1918 = vlaneseq
    %v1919 = vshrl.u32 %v1918, 7
    %v1920 = vsub.s32 %v1917, %v1919
    %v1921 = vrot.slane %v1912, %v1920
    %v1923 = vunpack.c.l.s4 1966171168
    %v1924 = vunpack.c.0.s8 %v1923
    %v1925 = vlaneseq
    %v1926 = vshrl.u32 %v1925, 7
    %v1927 = vsub.s32 %v1924, %v1926
    %v1928 = vrot.slane %v1914, %v1927
    %v1929 = vcombine.high %v1921, %v1921
    %v1930 = vcombine.high %v1928, %v1928
    %v1932 = vunpack.c.l.s4 1966171168
    %v1933 = vunpack.c.0.s8 %v1932
    %v1934 = vlaneseq
    %v1935 = vshrl.u32 %v1934, 7
    %v1936 = vsub.s32 %v1933, %v1935
    %v1937 = vrot.slane %v1921, %v1936
    %v1939 = vunpack.c.l.s4 1966171168
    %v1940 = vunpack.c.0.s8 %v1939
    %v1941 = vlaneseq
    %v1942 = vshrl.u32 %v1941, 7
    %v1943 = vsub.s32 %v1940, %v1942
    %v1944 = vrot.slane %v1928, %v1943
    %v1946 = vunpack.c.l.s4 1966171168
    %v1947 = vunpack.c.0.s8 %v1946
    %v1948 = vlaneseq
    %v1949 = vshrl.u32 %v1948, 7
    %v1950 = vsub.s32 %v1947, %v1949
    %v1951 = vrot.slane %v1929, %v1950
    %v1953 = vunpack.c.l.s4 1966171168
    %v1954 = vunpack.c.0.s8 %v1953
    %v1955 = vlaneseq
    %v1956 = vshrl.u32 %v1955, 7
    %v1957 = vsub.s32 %v1954, %v1956
    %v1958 = vrot.slane %v1930, %v1957
    %v1959 = vcombine.high %v1937, %v1937
    %v1960 = vcombine.high %v1944, %v1944
    %v1961 = vcombine.high %v1951, %v1951
    %v1962 = vcombine.high %v1958, %v1958
    %v1963 = vld [vmem:[#allocation7 + $0xa8] sm:$0xff]
    %v1964 = vld [vmem:[#allocation7 + $0xe8] sm:$0xff]
    %v1965 = vlaneseq
    %v1966 = vshrl.u32 %v1965, 7
    %v1967 = vsub.s32 0, %v1966
    %v1968 = vrot.slane %v1937, %v1967
    %v1969 = vlaneseq
    %v1970 = vshrl.u32 %v1969, 7
    %v1971 = vsub.s32 0, %v1970
    %v1972 = vrot.slane %v1951, %v1971
    %v1973 = vlaneseq
    %v1974 = vshrl.u32 %v1973, 7
    %v1975 = vsub.s32 0, %v1974
    %v1976 = vrot.slane %v1959, %v1975
    %v1977 = vlaneseq
    %v1978 = vshrl.u32 %v1977, 7
    %v1979 = vsub.s32 0, %v1978
    %v1980 = vrot.slane %v1961, %v1979
    %v1981 = vlaneseq
    %v1982 = vshrl.u32 %v1981, 7
    %v1983 = vsub.s32 0, %v1982
    %v1984 = vrot.slane %v1944, %v1983
    %v1985 = vlaneseq
    %v1986 = vshrl.u32 %v1985, 7
    %v1987 = vsub.s32 0, %v1986
    %v1988 = vrot.slane %v1958, %v1987
    %v1989 = vlaneseq
    %v1990 = vshrl.u32 %v1989, 7
    %v1991 = vsub.s32 0, %v1990
    %v1992 = vrot.slane %v1960, %v1991
    %v1993 = vlaneseq
    %v1994 = vshrl.u32 %v1993, 7
    %v1995 = vsub.s32 0, %v1994
    %v1996 = vrot.slane %v1962, %v1995
    %v2005 = vadd.f32 %v1968, %v1963
    %v2006 = vadd.f32 %v1968, %v1964
    %v2007 = vadd.f32 %v1972, %v1963
    %v2008 = vadd.f32 %v1972, %v1964
    %v2009 = vadd.f32 %v1976, %v1963
    %v2010 = vadd.f32 %v1976, %v1964
    %v2011 = vadd.f32 %v1980, %v1963
    %v2012 = vadd.f32 %v1980, %v1964
    %v2013 = vadd.f32 %v1984, %v1963
    %v2014 = vadd.f32 %v1984, %v1964
    %v2015 = vadd.f32 %v1988, %v1963
    %v2016 = vadd.f32 %v1988, %v1964
    %v2017 = vadd.f32 %v1992, %v1963
    %v2018 = vadd.f32 %v1992, %v1964
    %v2019 = vadd.f32 %v1996, %v1963
    %v2020 = vadd.f32 %v1996, %v1964
    %v2021 = vmax.f32 %v1896, %v2005
    %v2022 = vmax.f32 %v1897, %v2006
    %v2023 = vmax.f32 %v1898, %v2007
    %v2024 = vmax.f32 %v1899, %v2008
    %v2025 = vmax.f32 %v1900, %v2009
    %v2026 = vmax.f32 %v1901, %v2010
    %v2027 = vmax.f32 %v1902, %v2011
    %v2028 = vmax.f32 %v1903, %v2012
    %v2029 = vmax.f32 %v1904, %v2013
    %v2030 = vmax.f32 %v1905, %v2014
    %v2031 = vmax.f32 %v1906, %v2015
    %v2032 = vmax.f32 %v1907, %v2016
    %v2033 = vmax.f32 %v1908, %v2017
    %v2034 = vmax.f32 %v1909, %v2018
    %v2035 = vmax.f32 %v1910, %v2019
    %v2036 = vmax.f32 %v1911, %v2020
    %v2037 = vld [vmem:[%s98 + $0x30] sm:$0xff]
    %v2039 = vcombine.high %v2037, %v2037
    %v2041 = vunpack.c.l.s4 1966171168
    %v2042 = vunpack.c.0.s8 %v2041
    %v2043 = vlaneseq
    %v2044 = vshrl.u32 %v2043, 7
    %v2045 = vsub.s32 %v2042, %v2044
    %v2046 = vrot.slane %v2037, %v2045
    %v2048 = vunpack.c.l.s4 1966171168
    %v2049 = vunpack.c.0.s8 %v2048
    %v2050 = vlaneseq
    %v2051 = vshrl.u32 %v2050, 7
    %v2052 = vsub.s32 %v2049, %v2051
    %v2053 = vrot.slane %v2039, %v2052
    %v2054 = vcombine.high %v2046, %v2046
    %v2055 = vcombine.high %v2053, %v2053
    %v2057 = vunpack.c.l.s4 1966171168
    %v2058 = vunpack.c.0.s8 %v2057
    %v2059 = vlaneseq
    %v2060 = vshrl.u32 %v2059, 7
    %v2061 = vsub.s32 %v2058, %v2060
    %v2062 = vrot.slane %v2046, %v2061
    %v2064 = vunpack.c.l.s4 1966171168
    %v2065 = vunpack.c.0.s8 %v2064
    %v2066 = vlaneseq
    %v2067 = vshrl.u32 %v2066, 7
    %v2068 = vsub.s32 %v2065, %v2067
    %v2069 = vrot.slane %v2053, %v2068
    %v2071 = vunpack.c.l.s4 1966171168
    %v2072 = vunpack.c.0.s8 %v2071
    %v2073 = vlaneseq
    %v2074 = vshrl.u32 %v2073, 7
    %v2075 = vsub.s32 %v2072, %v2074
    %v2076 = vrot.slane %v2054, %v2075
    %v2078 = vunpack.c.l.s4 1966171168
    %v2079 = vunpack.c.0.s8 %v2078
    %v2080 = vlaneseq
    %v2081 = vshrl.u32 %v2080, 7
    %v2082 = vsub.s32 %v2079, %v2081
    %v2083 = vrot.slane %v2055, %v2082
    %v2084 = vcombine.high %v2062, %v2062
    %v2085 = vcombine.high %v2069, %v2069
    %v2086 = vcombine.high %v2076, %v2076
    %v2087 = vcombine.high %v2083, %v2083
    %v2088 = vld [vmem:[#allocation7 + $0xb0] sm:$0xff]
    %v2089 = vld [vmem:[#allocation7 + $0xf0] sm:$0xff]
    %v2090 = vlaneseq
    %v2091 = vshrl.u32 %v2090, 7
    %v2092 = vsub.s32 0, %v2091
    %v2093 = vrot.slane %v2062, %v2092
    %v2094 = vlaneseq
    %v2095 = vshrl.u32 %v2094, 7
    %v2096 = vsub.s32 0, %v2095
    %v2097 = vrot.slane %v2076, %v2096
    %v2098 = vlaneseq
    %v2099 = vshrl.u32 %v2098, 7
    %v2100 = vsub.s32 0, %v2099
    %v2101 = vrot.slane %v2084, %v2100
    %v2102 = vlaneseq
    %v2103 = vshrl.u32 %v2102, 7
    %v2104 = vsub.s32 0, %v2103
    %v2105 = vrot.slane %v2086, %v2104
    %v2106 = vlaneseq
    %v2107 = vshrl.u32 %v2106, 7
    %v2108 = vsub.s32 0, %v2107
    %v2109 = vrot.slane %v2069, %v2108
    %v2110 = vlaneseq
    %v2111 = vshrl.u32 %v2110, 7
    %v2112 = vsub.s32 0, %v2111
    %v2113 = vrot.slane %v2083, %v2112
    %v2114 = vlaneseq
    %v2115 = vshrl.u32 %v2114, 7
    %v2116 = vsub.s32 0, %v2115
    %v2117 = vrot.slane %v2085, %v2116
    %v2118 = vlaneseq
    %v2119 = vshrl.u32 %v2118, 7
    %v2120 = vsub.s32 0, %v2119
    %v2121 = vrot.slane %v2087, %v2120
    %v2130 = vadd.f32 %v2093, %v2088
    %v2131 = vadd.f32 %v2093, %v2089
    %v2132 = vadd.f32 %v2097, %v2088
    %v2133 = vadd.f32 %v2097, %v2089
    %v2134 = vadd.f32 %v2101, %v2088
    %v2135 = vadd.f32 %v2101, %v2089
    %v2136 = vadd.f32 %v2105, %v2088
    %v2137 = vadd.f32 %v2105, %v2089
    %v2138 = vadd.f32 %v2109, %v2088
    %v2139 = vadd.f32 %v2109, %v2089
    %v2140 = vadd.f32 %v2113, %v2088
    %v2141 = vadd.f32 %v2113, %v2089
    %v2142 = vadd.f32 %v2117, %v2088
    %v2143 = vadd.f32 %v2117, %v2089
    %v2144 = vadd.f32 %v2121, %v2088
    %v2145 = vadd.f32 %v2121, %v2089
    %v2146 = vmax.f32 %v2021, %v2130
    %v2147 = vmax.f32 %v2022, %v2131
    %v2148 = vmax.f32 %v2023, %v2132
    %v2149 = vmax.f32 %v2024, %v2133
    %v2150 = vmax.f32 %v2025, %v2134
    %v2151 = vmax.f32 %v2026, %v2135
    %v2152 = vmax.f32 %v2027, %v2136
    %v2153 = vmax.f32 %v2028, %v2137
    %v2154 = vmax.f32 %v2029, %v2138
    %v2155 = vmax.f32 %v2030, %v2139
    %v2156 = vmax.f32 %v2031, %v2140
    %v2157 = vmax.f32 %v2032, %v2141
    %v2158 = vmax.f32 %v2033, %v2142
    %v2159 = vmax.f32 %v2034, %v2143
    %v2160 = vmax.f32 %v2035, %v2144
    %v2161 = vmax.f32 %v2036, %v2145
    %v2162 = vld [vmem:[%s98 + $0x38] sm:$0xff]
    %v2164 = vcombine.high %v2162, %v2162
    %v2166 = vunpack.c.l.s4 1966171168
    %v2167 = vunpack.c.0.s8 %v2166
    %v2168 = vlaneseq
    %v2169 = vshrl.u32 %v2168, 7
    %v2170 = vsub.s32 %v2167, %v2169
    %v2171 = vrot.slane %v2162, %v2170
    %v2173 = vunpack.c.l.s4 1966171168
    %v2174 = vunpack.c.0.s8 %v2173
    %v2175 = vlaneseq
    %v2176 = vshrl.u32 %v2175, 7
    %v2177 = vsub.s32 %v2174, %v2176
    %v2178 = vrot.slane %v2164, %v2177
    %v2179 = vcombine.high %v2171, %v2171
    %v2180 = vcombine.high %v2178, %v2178
    %v2182 = vunpack.c.l.s4 1966171168
    %v2183 = vunpack.c.0.s8 %v2182
    %v2184 = vlaneseq
    %v2185 = vshrl.u32 %v2184, 7
    %v2186 = vsub.s32 %v2183, %v2185
    %v2187 = vrot.slane %v2171, %v2186
    %v2189 = vunpack.c.l.s4 1966171168
    %v2190 = vunpack.c.0.s8 %v2189
    %v2191 = vlaneseq
    %v2192 = vshrl.u32 %v2191, 7
    %v2193 = vsub.s32 %v2190, %v2192
    %v2194 = vrot.slane %v2178, %v2193
    %v2196 = vunpack.c.l.s4 1966171168
    %v2197 = vunpack.c.0.s8 %v2196
    %v2198 = vlaneseq
    %v2199 = vshrl.u32 %v2198, 7
    %v2200 = vsub.s32 %v2197, %v2199
    %v2201 = vrot.slane %v2179, %v2200
    %v2203 = vunpack.c.l.s4 1966171168
    %v2204 = vunpack.c.0.s8 %v2203
    %v2205 = vlaneseq
    %v2206 = vshrl.u32 %v2205, 7
    %v2207 = vsub.s32 %v2204, %v2206
    %v2208 = vrot.slane %v2180, %v2207
    %v2209 = vcombine.high %v2187, %v2187
    %v2210 = vcombine.high %v2194, %v2194
    %v2211 = vcombine.high %v2201, %v2201
    %v2212 = vcombine.high %v2208, %v2208
    %v2213 = vld [vmem:[#allocation7 + $0xb8] sm:$0xff]
    %v2214 = vld [vmem:[#allocation7 + $0xf8] sm:$0xff]
    %v2215 = vlaneseq
    %v2216 = vshrl.u32 %v2215, 7
    %v2217 = vsub.s32 0, %v2216
    %v2218 = vrot.slane %v2187, %v2217
    %v2219 = vlaneseq
    %v2220 = vshrl.u32 %v2219, 7
    %v2221 = vsub.s32 0, %v2220
    %v2222 = vrot.slane %v2201, %v2221
    %v2223 = vlaneseq
    %v2224 = vshrl.u32 %v2223, 7
    %v2225 = vsub.s32 0, %v2224
    %v2226 = vrot.slane %v2209, %v2225
    %v2227 = vlaneseq
    %v2228 = vshrl.u32 %v2227, 7
    %v2229 = vsub.s32 0, %v2228
    %v2230 = vrot.slane %v2211, %v2229
    %v2231 = vlaneseq
    %v2232 = vshrl.u32 %v2231, 7
    %v2233 = vsub.s32 0, %v2232
    %v2234 = vrot.slane %v2194, %v2233
    %v2235 = vlaneseq
    %v2236 = vshrl.u32 %v2235, 7
    %v2237 = vsub.s32 0, %v2236
    %v2238 = vrot.slane %v2208, %v2237
    %v2239 = vlaneseq
    %v2240 = vshrl.u32 %v2239, 7
    %v2241 = vsub.s32 0, %v2240
    %v2242 = vrot.slane %v2210, %v2241
    %v2243 = vlaneseq
    %v2244 = vshrl.u32 %v2243, 7
    %v2245 = vsub.s32 0, %v2244
    %v2246 = vrot.slane %v2212, %v2245
    %v2255 = vadd.f32 %v2218, %v2213
    %v2256 = vadd.f32 %v2218, %v2214
    %v2257 = vadd.f32 %v2222, %v2213
    %v2258 = vadd.f32 %v2222, %v2214
    %v2259 = vadd.f32 %v2226, %v2213
    %v2260 = vadd.f32 %v2226, %v2214
    %v2261 = vadd.f32 %v2230, %v2213
    %v2262 = vadd.f32 %v2230, %v2214
    %v2263 = vadd.f32 %v2234, %v2213
    %v2264 = vadd.f32 %v2234, %v2214
    %v2265 = vadd.f32 %v2238, %v2213
    %v2266 = vadd.f32 %v2238, %v2214
    %v2267 = vadd.f32 %v2242, %v2213
    %v2268 = vadd.f32 %v2242, %v2214
    %v2269 = vadd.f32 %v2246, %v2213
    %v2270 = vadd.f32 %v2246, %v2214
    %v2271 = vmax.f32 %v2146, %v2255
    %v2272 = vmax.f32 %v2147, %v2256
    %v2273 = vmax.f32 %v2148, %v2257
    %v2274 = vmax.f32 %v2149, %v2258
    %v2275 = vmax.f32 %v2150, %v2259
    %v2276 = vmax.f32 %v2151, %v2260
    %v2277 = vmax.f32 %v2152, %v2261
    %v2278 = vmax.f32 %v2153, %v2262
    %v2279 = vmax.f32 %v2154, %v2263
    %v2280 = vmax.f32 %v2155, %v2264
    %v2281 = vmax.f32 %v2156, %v2265
    %v2282 = vmax.f32 %v2157, %v2266
    %v2283 = vmax.f32 %v2158, %v2267
    %v2284 = vmax.f32 %v2159, %v2268
    %v2285 = vmax.f32 %v2160, %v2269
    %v2286 = vmax.f32 %v2161, %v2270
    %2287 = vmax.xlane.f32.xlu0 %v2271
    %v2288 = vpop.xlane.xlu0 %2287
    %2289 = vmax.xlane.f32.xlu0 %v2272
    %v2290 = vpop.xlane.xlu0 %2289
    %2291 = vmax.xlane.f32.xlu0 %v2273
    %v2292 = vpop.xlane.xlu0 %2291
    %2293 = vmax.xlane.f32.xlu0 %v2274
    %v2294 = vpop.xlane.xlu0 %2293
    %2295 = vmax.xlane.f32.xlu0 %v2275
    %v2296 = vpop.xlane.xlu0 %2295
    %2297 = vmax.xlane.f32.xlu0 %v2276
    %v2298 = vpop.xlane.xlu0 %2297
    %2299 = vmax.xlane.f32.xlu0 %v2277
    %v2300 = vpop.xlane.xlu0 %2299
    %2301 = vmax.xlane.f32.xlu0 %v2278
    %v2302 = vpop.xlane.xlu0 %2301
    %2303 = vmax.xlane.f32.xlu0 %v2279
    %v2304 = vpop.xlane.xlu0 %2303
    %2305 = vmax.xlane.f32.xlu0 %v2280
    %v2306 = vpop.xlane.xlu0 %2305
    %2307 = vmax.xlane.f32.xlu0 %v2281
    %v2308 = vpop.xlane.xlu0 %2307
    %2309 = vmax.xlane.f32.xlu0 %v2282
    %v2310 = vpop.xlane.xlu0 %2309
    %2311 = vmax.xlane.f32.xlu0 %v2283
    %v2312 = vpop.xlane.xlu0 %2311
    %2313 = vmax.xlane.f32.xlu0 %v2284
    %v2314 = vpop.xlane.xlu0 %2313
    %2315 = vmax.xlane.f32.xlu0 %v2285
    %v2316 = vpop.xlane.xlu0 %2315
    %2317 = vmax.xlane.f32.xlu0 %v2286
    %v2318 = vpop.xlane.xlu0 %2317
    %v2319 = vld [vmem:[%s3] sm:$0x1]
    %v2321 = vlaneseq
    %v2322 = vshrl.u32 %v2321, 7
    %v2323 = vsub.s32 0, %v2322
    %v2324 = vrot.slane %v2319, %v2323
    %s2326 = sor.u32 256, 16
    %2327 = vbcast.lane.b32.xlu0 %v2324, %s2326
    %v2328 = vpop.permute.xlu0 %2327
    %s2330 = sor.u32 256, 24
    %2331 = vbcast.lane.b32.xlu0 %v2324, %s2330
    %v2332 = vpop.permute.xlu0 %2331
    %v2335 = vmax.f32 %v2288, %v2328
    %v2336 = vmax.f32 %v2290, %v2332
    %v2337 = vmax.f32 %v2292, %v2328
    %v2338 = vmax.f32 %v2294, %v2332
    %v2339 = vmax.f32 %v2296, %v2328
    %v2340 = vmax.f32 %v2298, %v2332
    %v2341 = vmax.f32 %v2300, %v2328
    %v2342 = vmax.f32 %v2302, %v2332
    %v2343 = vmax.f32 %v2304, %v2328
    %v2344 = vmax.f32 %v2306, %v2332
    %v2345 = vmax.f32 %v2308, %v2328
    %v2346 = vmax.f32 %v2310, %v2332
    %v2347 = vmax.f32 %v2312, %v2328
    %v2348 = vmax.f32 %v2314, %v2332
    %v2349 = vmax.f32 %v2316, %v2328
    %v2350 = vmax.f32 %v2318, %v2332
    %2367 = vset.pattern.permute.xlu0 0
    %2368 = vperm.xlu0 %2367, %v2335
    %v2369 = vpop.permute.xlu0 %2368
    %2370 = vset.pattern.permute.xlu0 0
    %2371 = vperm.xlu0 %2370, %v2336
    %v2372 = vpop.permute.xlu0 %2371
    %2373 = vset.pattern.permute.xlu0 0
    %2374 = vperm.xlu0 %2373, %v2337
    %v2375 = vpop.permute.xlu0 %2374
    %2376 = vset.pattern.permute.xlu0 0
    %2377 = vperm.xlu0 %2376, %v2338
    %v2378 = vpop.permute.xlu0 %2377
    %2379 = vset.pattern.permute.xlu0 0
    %2380 = vperm.xlu0 %2379, %v2339
    %v2381 = vpop.permute.xlu0 %2380
    %2382 = vset.pattern.permute.xlu0 0
    %2383 = vperm.xlu0 %2382, %v2340
    %v2384 = vpop.permute.xlu0 %2383
    %2385 = vset.pattern.permute.xlu0 0
    %2386 = vperm.xlu0 %2385, %v2341
    %v2387 = vpop.permute.xlu0 %2386
    %2388 = vset.pattern.permute.xlu0 0
    %2389 = vperm.xlu0 %2388, %v2342
    %v2390 = vpop.permute.xlu0 %2389
    %2391 = vset.pattern.permute.xlu0 0
    %2392 = vperm.xlu0 %2391, %v2343
    %v2393 = vpop.permute.xlu0 %2392
    %2394 = vset.pattern.permute.xlu0 0
    %2395 = vperm.xlu0 %2394, %v2344
    %v2396 = vpop.permute.xlu0 %2395
    %2397 = vset.pattern.permute.xlu0 0
    %2398 = vperm.xlu0 %2397, %v2345
    %v2399 = vpop.permute.xlu0 %2398
    %2400 = vset.pattern.permute.xlu0 0
    %2401 = vperm.xlu0 %2400, %v2346
    %v2402 = vpop.permute.xlu0 %2401
    %2403 = vset.pattern.permute.xlu0 0
    %2404 = vperm.xlu0 %2403, %v2347
    %v2405 = vpop.permute.xlu0 %2404
    %2406 = vset.pattern.permute.xlu0 0
    %2407 = vperm.xlu0 %2406, %v2348
    %v2408 = vpop.permute.xlu0 %2407
    %2409 = vset.pattern.permute.xlu0 0
    %2410 = vperm.xlu0 %2409, %v2349
    %v2411 = vpop.permute.xlu0 %2410
    %2412 = vset.pattern.permute.xlu0 0
    %2413 = vperm.xlu0 %2412, %v2350
    %v2414 = vpop.permute.xlu0 %2413
    %v2415 = vadd.s32 %v1211, 4294967280
    %v2416 = vlaneseq
    %v2417 = vshrl.u32 %v2416, 7
    %v2418 = vsub.s32 %v2415, %v2417
    %v2419 = vrot.slane %v2369, %v2418
    %v2420 = vadd.s32 %v1211, 4294967272
    %v2421 = vlaneseq
    %v2422 = vshrl.u32 %v2421, 7
    %v2423 = vsub.s32 %v2420, %v2422
    %v2424 = vrot.slane %v2372, %v2423
    %vm2425 = vcmask 261312
    %v2426 = vsel %vm2425, %v2424, %v2419
    %v2427 = vlaneseq
    %v2428 = vshrl.u32 %v2427, 7
    %v2429 = vsub.s32 %v2415, %v2428
    %v2430 = vrot.slane %v2375, %v2429
    %v2431 = vlaneseq
    %v2432 = vshrl.u32 %v2431, 7
    %v2433 = vsub.s32 %v2420, %v2432
    %v2434 = vrot.slane %v2378, %v2433
    %v2435 = vsel %vm2425, %v2434, %v2430
    %v2436 = vlaneseq
    %v2437 = vshrl.u32 %v2436, 7
    %v2438 = vsub.s32 %v2415, %v2437
    %v2439 = vrot.slane %v2381, %v2438
    %v2440 = vlaneseq
    %v2441 = vshrl.u32 %v2440, 7
    %v2442 = vsub.s32 %v2420, %v2441
    %v2443 = vrot.slane %v2384, %v2442
    %v2444 = vsel %vm2425, %v2443, %v2439
    %v2445 = vlaneseq
    %v2446 = vshrl.u32 %v2445, 7
    %v2447 = vsub.s32 %v2415, %v2446
    %v2448 = vrot.slane %v2387, %v2447
    %v2449 = vlaneseq
    %v2450 = vshrl.u32 %v2449, 7
    %v2451 = vsub.s32 %v2420, %v2450
    %v2452 = vrot.slane %v2390, %v2451
    %v2453 = vsel %vm2425, %v2452, %v2448
    %v2454 = vlaneseq
    %v2455 = vshrl.u32 %v2454, 7
    %v2456 = vsub.s32 %v2415, %v2455
    %v2457 = vrot.slane %v2393, %v2456
    %v2458 = vlaneseq
    %v2459 = vshrl.u32 %v2458, 7
    %v2460 = vsub.s32 %v2420, %v2459
    %v2461 = vrot.slane %v2396, %v2460
    %v2462 = vsel %vm2425, %v2461, %v2457
    %v2463 = vlaneseq
    %v2464 = vshrl.u32 %v2463, 7
    %v2465 = vsub.s32 %v2415, %v2464
    %v2466 = vrot.slane %v2399, %v2465
    %v2467 = vlaneseq
    %v2468 = vshrl.u32 %v2467, 7
    %v2469 = vsub.s32 %v2420, %v2468
    %v2470 = vrot.slane %v2402, %v2469
    %v2471 = vsel %vm2425, %v2470, %v2466
    %v2472 = vlaneseq
    %v2473 = vshrl.u32 %v2472, 7
    %v2474 = vsub.s32 %v2415, %v2473
    %v2475 = vrot.slane %v2405, %v2474
    %v2476 = vlaneseq
    %v2477 = vshrl.u32 %v2476, 7
    %v2478 = vsub.s32 %v2420, %v2477
    %v2479 = vrot.slane %v2408, %v2478
    %v2480 = vsel %vm2425, %v2479, %v2475
    %v2481 = vlaneseq
    %v2482 = vshrl.u32 %v2481, 7
    %v2483 = vsub.s32 %v2415, %v2482
    %v2484 = vrot.slane %v2411, %v2483
    %v2485 = vlaneseq
    %v2486 = vshrl.u32 %v2485, 7
    %v2487 = vsub.s32 %v2420, %v2486
    %v2488 = vrot.slane %v2414, %v2487
    %v2489 = vsel %vm2425, %v2488, %v2484
    %v2490 = vsel %vm1286, %v2435, %v2426
    %v2491 = vsel %vm1288, %v2444, %v2490
    %v2492 = vsel %vm1290, %v2453, %v2491
    %v2493 = vsel %vm1292, %v2462, %v2492
    %v2494 = vsel %vm1294, %v2471, %v2493
    %v2495 = vsel %vm1296, %v2480, %v2494
    %v2496 = vsel %vm1298, %v2489, %v2495
    %vm2498 = vcmask 261248
    %2499 = vst.msk [vmem:[#allocation2] sm:$0xff] %vm2498, %v2496
    %v2500 = vld [vmem:[%s98] sm:$0xff]
    %v2502 = vcombine.high %v2500, %v2500
    %v2504 = vunpack.c.l.s4 1966171168
    %v2505 = vunpack.c.0.s8 %v2504
    %v2506 = vlaneseq
    %v2507 = vshrl.u32 %v2506, 7
    %v2508 = vsub.s32 %v2505, %v2507
    %v2509 = vrot.slane %v2500, %v2508
    %v2511 = vunpack.c.l.s4 1966171168
    %v2512 = vunpack.c.0.s8 %v2511
    %v2513 = vlaneseq
    %v2514 = vshrl.u32 %v2513, 7
    %v2515 = vsub.s32 %v2512, %v2514
    %v2516 = vrot.slane %v2502, %v2515
    %v2517 = vcombine.high %v2509, %v2509
    %v2518 = vcombine.high %v2516, %v2516
    %v2520 = vunpack.c.l.s4 1966171168
    %v2521 = vunpack.c.0.s8 %v2520
    %v2522 = vlaneseq
    %v2523 = vshrl.u32 %v2522, 7
    %v2524 = vsub.s32 %v2521, %v2523
    %v2525 = vrot.slane %v2509, %v2524
    %v2527 = vunpack.c.l.s4 1966171168
    %v2528 = vunpack.c.0.s8 %v2527
    %v2529 = vlaneseq
    %v2530 = vshrl.u32 %v2529, 7
    %v2531 = vsub.s32 %v2528, %v2530
    %v2532 = vrot.slane %v2516, %v2531
    %v2534 = vunpack.c.l.s4 1966171168
    %v2535 = vunpack.c.0.s8 %v2534
    %v2536 = vlaneseq
    %v2537 = vshrl.u32 %v2536, 7
    %v2538 = vsub.s32 %v2535, %v2537
    %v2539 = vrot.slane %v2517, %v2538
    %v2541 = vunpack.c.l.s4 1966171168
    %v2542 = vunpack.c.0.s8 %v2541
    %v2543 = vlaneseq
    %v2544 = vshrl.u32 %v2543, 7
    %v2545 = vsub.s32 %v2542, %v2544
    %v2546 = vrot.slane %v2518, %v2545
    %v2547 = vcombine.high %v2525, %v2525
    %v2548 = vcombine.high %v2532, %v2532
    %v2549 = vcombine.high %v2539, %v2539
    %v2550 = vcombine.high %v2546, %v2546
    %v2551 = vld [vmem:[#allocation9] sm:$0xff]
    %v2552 = vld [vmem:[#allocation9 + $0x40] sm:$0xff]
    %v2553 = vlaneseq
    %v2554 = vshrl.u32 %v2553, 7
    %v2555 = vsub.s32 0, %v2554
    %v2556 = vrot.slane %v2525, %v2555
    %v2557 = vlaneseq
    %v2558 = vshrl.u32 %v2557, 7
    %v2559 = vsub.s32 0, %v2558
    %v2560 = vrot.slane %v2539, %v2559
    %v2561 = vlaneseq
    %v2562 = vshrl.u32 %v2561, 7
    %v2563 = vsub.s32 0, %v2562
    %v2564 = vrot.slane %v2547, %v2563
    %v2565 = vlaneseq
    %v2566 = vshrl.u32 %v2565, 7
    %v2567 = vsub.s32 0, %v2566
    %v2568 = vrot.slane %v2549, %v2567
    %v2569 = vlaneseq
    %v2570 = vshrl.u32 %v2569, 7
    %v2571 = vsub.s32 0, %v2570
    %v2572 = vrot.slane %v2532, %v2571
    %v2573 = vlaneseq
    %v2574 = vshrl.u32 %v2573, 7
    %v2575 = vsub.s32 0, %v2574
    %v2576 = vrot.slane %v2546, %v2575
    %v2577 = vlaneseq
    %v2578 = vshrl.u32 %v2577, 7
    %v2579 = vsub.s32 0, %v2578
    %v2580 = vrot.slane %v2548, %v2579
    %v2581 = vlaneseq
    %v2582 = vshrl.u32 %v2581, 7
    %v2583 = vsub.s32 0, %v2582
    %v2584 = vrot.slane %v2550, %v2583
    %v2593 = vsub.f32 %v2556, %v2551
    %v2594 = vsub.f32 %v2556, %v2552
    %v2595 = vsub.f32 %v2560, %v2551
    %v2596 = vsub.f32 %v2560, %v2552
    %v2597 = vsub.f32 %v2564, %v2551
    %v2598 = vsub.f32 %v2564, %v2552
    %v2599 = vsub.f32 %v2568, %v2551
    %v2600 = vsub.f32 %v2568, %v2552
    %v2601 = vsub.f32 %v2572, %v2551
    %v2602 = vsub.f32 %v2572, %v2552
    %v2603 = vsub.f32 %v2576, %v2551
    %v2604 = vsub.f32 %v2576, %v2552
    %v2605 = vsub.f32 %v2580, %v2551
    %v2606 = vsub.f32 %v2580, %v2552
    %v2607 = vsub.f32 %v2584, %v2551
    %v2608 = vsub.f32 %v2584, %v2552
    %v2609 = vld [vmem:[%s98 + $0x8] sm:$0xff]
    %v2611 = vcombine.high %v2609, %v2609
    %v2613 = vunpack.c.l.s4 1966171168
    %v2614 = vunpack.c.0.s8 %v2613
    %v2615 = vlaneseq
    %v2616 = vshrl.u32 %v2615, 7
    %v2617 = vsub.s32 %v2614, %v2616
    %v2618 = vrot.slane %v2609, %v2617
    %v2620 = vunpack.c.l.s4 1966171168
    %v2621 = vunpack.c.0.s8 %v2620
    %v2622 = vlaneseq
    %v2623 = vshrl.u32 %v2622, 7
    %v2624 = vsub.s32 %v2621, %v2623
    %v2625 = vrot.slane %v2611, %v2624
    %v2626 = vcombine.high %v2618, %v2618
    %v2627 = vcombine.high %v2625, %v2625
    %v2629 = vunpack.c.l.s4 1966171168
    %v2630 = vunpack.c.0.s8 %v2629
    %v2631 = vlaneseq
    %v2632 = vshrl.u32 %v2631, 7
    %v2633 = vsub.s32 %v2630, %v2632
    %v2634 = vrot.slane %v2618, %v2633
    %v2636 = vunpack.c.l.s4 1966171168
    %v2637 = vunpack.c.0.s8 %v2636
    %v2638 = vlaneseq
    %v2639 = vshrl.u32 %v2638, 7
    %v2640 = vsub.s32 %v2637, %v2639
    %v2641 = vrot.slane %v2625, %v2640
    %v2643 = vunpack.c.l.s4 1966171168
    %v2644 = vunpack.c.0.s8 %v2643
    %v2645 = vlaneseq
    %v2646 = vshrl.u32 %v2645, 7
    %v2647 = vsub.s32 %v2644, %v2646
    %v2648 = vrot.slane %v2626, %v2647
    %v2650 = vunpack.c.l.s4 1966171168
    %v2651 = vunpack.c.0.s8 %v2650
    %v2652 = vlaneseq
    %v2653 = vshrl.u32 %v2652, 7
    %v2654 = vsub.s32 %v2651, %v2653
    %v2655 = vrot.slane %v2627, %v2654
    %v2656 = vcombine.high %v2634, %v2634
    %v2657 = vcombine.high %v2641, %v2641
    %v2658 = vcombine.high %v2648, %v2648
    %v2659 = vcombine.high %v2655, %v2655
    %v2660 = vld [vmem:[#allocation9 + $0x8] sm:$0xff]
    %v2661 = vld [vmem:[#allocation9 + $0x48] sm:$0xff]
    %v2662 = vlaneseq
    %v2663 = vshrl.u32 %v2662, 7
    %v2664 = vsub.s32 0, %v2663
    %v2665 = vrot.slane %v2634, %v2664
    %v2666 = vlaneseq
    %v2667 = vshrl.u32 %v2666, 7
    %v2668 = vsub.s32 0, %v2667
    %v2669 = vrot.slane %v2648, %v2668
    %v2670 = vlaneseq
    %v2671 = vshrl.u32 %v2670, 7
    %v2672 = vsub.s32 0, %v2671
    %v2673 = vrot.slane %v2656, %v2672
    %v2674 = vlaneseq
    %v2675 = vshrl.u32 %v2674, 7
    %v2676 = vsub.s32 0, %v2675
    %v2677 = vrot.slane %v2658, %v2676
    %v2678 = vlaneseq
    %v2679 = vshrl.u32 %v2678, 7
    %v2680 = vsub.s32 0, %v2679
    %v2681 = vrot.slane %v2641, %v2680
    %v2682 = vlaneseq
    %v2683 = vshrl.u32 %v2682, 7
    %v2684 = vsub.s32 0, %v2683
    %v2685 = vrot.slane %v2655, %v2684
    %v2686 = vlaneseq
    %v2687 = vshrl.u32 %v2686, 7
    %v2688 = vsub.s32 0, %v2687
    %v2689 = vrot.slane %v2657, %v2688
    %v2690 = vlaneseq
    %v2691 = vshrl.u32 %v2690, 7
    %v2692 = vsub.s32 0, %v2691
    %v2693 = vrot.slane %v2659, %v2692
    %v2702 = vsub.f32 %v2665, %v2660
    %v2703 = vsub.f32 %v2665, %v2661
    %v2704 = vsub.f32 %v2669, %v2660
    %v2705 = vsub.f32 %v2669, %v2661
    %v2706 = vsub.f32 %v2673, %v2660
    %v2707 = vsub.f32 %v2673, %v2661
    %v2708 = vsub.f32 %v2677, %v2660
    %v2709 = vsub.f32 %v2677, %v2661
    %v2710 = vsub.f32 %v2681, %v2660
    %v2711 = vsub.f32 %v2681, %v2661
    %v2712 = vsub.f32 %v2685, %v2660
    %v2713 = vsub.f32 %v2685, %v2661
    %v2714 = vsub.f32 %v2689, %v2660
    %v2715 = vsub.f32 %v2689, %v2661
    %v2716 = vsub.f32 %v2693, %v2660
    %v2717 = vsub.f32 %v2693, %v2661
    %v2718 = vmin.f32 %v2593, %v2702
    %v2719 = vmin.f32 %v2594, %v2703
    %v2720 = vmin.f32 %v2595, %v2704
    %v2721 = vmin.f32 %v2596, %v2705
    %v2722 = vmin.f32 %v2597, %v2706
    %v2723 = vmin.f32 %v2598, %v2707
    %v2724 = vmin.f32 %v2599, %v2708
    %v2725 = vmin.f32 %v2600, %v2709
    %v2726 = vmin.f32 %v2601, %v2710
    %v2727 = vmin.f32 %v2602, %v2711
    %v2728 = vmin.f32 %v2603, %v2712
    %v2729 = vmin.f32 %v2604, %v2713
    %v2730 = vmin.f32 %v2605, %v2714
    %v2731 = vmin.f32 %v2606, %v2715
    %v2732 = vmin.f32 %v2607, %v2716
    %v2733 = vmin.f32 %v2608, %v2717
    %v2734 = vld [vmem:[%s98 + $0x10] sm:$0xff]
    %v2736 = vcombine.high %v2734, %v2734
    %v2738 = vunpack.c.l.s4 1966171168
    %v2739 = vunpack.c.0.s8 %v2738
    %v2740 = vlaneseq
    %v2741 = vshrl.u32 %v2740, 7
    %v2742 = vsub.s32 %v2739, %v2741
    %v2743 = vrot.slane %v2734, %v2742
    %v2745 = vunpack.c.l.s4 1966171168
    %v2746 = vunpack.c.0.s8 %v2745
    %v2747 = vlaneseq
    %v2748 = vshrl.u32 %v2747, 7
    %v2749 = vsub.s32 %v2746, %v2748
    %v2750 = vrot.slane %v2736, %v2749
    %v2751 = vcombine.high %v2743, %v2743
    %v2752 = vcombine.high %v2750, %v2750
    %v2754 = vunpack.c.l.s4 1966171168
    %v2755 = vunpack.c.0.s8 %v2754
    %v2756 = vlaneseq
    %v2757 = vshrl.u32 %v2756, 7
    %v2758 = vsub.s32 %v2755, %v2757
    %v2759 = vrot.slane %v2743, %v2758
    %v2761 = vunpack.c.l.s4 1966171168
    %v2762 = vunpack.c.0.s8 %v2761
    %v2763 = vlaneseq
    %v2764 = vshrl.u32 %v2763, 7
    %v2765 = vsub.s32 %v2762, %v2764
    %v2766 = vrot.slane %v2750, %v2765
    %v2768 = vunpack.c.l.s4 1966171168
    %v2769 = vunpack.c.0.s8 %v2768
    %v2770 = vlaneseq
    %v2771 = vshrl.u32 %v2770, 7
    %v2772 = vsub.s32 %v2769, %v2771
    %v2773 = vrot.slane %v2751, %v2772
    %v2775 = vunpack.c.l.s4 1966171168
    %v2776 = vunpack.c.0.s8 %v2775
    %v2777 = vlaneseq
    %v2778 = vshrl.u32 %v2777, 7
    %v2779 = vsub.s32 %v2776, %v2778
    %v2780 = vrot.slane %v2752, %v2779
    %v2781 = vcombine.high %v2759, %v2759
    %v2782 = vcombine.high %v2766, %v2766
    %v2783 = vcombine.high %v2773, %v2773
    %v2784 = vcombine.high %v2780, %v2780
    %v2785 = vld [vmem:[#allocation9 + $0x10] sm:$0xff]
    %v2786 = vld [vmem:[#allocation9 + $0x50] sm:$0xff]
    %v2787 = vlaneseq
    %v2788 = vshrl.u32 %v2787, 7
    %v2789 = vsub.s32 0, %v2788
    %v2790 = vrot.slane %v2759, %v2789
    %v2791 = vlaneseq
    %v2792 = vshrl.u32 %v2791, 7
    %v2793 = vsub.s32 0, %v2792
    %v2794 = vrot.slane %v2773, %v2793
    %v2795 = vlaneseq
    %v2796 = vshrl.u32 %v2795, 7
    %v2797 = vsub.s32 0, %v2796
    %v2798 = vrot.slane %v2781, %v2797
    %v2799 = vlaneseq
    %v2800 = vshrl.u32 %v2799, 7
    %v2801 = vsub.s32 0, %v2800
    %v2802 = vrot.slane %v2783, %v2801
    %v2803 = vlaneseq
    %v2804 = vshrl.u32 %v2803, 7
    %v2805 = vsub.s32 0, %v2804
    %v2806 = vrot.slane %v2766, %v2805
    %v2807 = vlaneseq
    %v2808 = vshrl.u32 %v2807, 7
    %v2809 = vsub.s32 0, %v2808
    %v2810 = vrot.slane %v2780, %v2809
    %v2811 = vlaneseq
    %v2812 = vshrl.u32 %v2811, 7
    %v2813 = vsub.s32 0, %v2812
    %v2814 = vrot.slane %v2782, %v2813
    %v2815 = vlaneseq
    %v2816 = vshrl.u32 %v2815, 7
    %v2817 = vsub.s32 0, %v2816
    %v2818 = vrot.slane %v2784, %v2817
    %v2827 = vsub.f32 %v2790, %v2785
    %v2828 = vsub.f32 %v2790, %v2786
    %v2829 = vsub.f32 %v2794, %v2785
    %v2830 = vsub.f32 %v2794, %v2786
    %v2831 = vsub.f32 %v2798, %v2785
    %v2832 = vsub.f32 %v2798, %v2786
    %v2833 = vsub.f32 %v2802, %v2785
    %v2834 = vsub.f32 %v2802, %v2786
    %v2835 = vsub.f32 %v2806, %v2785
    %v2836 = vsub.f32 %v2806, %v2786
    %v2837 = vsub.f32 %v2810, %v2785
    %v2838 = vsub.f32 %v2810, %v2786
    %v2839 = vsub.f32 %v2814, %v2785
    %v2840 = vsub.f32 %v2814, %v2786
    %v2841 = vsub.f32 %v2818, %v2785
    %v2842 = vsub.f32 %v2818, %v2786
    %v2843 = vmin.f32 %v2718, %v2827
    %v2844 = vmin.f32 %v2719, %v2828
    %v2845 = vmin.f32 %v2720, %v2829
    %v2846 = vmin.f32 %v2721, %v2830
    %v2847 = vmin.f32 %v2722, %v2831
    %v2848 = vmin.f32 %v2723, %v2832
    %v2849 = vmin.f32 %v2724, %v2833
    %v2850 = vmin.f32 %v2725, %v2834
    %v2851 = vmin.f32 %v2726, %v2835
    %v2852 = vmin.f32 %v2727, %v2836
    %v2853 = vmin.f32 %v2728, %v2837
    %v2854 = vmin.f32 %v2729, %v2838
    %v2855 = vmin.f32 %v2730, %v2839
    %v2856 = vmin.f32 %v2731, %v2840
    %v2857 = vmin.f32 %v2732, %v2841
    %v2858 = vmin.f32 %v2733, %v2842
    %v2859 = vld [vmem:[%s98 + $0x18] sm:$0xff]
    %v2861 = vcombine.high %v2859, %v2859
    %v2863 = vunpack.c.l.s4 1966171168
    %v2864 = vunpack.c.0.s8 %v2863
    %v2865 = vlaneseq
    %v2866 = vshrl.u32 %v2865, 7
    %v2867 = vsub.s32 %v2864, %v2866
    %v2868 = vrot.slane %v2859, %v2867
    %v2870 = vunpack.c.l.s4 1966171168
    %v2871 = vunpack.c.0.s8 %v2870
    %v2872 = vlaneseq
    %v2873 = vshrl.u32 %v2872, 7
    %v2874 = vsub.s32 %v2871, %v2873
    %v2875 = vrot.slane %v2861, %v2874
    %v2876 = vcombine.high %v2868, %v2868
    %v2877 = vcombine.high %v2875, %v2875
    %v2879 = vunpack.c.l.s4 1966171168
    %v2880 = vunpack.c.0.s8 %v2879
    %v2881 = vlaneseq
    %v2882 = vshrl.u32 %v2881, 7
    %v2883 = vsub.s32 %v2880, %v2882
    %v2884 = vrot.slane %v2868, %v2883
    %v2886 = vunpack.c.l.s4 1966171168
    %v2887 = vunpack.c.0.s8 %v2886
    %v2888 = vlaneseq
    %v2889 = vshrl.u32 %v2888, 7
    %v2890 = vsub.s32 %v2887, %v2889
    %v2891 = vrot.slane %v2875, %v2890
    %v2893 = vunpack.c.l.s4 1966171168
    %v2894 = vunpack.c.0.s8 %v2893
    %v2895 = vlaneseq
    %v2896 = vshrl.u32 %v2895, 7
    %v2897 = vsub.s32 %v2894, %v2896
    %v2898 = vrot.slane %v2876, %v2897
    %v2900 = vunpack.c.l.s4 1966171168
    %v2901 = vunpack.c.0.s8 %v2900
    %v2902 = vlaneseq
    %v2903 = vshrl.u32 %v2902, 7
    %v2904 = vsub.s32 %v2901, %v2903
    %v2905 = vrot.slane %v2877, %v2904
    %v2906 = vcombine.high %v2884, %v2884
    %v2907 = vcombine.high %v2891, %v2891
    %v2908 = vcombine.high %v2898, %v2898
    %v2909 = vcombine.high %v2905, %v2905
    %v2910 = vld [vmem:[#allocation9 + $0x18] sm:$0xff]
    %v2911 = vld [vmem:[#allocation9 + $0x58] sm:$0xff]
    %v2912 = vlaneseq
    %v2913 = vshrl.u32 %v2912, 7
    %v2914 = vsub.s32 0, %v2913
    %v2915 = vrot.slane %v2884, %v2914
    %v2916 = vlaneseq
    %v2917 = vshrl.u32 %v2916, 7
    %v2918 = vsub.s32 0, %v2917
    %v2919 = vrot.slane %v2898, %v2918
    %v2920 = vlaneseq
    %v2921 = vshrl.u32 %v2920, 7
    %v2922 = vsub.s32 0, %v2921
    %v2923 = vrot.slane %v2906, %v2922
    %v2924 = vlaneseq
    %v2925 = vshrl.u32 %v2924, 7
    %v2926 = vsub.s32 0, %v2925
    %v2927 = vrot.slane %v2908, %v2926
    %v2928 = vlaneseq
    %v2929 = vshrl.u32 %v2928, 7
    %v2930 = vsub.s32 0, %v2929
    %v2931 = vrot.slane %v2891, %v2930
    %v2932 = vlaneseq
    %v2933 = vshrl.u32 %v2932, 7
    %v2934 = vsub.s32 0, %v2933
    %v2935 = vrot.slane %v2905, %v2934
    %v2936 = vlaneseq
    %v2937 = vshrl.u32 %v2936, 7
    %v2938 = vsub.s32 0, %v2937
    %v2939 = vrot.slane %v2907, %v2938
    %v2940 = vlaneseq
    %v2941 = vshrl.u32 %v2940, 7
    %v2942 = vsub.s32 0, %v2941
    %v2943 = vrot.slane %v2909, %v2942
    %v2952 = vsub.f32 %v2915, %v2910
    %v2953 = vsub.f32 %v2915, %v2911
    %v2954 = vsub.f32 %v2919, %v2910
    %v2955 = vsub.f32 %v2919, %v2911
    %v2956 = vsub.f32 %v2923, %v2910
    %v2957 = vsub.f32 %v2923, %v2911
    %v2958 = vsub.f32 %v2927, %v2910
    %v2959 = vsub.f32 %v2927, %v2911
    %v2960 = vsub.f32 %v2931, %v2910
    %v2961 = vsub.f32 %v2931, %v2911
    %v2962 = vsub.f32 %v2935, %v2910
    %v2963 = vsub.f32 %v2935, %v2911
    %v2964 = vsub.f32 %v2939, %v2910
    %v2965 = vsub.f32 %v2939, %v2911
    %v2966 = vsub.f32 %v2943, %v2910
    %v2967 = vsub.f32 %v2943, %v2911
    %v2968 = vmin.f32 %v2843, %v2952
    %v2969 = vmin.f32 %v2844, %v2953
    %v2970 = vmin.f32 %v2845, %v2954
    %v2971 = vmin.f32 %v2846, %v2955
    %v2972 = vmin.f32 %v2847, %v2956
    %v2973 = vmin.f32 %v2848, %v2957
    %v2974 = vmin.f32 %v2849, %v2958
    %v2975 = vmin.f32 %v2850, %v2959
    %v2976 = vmin.f32 %v2851, %v2960
    %v2977 = vmin.f32 %v2852, %v2961
    %v2978 = vmin.f32 %v2853, %v2962
    %v2979 = vmin.f32 %v2854, %v2963
    %v2980 = vmin.f32 %v2855, %v2964
    %v2981 = vmin.f32 %v2856, %v2965
    %v2982 = vmin.f32 %v2857, %v2966
    %v2983 = vmin.f32 %v2858, %v2967
    %v2984 = vld [vmem:[%s98 + $0x20] sm:$0xff]
    %v2986 = vcombine.high %v2984, %v2984
    %v2988 = vunpack.c.l.s4 1966171168
    %v2989 = vunpack.c.0.s8 %v2988
    %v2990 = vlaneseq
    %v2991 = vshrl.u32 %v2990, 7
    %v2992 = vsub.s32 %v2989, %v2991
    %v2993 = vrot.slane %v2984, %v2992
    %v2995 = vunpack.c.l.s4 1966171168
    %v2996 = vunpack.c.0.s8 %v2995
    %v2997 = vlaneseq
    %v2998 = vshrl.u32 %v2997, 7
    %v2999 = vsub.s32 %v2996, %v2998
    %v3000 = vrot.slane %v2986, %v2999
    %v3001 = vcombine.high %v2993, %v2993
    %v3002 = vcombine.high %v3000, %v3000
    %v3004 = vunpack.c.l.s4 1966171168
    %v3005 = vunpack.c.0.s8 %v3004
    %v3006 = vlaneseq
    %v3007 = vshrl.u32 %v3006, 7
    %v3008 = vsub.s32 %v3005, %v3007
    %v3009 = vrot.slane %v2993, %v3008
    %v3011 = vunpack.c.l.s4 1966171168
    %v3012 = vunpack.c.0.s8 %v3011
    %v3013 = vlaneseq
    %v3014 = vshrl.u32 %v3013, 7
    %v3015 = vsub.s32 %v3012, %v3014
    %v3016 = vrot.slane %v3000, %v3015
    %v3018 = vunpack.c.l.s4 1966171168
    %v3019 = vunpack.c.0.s8 %v3018
    %v3020 = vlaneseq
    %v3021 = vshrl.u32 %v3020, 7
    %v3022 = vsub.s32 %v3019, %v3021
    %v3023 = vrot.slane %v3001, %v3022
    %v3025 = vunpack.c.l.s4 1966171168
    %v3026 = vunpack.c.0.s8 %v3025
    %v3027 = vlaneseq
    %v3028 = vshrl.u32 %v3027, 7
    %v3029 = vsub.s32 %v3026, %v3028
    %v3030 = vrot.slane %v3002, %v3029
    %v3031 = vcombine.high %v3009, %v3009
    %v3032 = vcombine.high %v3016, %v3016
    %v3033 = vcombine.high %v3023, %v3023
    %v3034 = vcombine.high %v3030, %v3030
    %v3035 = vld [vmem:[#allocation9 + $0x20] sm:$0xff]
    %v3036 = vld [vmem:[#allocation9 + $0x60] sm:$0xff]
    %v3037 = vlaneseq
    %v3038 = vshrl.u32 %v3037, 7
    %v3039 = vsub.s32 0, %v3038
    %v3040 = vrot.slane %v3009, %v3039
    %v3041 = vlaneseq
    %v3042 = vshrl.u32 %v3041, 7
    %v3043 = vsub.s32 0, %v3042
    %v3044 = vrot.slane %v3023, %v3043
    %v3045 = vlaneseq
    %v3046 = vshrl.u32 %v3045, 7
    %v3047 = vsub.s32 0, %v3046
    %v3048 = vrot.slane %v3031, %v3047
    %v3049 = vlaneseq
    %v3050 = vshrl.u32 %v3049, 7
    %v3051 = vsub.s32 0, %v3050
    %v3052 = vrot.slane %v3033, %v3051
    %v3053 = vlaneseq
    %v3054 = vshrl.u32 %v3053, 7
    %v3055 = vsub.s32 0, %v3054
    %v3056 = vrot.slane %v3016, %v3055
    %v3057 = vlaneseq
    %v3058 = vshrl.u32 %v3057, 7
    %v3059 = vsub.s32 0, %v3058
    %v3060 = vrot.slane %v3030, %v3059
    %v3061 = vlaneseq
    %v3062 = vshrl.u32 %v3061, 7
    %v3063 = vsub.s32 0, %v3062
    %v3064 = vrot.slane %v3032, %v3063
    %v3065 = vlaneseq
    %v3066 = vshrl.u32 %v3065, 7
    %v3067 = vsub.s32 0, %v3066
    %v3068 = vrot.slane %v3034, %v3067
    %v3077 = vsub.f32 %v3040, %v3035
    %v3078 = vsub.f32 %v3040, %v3036
    %v3079 = vsub.f32 %v3044, %v3035
    %v3080 = vsub.f32 %v3044, %v3036
    %v3081 = vsub.f32 %v3048, %v3035
    %v3082 = vsub.f32 %v3048, %v3036
    %v3083 = vsub.f32 %v3052, %v3035
    %v3084 = vsub.f32 %v3052, %v3036
    %v3085 = vsub.f32 %v3056, %v3035
    %v3086 = vsub.f32 %v3056, %v3036
    %v3087 = vsub.f32 %v3060, %v3035
    %v3088 = vsub.f32 %v3060, %v3036
    %v3089 = vsub.f32 %v3064, %v3035
    %v3090 = vsub.f32 %v3064, %v3036
    %v3091 = vsub.f32 %v3068, %v3035
    %v3092 = vsub.f32 %v3068, %v3036
    %v3093 = vmin.f32 %v2968, %v3077
    %v3094 = vmin.f32 %v2969, %v3078
    %v3095 = vmin.f32 %v2970, %v3079
    %v3096 = vmin.f32 %v2971, %v3080
    %v3097 = vmin.f32 %v2972, %v3081
    %v3098 = vmin.f32 %v2973, %v3082
    %v3099 = vmin.f32 %v2974, %v3083
    %v3100 = vmin.f32 %v2975, %v3084
    %v3101 = vmin.f32 %v2976, %v3085
    %v3102 = vmin.f32 %v2977, %v3086
    %v3103 = vmin.f32 %v2978, %v3087
    %v3104 = vmin.f32 %v2979, %v3088
    %v3105 = vmin.f32 %v2980, %v3089
    %v3106 = vmin.f32 %v2981, %v3090
    %v3107 = vmin.f32 %v2982, %v3091
    %v3108 = vmin.f32 %v2983, %v3092
    %v3109 = vld [vmem:[%s98 + $0x28] sm:$0xff]
    %v3111 = vcombine.high %v3109, %v3109
    %v3113 = vunpack.c.l.s4 1966171168
    %v3114 = vunpack.c.0.s8 %v3113
    %v3115 = vlaneseq
    %v3116 = vshrl.u32 %v3115, 7
    %v3117 = vsub.s32 %v3114, %v3116
    %v3118 = vrot.slane %v3109, %v3117
    %v3120 = vunpack.c.l.s4 1966171168
    %v3121 = vunpack.c.0.s8 %v3120
    %v3122 = vlaneseq
    %v3123 = vshrl.u32 %v3122, 7
    %v3124 = vsub.s32 %v3121, %v3123
    %v3125 = vrot.slane %v3111, %v3124
    %v3126 = vcombine.high %v3118, %v3118
    %v3127 = vcombine.high %v3125, %v3125
    %v3129 = vunpack.c.l.s4 1966171168
    %v3130 = vunpack.c.0.s8 %v3129
    %v3131 = vlaneseq
    %v3132 = vshrl.u32 %v3131, 7
    %v3133 = vsub.s32 %v3130, %v3132
    %v3134 = vrot.slane %v3118, %v3133
    %v3136 = vunpack.c.l.s4 1966171168
    %v3137 = vunpack.c.0.s8 %v3136
    %v3138 = vlaneseq
    %v3139 = vshrl.u32 %v3138, 7
    %v3140 = vsub.s32 %v3137, %v3139
    %v3141 = vrot.slane %v3125, %v3140
    %v3143 = vunpack.c.l.s4 1966171168
    %v3144 = vunpack.c.0.s8 %v3143
    %v3145 = vlaneseq
    %v3146 = vshrl.u32 %v3145, 7
    %v3147 = vsub.s32 %v3144, %v3146
    %v3148 = vrot.slane %v3126, %v3147
    %v3150 = vunpack.c.l.s4 1966171168
    %v3151 = vunpack.c.0.s8 %v3150
    %v3152 = vlaneseq
    %v3153 = vshrl.u32 %v3152, 7
    %v3154 = vsub.s32 %v3151, %v3153
    %v3155 = vrot.slane %v3127, %v3154
    %v3156 = vcombine.high %v3134, %v3134
    %v3157 = vcombine.high %v3141, %v3141
    %v3158 = vcombine.high %v3148, %v3148
    %v3159 = vcombine.high %v3155, %v3155
    %v3160 = vld [vmem:[#allocation9 + $0x28] sm:$0xff]
    %v3161 = vld [vmem:[#allocation9 + $0x68] sm:$0xff]
    %v3162 = vlaneseq
    %v3163 = vshrl.u32 %v3162, 7
    %v3164 = vsub.s32 0, %v3163
    %v3165 = vrot.slane %v3134, %v3164
    %v3166 = vlaneseq
    %v3167 = vshrl.u32 %v3166, 7
    %v3168 = vsub.s32 0, %v3167
    %v3169 = vrot.slane %v3148, %v3168
    %v3170 = vlaneseq
    %v3171 = vshrl.u32 %v3170, 7
    %v3172 = vsub.s32 0, %v3171
    %v3173 = vrot.slane %v3156, %v3172
    %v3174 = vlaneseq
    %v3175 = vshrl.u32 %v3174, 7
    %v3176 = vsub.s32 0, %v3175
    %v3177 = vrot.slane %v3158, %v3176
    %v3178 = vlaneseq
    %v3179 = vshrl.u32 %v3178, 7
    %v3180 = vsub.s32 0, %v3179
    %v3181 = vrot.slane %v3141, %v3180
    %v3182 = vlaneseq
    %v3183 = vshrl.u32 %v3182, 7
    %v3184 = vsub.s32 0, %v3183
    %v3185 = vrot.slane %v3155, %v3184
    %v3186 = vlaneseq
    %v3187 = vshrl.u32 %v3186, 7
    %v3188 = vsub.s32 0, %v3187
    %v3189 = vrot.slane %v3157, %v3188
    %v3190 = vlaneseq
    %v3191 = vshrl.u32 %v3190, 7
    %v3192 = vsub.s32 0, %v3191
    %v3193 = vrot.slane %v3159, %v3192
    %v3202 = vsub.f32 %v3165, %v3160
    %v3203 = vsub.f32 %v3165, %v3161
    %v3204 = vsub.f32 %v3169, %v3160
    %v3205 = vsub.f32 %v3169, %v3161
    %v3206 = vsub.f32 %v3173, %v3160
    %v3207 = vsub.f32 %v3173, %v3161
    %v3208 = vsub.f32 %v3177, %v3160
    %v3209 = vsub.f32 %v3177, %v3161
    %v3210 = vsub.f32 %v3181, %v3160
    %v3211 = vsub.f32 %v3181, %v3161
    %v3212 = vsub.f32 %v3185, %v3160
    %v3213 = vsub.f32 %v3185, %v3161
    %v3214 = vsub.f32 %v3189, %v3160
    %v3215 = vsub.f32 %v3189, %v3161
    %v3216 = vsub.f32 %v3193, %v3160
    %v3217 = vsub.f32 %v3193, %v3161
    %v3218 = vmin.f32 %v3093, %v3202
    %v3219 = vmin.f32 %v3094, %v3203
    %v3220 = vmin.f32 %v3095, %v3204
    %v3221 = vmin.f32 %v3096, %v3205
    %v3222 = vmin.f32 %v3097, %v3206
    %v3223 = vmin.f32 %v3098, %v3207
    %v3224 = vmin.f32 %v3099, %v3208
    %v3225 = vmin.f32 %v3100, %v3209
    %v3226 = vmin.f32 %v3101, %v3210
    %v3227 = vmin.f32 %v3102, %v3211
    %v3228 = vmin.f32 %v3103, %v3212
    %v3229 = vmin.f32 %v3104, %v3213
    %v3230 = vmin.f32 %v3105, %v3214
    %v3231 = vmin.f32 %v3106, %v3215
    %v3232 = vmin.f32 %v3107, %v3216
    %v3233 = vmin.f32 %v3108, %v3217
    %v3234 = vld [vmem:[%s98 + $0x30] sm:$0xff]
    %v3236 = vcombine.high %v3234, %v3234
    %v3238 = vunpack.c.l.s4 1966171168
    %v3239 = vunpack.c.0.s8 %v3238
    %v3240 = vlaneseq
    %v3241 = vshrl.u32 %v3240, 7
    %v3242 = vsub.s32 %v3239, %v3241
    %v3243 = vrot.slane %v3234, %v3242
    %v3245 = vunpack.c.l.s4 1966171168
    %v3246 = vunpack.c.0.s8 %v3245
    %v3247 = vlaneseq
    %v3248 = vshrl.u32 %v3247, 7
    %v3249 = vsub.s32 %v3246, %v3248
    %v3250 = vrot.slane %v3236, %v3249
    %v3251 = vcombine.high %v3243, %v3243
    %v3252 = vcombine.high %v3250, %v3250
    %v3254 = vunpack.c.l.s4 1966171168
    %v3255 = vunpack.c.0.s8 %v3254
    %v3256 = vlaneseq
    %v3257 = vshrl.u32 %v3256, 7
    %v3258 = vsub.s32 %v3255, %v3257
    %v3259 = vrot.slane %v3243, %v3258
    %v3261 = vunpack.c.l.s4 1966171168
    %v3262 = vunpack.c.0.s8 %v3261
    %v3263 = vlaneseq
    %v3264 = vshrl.u32 %v3263, 7
    %v3265 = vsub.s32 %v3262, %v3264
    %v3266 = vrot.slane %v3250, %v3265
    %v3268 = vunpack.c.l.s4 1966171168
    %v3269 = vunpack.c.0.s8 %v3268
    %v3270 = vlaneseq
    %v3271 = vshrl.u32 %v3270, 7
    %v3272 = vsub.s32 %v3269, %v3271
    %v3273 = vrot.slane %v3251, %v3272
    %v3275 = vunpack.c.l.s4 1966171168
    %v3276 = vunpack.c.0.s8 %v3275
    %v3277 = vlaneseq
    %v3278 = vshrl.u32 %v3277, 7
    %v3279 = vsub.s32 %v3276, %v3278
    %v3280 = vrot.slane %v3252, %v3279
    %v3281 = vcombine.high %v3259, %v3259
    %v3282 = vcombine.high %v3266, %v3266
    %v3283 = vcombine.high %v3273, %v3273
    %v3284 = vcombine.high %v3280, %v3280
    %v3285 = vld [vmem:[#allocation9 + $0x30] sm:$0xff]
    %v3286 = vld [vmem:[#allocation9 + $0x70] sm:$0xff]
    %v3287 = vlaneseq
    %v3288 = vshrl.u32 %v3287, 7
    %v3289 = vsub.s32 0, %v3288
    %v3290 = vrot.slane %v3259, %v3289
    %v3291 = vlaneseq
    %v3292 = vshrl.u32 %v3291, 7
    %v3293 = vsub.s32 0, %v3292
    %v3294 = vrot.slane %v3273, %v3293
    %v3295 = vlaneseq
    %v3296 = vshrl.u32 %v3295, 7
    %v3297 = vsub.s32 0, %v3296
    %v3298 = vrot.slane %v3281, %v3297
    %v3299 = vlaneseq
    %v3300 = vshrl.u32 %v3299, 7
    %v3301 = vsub.s32 0, %v3300
    %v3302 = vrot.slane %v3283, %v3301
    %v3303 = vlaneseq
    %v3304 = vshrl.u32 %v3303, 7
    %v3305 = vsub.s32 0, %v3304
    %v3306 = vrot.slane %v3266, %v3305
    %v3307 = vlaneseq
    %v3308 = vshrl.u32 %v3307, 7
    %v3309 = vsub.s32 0, %v3308
    %v3310 = vrot.slane %v3280, %v3309
    %v3311 = vlaneseq
    %v3312 = vshrl.u32 %v3311, 7
    %v3313 = vsub.s32 0, %v3312
    %v3314 = vrot.slane %v3282, %v3313
    %v3315 = vlaneseq
    %v3316 = vshrl.u32 %v3315, 7
    %v3317 = vsub.s32 0, %v3316
    %v3318 = vrot.slane %v3284, %v3317
    %v3327 = vsub.f32 %v3290, %v3285
    %v3328 = vsub.f32 %v3290, %v3286
    %v3329 = vsub.f32 %v3294, %v3285
    %v3330 = vsub.f32 %v3294, %v3286
    %v3331 = vsub.f32 %v3298, %v3285
    %v3332 = vsub.f32 %v3298, %v3286
    %v3333 = vsub.f32 %v3302, %v3285
    %v3334 = vsub.f32 %v3302, %v3286
    %v3335 = vsub.f32 %v3306, %v3285
    %v3336 = vsub.f32 %v3306, %v3286
    %v3337 = vsub.f32 %v3310, %v3285
    %v3338 = vsub.f32 %v3310, %v3286
    %v3339 = vsub.f32 %v3314, %v3285
    %v3340 = vsub.f32 %v3314, %v3286
    %v3341 = vsub.f32 %v3318, %v3285
    %v3342 = vsub.f32 %v3318, %v3286
    %v3343 = vmin.f32 %v3218, %v3327
    %v3344 = vmin.f32 %v3219, %v3328
    %v3345 = vmin.f32 %v3220, %v3329
    %v3346 = vmin.f32 %v3221, %v3330
    %v3347 = vmin.f32 %v3222, %v3331
    %v3348 = vmin.f32 %v3223, %v3332
    %v3349 = vmin.f32 %v3224, %v3333
    %v3350 = vmin.f32 %v3225, %v3334
    %v3351 = vmin.f32 %v3226, %v3335
    %v3352 = vmin.f32 %v3227, %v3336
    %v3353 = vmin.f32 %v3228, %v3337
    %v3354 = vmin.f32 %v3229, %v3338
    %v3355 = vmin.f32 %v3230, %v3339
    %v3356 = vmin.f32 %v3231, %v3340
    %v3357 = vmin.f32 %v3232, %v3341
    %v3358 = vmin.f32 %v3233, %v3342
    %v3359 = vld [vmem:[%s98 + $0x38] sm:$0xff]
    %v3361 = vcombine.high %v3359, %v3359
    %v3363 = vunpack.c.l.s4 1966171168
    %v3364 = vunpack.c.0.s8 %v3363
    %v3365 = vlaneseq
    %v3366 = vshrl.u32 %v3365, 7
    %v3367 = vsub.s32 %v3364, %v3366
    %v3368 = vrot.slane %v3359, %v3367
    %v3370 = vunpack.c.l.s4 1966171168
    %v3371 = vunpack.c.0.s8 %v3370
    %v3372 = vlaneseq
    %v3373 = vshrl.u32 %v3372, 7
    %v3374 = vsub.s32 %v3371, %v3373
    %v3375 = vrot.slane %v3361, %v3374
    %v3376 = vcombine.high %v3368, %v3368
    %v3377 = vcombine.high %v3375, %v3375
    %v3379 = vunpack.c.l.s4 1966171168
    %v3380 = vunpack.c.0.s8 %v3379
    %v3381 = vlaneseq
    %v3382 = vshrl.u32 %v3381, 7
    %v3383 = vsub.s32 %v3380, %v3382
    %v3384 = vrot.slane %v3368, %v3383
    %v3386 = vunpack.c.l.s4 1966171168
    %v3387 = vunpack.c.0.s8 %v3386
    %v3388 = vlaneseq
    %v3389 = vshrl.u32 %v3388, 7
    %v3390 = vsub.s32 %v3387, %v3389
    %v3391 = vrot.slane %v3375, %v3390
    %v3393 = vunpack.c.l.s4 1966171168
    %v3394 = vunpack.c.0.s8 %v3393
    %v3395 = vlaneseq
    %v3396 = vshrl.u32 %v3395, 7
    %v3397 = vsub.s32 %v3394, %v3396
    %v3398 = vrot.slane %v3376, %v3397
    %v3400 = vunpack.c.l.s4 1966171168
    %v3401 = vunpack.c.0.s8 %v3400
    %v3402 = vlaneseq
    %v3403 = vshrl.u32 %v3402, 7
    %v3404 = vsub.s32 %v3401, %v3403
    %v3405 = vrot.slane %v3377, %v3404
    %v3406 = vcombine.high %v3384, %v3384
    %v3407 = vcombine.high %v3391, %v3391
    %v3408 = vcombine.high %v3398, %v3398
    %v3409 = vcombine.high %v3405, %v3405
    %v3410 = vld [vmem:[#allocation9 + $0x38] sm:$0xff]
    %v3411 = vld [vmem:[#allocation9 + $0x78] sm:$0xff]
    %v3412 = vlaneseq
    %v3413 = vshrl.u32 %v3412, 7
    %v3414 = vsub.s32 0, %v3413
    %v3415 = vrot.slane %v3384, %v3414
    %v3416 = vlaneseq
    %v3417 = vshrl.u32 %v3416, 7
    %v3418 = vsub.s32 0, %v3417
    %v3419 = vrot.slane %v3398, %v3418
    %v3420 = vlaneseq
    %v3421 = vshrl.u32 %v3420, 7
    %v3422 = vsub.s32 0, %v3421
    %v3423 = vrot.slane %v3406, %v3422
    %v3424 = vlaneseq
    %v3425 = vshrl.u32 %v3424, 7
    %v3426 = vsub.s32 0, %v3425
    %v3427 = vrot.slane %v3408, %v3426
    %v3428 = vlaneseq
    %v3429 = vshrl.u32 %v3428, 7
    %v3430 = vsub.s32 0, %v3429
    %v3431 = vrot.slane %v3391, %v3430
    %v3432 = vlaneseq
    %v3433 = vshrl.u32 %v3432, 7
    %v3434 = vsub.s32 0, %v3433
    %v3435 = vrot.slane %v3405, %v3434
    %v3436 = vlaneseq
    %v3437 = vshrl.u32 %v3436, 7
    %v3438 = vsub.s32 0, %v3437
    %v3439 = vrot.slane %v3407, %v3438
    %v3440 = vlaneseq
    %v3441 = vshrl.u32 %v3440, 7
    %v3442 = vsub.s32 0, %v3441
    %v3443 = vrot.slane %v3409, %v3442
    %v3452 = vsub.f32 %v3415, %v3410
    %v3453 = vsub.f32 %v3415, %v3411
    %v3454 = vsub.f32 %v3419, %v3410
    %v3455 = vsub.f32 %v3419, %v3411
    %v3456 = vsub.f32 %v3423, %v3410
    %v3457 = vsub.f32 %v3423, %v3411
    %v3458 = vsub.f32 %v3427, %v3410
    %v3459 = vsub.f32 %v3427, %v3411
    %v3460 = vsub.f32 %v3431, %v3410
    %v3461 = vsub.f32 %v3431, %v3411
    %v3462 = vsub.f32 %v3435, %v3410
    %v3463 = vsub.f32 %v3435, %v3411
    %v3464 = vsub.f32 %v3439, %v3410
    %v3465 = vsub.f32 %v3439, %v3411
    %v3466 = vsub.f32 %v3443, %v3410
    %v3467 = vsub.f32 %v3443, %v3411
    %v3468 = vmin.f32 %v3343, %v3452
    %v3469 = vmin.f32 %v3344, %v3453
    %v3470 = vmin.f32 %v3345, %v3454
    %v3471 = vmin.f32 %v3346, %v3455
    %v3472 = vmin.f32 %v3347, %v3456
    %v3473 = vmin.f32 %v3348, %v3457
    %v3474 = vmin.f32 %v3349, %v3458
    %v3475 = vmin.f32 %v3350, %v3459
    %v3476 = vmin.f32 %v3351, %v3460
    %v3477 = vmin.f32 %v3352, %v3461
    %v3478 = vmin.f32 %v3353, %v3462
    %v3479 = vmin.f32 %v3354, %v3463
    %v3480 = vmin.f32 %v3355, %v3464
    %v3481 = vmin.f32 %v3356, %v3465
    %v3482 = vmin.f32 %v3357, %v3466
    %v3483 = vmin.f32 %v3358, %v3467
    %3484 = vmin.xlane.f32.xlu0 %v3468
    %v3485 = vpop.xlane.xlu0 %3484
    %3486 = vmin.xlane.f32.xlu0 %v3469
    %v3487 = vpop.xlane.xlu0 %3486
    %3488 = vmin.xlane.f32.xlu0 %v3470
    %v3489 = vpop.xlane.xlu0 %3488
    %3490 = vmin.xlane.f32.xlu0 %v3471
    %v3491 = vpop.xlane.xlu0 %3490
    %3492 = vmin.xlane.f32.xlu0 %v3472
    %v3493 = vpop.xlane.xlu0 %3492
    %3494 = vmin.xlane.f32.xlu0 %v3473
    %v3495 = vpop.xlane.xlu0 %3494
    %3496 = vmin.xlane.f32.xlu0 %v3474
    %v3497 = vpop.xlane.xlu0 %3496
    %3498 = vmin.xlane.f32.xlu0 %v3475
    %v3499 = vpop.xlane.xlu0 %3498
    %3500 = vmin.xlane.f32.xlu0 %v3476
    %v3501 = vpop.xlane.xlu0 %3500
    %3502 = vmin.xlane.f32.xlu0 %v3477
    %v3503 = vpop.xlane.xlu0 %3502
    %3504 = vmin.xlane.f32.xlu0 %v3478
    %v3505 = vpop.xlane.xlu0 %3504
    %3506 = vmin.xlane.f32.xlu0 %v3479
    %v3507 = vpop.xlane.xlu0 %3506
    %3508 = vmin.xlane.f32.xlu0 %v3480
    %v3509 = vpop.xlane.xlu0 %3508
    %3510 = vmin.xlane.f32.xlu0 %v3481
    %v3511 = vpop.xlane.xlu0 %3510
    %3512 = vmin.xlane.f32.xlu0 %v3482
    %v3513 = vpop.xlane.xlu0 %3512
    %3514 = vmin.xlane.f32.xlu0 %v3483
    %v3515 = vpop.xlane.xlu0 %3514
    %v3516 = vld [vmem:[%s4] sm:$0x1]
    %v3517 = vsub.f32 0.0, %v3516
    %v3519 = vlaneseq
    %v3520 = vshrl.u32 %v3519, 7
    %v3521 = vsub.s32 0, %v3520
    %v3522 = vrot.slane %v3517, %v3521
    %3524 = vbcast.lane.b32.xlu0 %v3522, 256
    %v3525 = vpop.permute.xlu0 %3524
    %s3527 = sor.u32 256, 8
    %3528 = vbcast.lane.b32.xlu0 %v3522, %s3527
    %v3529 = vpop.permute.xlu0 %3528
    %v3532 = vmin.f32 %v3485, %v3525
    %v3533 = vmin.f32 %v3487, %v3529
    %v3534 = vmin.f32 %v3489, %v3525
    %v3535 = vmin.f32 %v3491, %v3529
    %v3536 = vmin.f32 %v3493, %v3525
    %v3537 = vmin.f32 %v3495, %v3529
    %v3538 = vmin.f32 %v3497, %v3525
    %v3539 = vmin.f32 %v3499, %v3529
    %v3540 = vmin.f32 %v3501, %v3525
    %v3541 = vmin.f32 %v3503, %v3529
    %v3542 = vmin.f32 %v3505, %v3525
    %v3543 = vmin.f32 %v3507, %v3529
    %v3544 = vmin.f32 %v3509, %v3525
    %v3545 = vmin.f32 %v3511, %v3529
    %v3546 = vmin.f32 %v3513, %v3525
    %v3547 = vmin.f32 %v3515, %v3529
    %3564 = vset.pattern.permute.xlu0 0
    %3565 = vperm.xlu0 %3564, %v3532
    %v3566 = vpop.permute.xlu0 %3565
    %3567 = vset.pattern.permute.xlu0 0
    %3568 = vperm.xlu0 %3567, %v3533
    %v3569 = vpop.permute.xlu0 %3568
    %3570 = vset.pattern.permute.xlu0 0
    %3571 = vperm.xlu0 %3570, %v3534
    %v3572 = vpop.permute.xlu0 %3571
    %3573 = vset.pattern.permute.xlu0 0
    %3574 = vperm.xlu0 %3573, %v3535
    %v3575 = vpop.permute.xlu0 %3574
    %3576 = vset.pattern.permute.xlu0 0
    %3577 = vperm.xlu0 %3576, %v3536
    %v3578 = vpop.permute.xlu0 %3577
    %3579 = vset.pattern.permute.xlu0 0
    %3580 = vperm.xlu0 %3579, %v3537
    %v3581 = vpop.permute.xlu0 %3580
    %3582 = vset.pattern.permute.xlu0 0
    %3583 = vperm.xlu0 %3582, %v3538
    %v3584 = vpop.permute.xlu0 %3583
    %3585 = vset.pattern.permute.xlu0 0
    %3586 = vperm.xlu0 %3585, %v3539
    %v3587 = vpop.permute.xlu0 %3586
    %3588 = vset.pattern.permute.xlu0 0
    %3589 = vperm.xlu0 %3588, %v3540
    %v3590 = vpop.permute.xlu0 %3589
    %3591 = vset.pattern.permute.xlu0 0
    %3592 = vperm.xlu0 %3591, %v3541
    %v3593 = vpop.permute.xlu0 %3592
    %3594 = vset.pattern.permute.xlu0 0
    %3595 = vperm.xlu0 %3594, %v3542
    %v3596 = vpop.permute.xlu0 %3595
    %3597 = vset.pattern.permute.xlu0 0
    %3598 = vperm.xlu0 %3597, %v3543
    %v3599 = vpop.permute.xlu0 %3598
    %3600 = vset.pattern.permute.xlu0 0
    %3601 = vperm.xlu0 %3600, %v3544
    %v3602 = vpop.permute.xlu0 %3601
    %3603 = vset.pattern.permute.xlu0 0
    %3604 = vperm.xlu0 %3603, %v3545
    %v3605 = vpop.permute.xlu0 %3604
    %3606 = vset.pattern.permute.xlu0 0
    %3607 = vperm.xlu0 %3606, %v3546
    %v3608 = vpop.permute.xlu0 %3607
    %3609 = vset.pattern.permute.xlu0 0
    %3610 = vperm.xlu0 %3609, %v3547
    %v3611 = vpop.permute.xlu0 %3610
    %v3612 = vlaneseq
    %v3613 = vshrl.u32 %v3612, 7
    %v3614 = vsub.s32 %v1211, %v3613
    %v3615 = vrot.slane %v3566, %v3614
    %v3616 = vlaneseq
    %v3617 = vshrl.u32 %v3616, 7
    %v3618 = vsub.s32 %v1216, %v3617
    %v3619 = vrot.slane %v3569, %v3618
    %v3620 = vsel %vm1221, %v3619, %v3615
    %v3621 = vlaneseq
    %v3622 = vshrl.u32 %v3621, 7
    %v3623 = vsub.s32 %v1211, %v3622
    %v3624 = vrot.slane %v3572, %v3623
    %v3625 = vlaneseq
    %v3626 = vshrl.u32 %v3625, 7
    %v3627 = vsub.s32 %v1216, %v3626
    %v3628 = vrot.slane %v3575, %v3627
    %v3629 = vsel %vm1221, %v3628, %v3624
    %v3630 = vlaneseq
    %v3631 = vshrl.u32 %v3630, 7
    %v3632 = vsub.s32 %v1211, %v3631
    %v3633 = vrot.slane %v3578, %v3632
    %v3634 = vlaneseq
    %v3635 = vshrl.u32 %v3634, 7
    %v3636 = vsub.s32 %v1216, %v3635
    %v3637 = vrot.slane %v3581, %v3636
    %v3638 = vsel %vm1221, %v3637, %v3633
    %v3639 = vlaneseq
    %v3640 = vshrl.u32 %v3639, 7
    %v3641 = vsub.s32 %v1211, %v3640
    %v3642 = vrot.slane %v3584, %v3641
    %v3643 = vlaneseq
    %v3644 = vshrl.u32 %v3643, 7
    %v3645 = vsub.s32 %v1216, %v3644
    %v3646 = vrot.slane %v3587, %v3645
    %v3647 = vsel %vm1221, %v3646, %v3642
    %v3648 = vlaneseq
    %v3649 = vshrl.u32 %v3648, 7
    %v3650 = vsub.s32 %v1211, %v3649
    %v3651 = vrot.slane %v3590, %v3650
    %v3652 = vlaneseq
    %v3653 = vshrl.u32 %v3652, 7
    %v3654 = vsub.s32 %v1216, %v3653
    %v3655 = vrot.slane %v3593, %v3654
    %v3656 = vsel %vm1221, %v3655, %v3651
    %v3657 = vlaneseq
    %v3658 = vshrl.u32 %v3657, 7
    %v3659 = vsub.s32 %v1211, %v3658
    %v3660 = vrot.slane %v3596, %v3659
    %v3661 = vlaneseq
    %v3662 = vshrl.u32 %v3661, 7
    %v3663 = vsub.s32 %v1216, %v3662
    %v3664 = vrot.slane %v3599, %v3663
    %v3665 = vsel %vm1221, %v3664, %v3660
    %v3666 = vlaneseq
    %v3667 = vshrl.u32 %v3666, 7
    %v3668 = vsub.s32 %v1211, %v3667
    %v3669 = vrot.slane %v3602, %v3668
    %v3670 = vlaneseq
    %v3671 = vshrl.u32 %v3670, 7
    %v3672 = vsub.s32 %v1216, %v3671
    %v3673 = vrot.slane %v3605, %v3672
    %v3674 = vsel %vm1221, %v3673, %v3669
    %v3675 = vlaneseq
    %v3676 = vshrl.u32 %v3675, 7
    %v3677 = vsub.s32 %v1211, %v3676
    %v3678 = vrot.slane %v3608, %v3677
    %v3679 = vlaneseq
    %v3680 = vshrl.u32 %v3679, 7
    %v3681 = vsub.s32 %v1216, %v3680
    %v3682 = vrot.slane %v3611, %v3681
    %v3683 = vsel %vm1221, %v3682, %v3678
    %v3684 = vsel %vm1286, %v3629, %v3620
    %v3685 = vsel %vm1288, %v3638, %v3684
    %v3686 = vsel %vm1290, %v3647, %v3685
    %v3687 = vsel %vm1292, %v3656, %v3686
    %v3688 = vsel %vm1294, %v3665, %v3687
    %v3689 = vsel %vm1296, %v3674, %v3688
    %v3690 = vsel %vm1298, %v3683, %v3689
    %3692 = vst.msk [vmem:[#allocation3] sm:$0xff] %vm1301, %v3690
    %v3693 = vld [vmem:[%s98] sm:$0xff]
    %v3695 = vcombine.high %v3693, %v3693
    %v3697 = vunpack.c.l.s4 1966171168
    %v3698 = vunpack.c.0.s8 %v3697
    %v3699 = vlaneseq
    %v3700 = vshrl.u32 %v3699, 7
    %v3701 = vsub.s32 %v3698, %v3700
    %v3702 = vrot.slane %v3693, %v3701
    %v3704 = vunpack.c.l.s4 1966171168
    %v3705 = vunpack.c.0.s8 %v3704
    %v3706 = vlaneseq
    %v3707 = vshrl.u32 %v3706, 7
    %v3708 = vsub.s32 %v3705, %v3707
    %v3709 = vrot.slane %v3695, %v3708
    %v3710 = vcombine.high %v3702, %v3702
    %v3711 = vcombine.high %v3709, %v3709
    %v3713 = vunpack.c.l.s4 1966171168
    %v3714 = vunpack.c.0.s8 %v3713
    %v3715 = vlaneseq
    %v3716 = vshrl.u32 %v3715, 7
    %v3717 = vsub.s32 %v3714, %v3716
    %v3718 = vrot.slane %v3702, %v3717
    %v3720 = vunpack.c.l.s4 1966171168
    %v3721 = vunpack.c.0.s8 %v3720
    %v3722 = vlaneseq
    %v3723 = vshrl.u32 %v3722, 7
    %v3724 = vsub.s32 %v3721, %v3723
    %v3725 = vrot.slane %v3709, %v3724
    %v3727 = vunpack.c.l.s4 1966171168
    %v3728 = vunpack.c.0.s8 %v3727
    %v3729 = vlaneseq
    %v3730 = vshrl.u32 %v3729, 7
    %v3731 = vsub.s32 %v3728, %v3730
    %v3732 = vrot.slane %v3710, %v3731
    %v3734 = vunpack.c.l.s4 1966171168
    %v3735 = vunpack.c.0.s8 %v3734
    %v3736 = vlaneseq
    %v3737 = vshrl.u32 %v3736, 7
    %v3738 = vsub.s32 %v3735, %v3737
    %v3739 = vrot.slane %v3711, %v3738
    %v3740 = vcombine.high %v3718, %v3718
    %v3741 = vcombine.high %v3725, %v3725
    %v3742 = vcombine.high %v3732, %v3732
    %v3743 = vcombine.high %v3739, %v3739
    %v3744 = vld [vmem:[#allocation9 + $0x80] sm:$0xff]
    %v3745 = vld [vmem:[#allocation9 + $0xc0] sm:$0xff]
    %v3746 = vlaneseq
    %v3747 = vshrl.u32 %v3746, 7
    %v3748 = vsub.s32 0, %v3747
    %v3749 = vrot.slane %v3718, %v3748
    %v3750 = vlaneseq
    %v3751 = vshrl.u32 %v3750, 7
    %v3752 = vsub.s32 0, %v3751
    %v3753 = vrot.slane %v3732, %v3752
    %v3754 = vlaneseq
    %v3755 = vshrl.u32 %v3754, 7
    %v3756 = vsub.s32 0, %v3755
    %v3757 = vrot.slane %v3740, %v3756
    %v3758 = vlaneseq
    %v3759 = vshrl.u32 %v3758, 7
    %v3760 = vsub.s32 0, %v3759
    %v3761 = vrot.slane %v3742, %v3760
    %v3762 = vlaneseq
    %v3763 = vshrl.u32 %v3762, 7
    %v3764 = vsub.s32 0, %v3763
    %v3765 = vrot.slane %v3725, %v3764
    %v3766 = vlaneseq
    %v3767 = vshrl.u32 %v3766, 7
    %v3768 = vsub.s32 0, %v3767
    %v3769 = vrot.slane %v3739, %v3768
    %v3770 = vlaneseq
    %v3771 = vshrl.u32 %v3770, 7
    %v3772 = vsub.s32 0, %v3771
    %v3773 = vrot.slane %v3741, %v3772
    %v3774 = vlaneseq
    %v3775 = vshrl.u32 %v3774, 7
    %v3776 = vsub.s32 0, %v3775
    %v3777 = vrot.slane %v3743, %v3776
    %v3786 = vsub.f32 %v3749, %v3744
    %v3787 = vsub.f32 %v3749, %v3745
    %v3788 = vsub.f32 %v3753, %v3744
    %v3789 = vsub.f32 %v3753, %v3745
    %v3790 = vsub.f32 %v3757, %v3744
    %v3791 = vsub.f32 %v3757, %v3745
    %v3792 = vsub.f32 %v3761, %v3744
    %v3793 = vsub.f32 %v3761, %v3745
    %v3794 = vsub.f32 %v3765, %v3744
    %v3795 = vsub.f32 %v3765, %v3745
    %v3796 = vsub.f32 %v3769, %v3744
    %v3797 = vsub.f32 %v3769, %v3745
    %v3798 = vsub.f32 %v3773, %v3744
    %v3799 = vsub.f32 %v3773, %v3745
    %v3800 = vsub.f32 %v3777, %v3744
    %v3801 = vsub.f32 %v3777, %v3745
    %v3802 = vld [vmem:[%s98 + $0x8] sm:$0xff]
    %v3804 = vcombine.high %v3802, %v3802
    %v3806 = vunpack.c.l.s4 1966171168
    %v3807 = vunpack.c.0.s8 %v3806
    %v3808 = vlaneseq
    %v3809 = vshrl.u32 %v3808, 7
    %v3810 = vsub.s32 %v3807, %v3809
    %v3811 = vrot.slane %v3802, %v3810
    %v3813 = vunpack.c.l.s4 1966171168
    %v3814 = vunpack.c.0.s8 %v3813
    %v3815 = vlaneseq
    %v3816 = vshrl.u32 %v3815, 7
    %v3817 = vsub.s32 %v3814, %v3816
    %v3818 = vrot.slane %v3804, %v3817
    %v3819 = vcombine.high %v3811, %v3811
    %v3820 = vcombine.high %v3818, %v3818
    %v3822 = vunpack.c.l.s4 1966171168
    %v3823 = vunpack.c.0.s8 %v3822
    %v3824 = vlaneseq
    %v3825 = vshrl.u32 %v3824, 7
    %v3826 = vsub.s32 %v3823, %v3825
    %v3827 = vrot.slane %v3811, %v3826
    %v3829 = vunpack.c.l.s4 1966171168
    %v3830 = vunpack.c.0.s8 %v3829
    %v3831 = vlaneseq
    %v3832 = vshrl.u32 %v3831, 7
    %v3833 = vsub.s32 %v3830, %v3832
    %v3834 = vrot.slane %v3818, %v3833
    %v3836 = vunpack.c.l.s4 1966171168
    %v3837 = vunpack.c.0.s8 %v3836
    %v3838 = vlaneseq
    %v3839 = vshrl.u32 %v3838, 7
    %v3840 = vsub.s32 %v3837, %v3839
    %v3841 = vrot.slane %v3819, %v3840
    %v3843 = vunpack.c.l.s4 1966171168
    %v3844 = vunpack.c.0.s8 %v3843
    %v3845 = vlaneseq
    %v3846 = vshrl.u32 %v3845, 7
    %v3847 = vsub.s32 %v3844, %v3846
    %v3848 = vrot.slane %v3820, %v3847
    %v3849 = vcombine.high %v3827, %v3827
    %v3850 = vcombine.high %v3834, %v3834
    %v3851 = vcombine.high %v3841, %v3841
    %v3852 = vcombine.high %v3848, %v3848
    %v3853 = vld [vmem:[#allocation9 + $0x88] sm:$0xff]
    %v3854 = vld [vmem:[#allocation9 + $0xc8] sm:$0xff]
    %v3855 = vlaneseq
    %v3856 = vshrl.u32 %v3855, 7
    %v3857 = vsub.s32 0, %v3856
    %v3858 = vrot.slane %v3827, %v3857
    %v3859 = vlaneseq
    %v3860 = vshrl.u32 %v3859, 7
    %v3861 = vsub.s32 0, %v3860
    %v3862 = vrot.slane %v3841, %v3861
    %v3863 = vlaneseq
    %v3864 = vshrl.u32 %v3863, 7
    %v3865 = vsub.s32 0, %v3864
    %v3866 = vrot.slane %v3849, %v3865
    %v3867 = vlaneseq
    %v3868 = vshrl.u32 %v3867, 7
    %v3869 = vsub.s32 0, %v3868
    %v3870 = vrot.slane %v3851, %v3869
    %v3871 = vlaneseq
    %v3872 = vshrl.u32 %v3871, 7
    %v3873 = vsub.s32 0, %v3872
    %v3874 = vrot.slane %v3834, %v3873
    %v3875 = vlaneseq
    %v3876 = vshrl.u32 %v3875, 7
    %v3877 = vsub.s32 0, %v3876
    %v3878 = vrot.slane %v3848, %v3877
    %v3879 = vlaneseq
    %v3880 = vshrl.u32 %v3879, 7
    %v3881 = vsub.s32 0, %v3880
    %v3882 = vrot.slane %v3850, %v3881
    %v3883 = vlaneseq
    %v3884 = vshrl.u32 %v3883, 7
    %v3885 = vsub.s32 0, %v3884
    %v3886 = vrot.slane %v3852, %v3885
    %v3895 = vsub.f32 %v3858, %v3853
    %v3896 = vsub.f32 %v3858, %v3854
    %v3897 = vsub.f32 %v3862, %v3853
    %v3898 = vsub.f32 %v3862, %v3854
    %v3899 = vsub.f32 %v3866, %v3853
    %v3900 = vsub.f32 %v3866, %v3854
    %v3901 = vsub.f32 %v3870, %v3853
    %v3902 = vsub.f32 %v3870, %v3854
    %v3903 = vsub.f32 %v3874, %v3853
    %v3904 = vsub.f32 %v3874, %v3854
    %v3905 = vsub.f32 %v3878, %v3853
    %v3906 = vsub.f32 %v3878, %v3854
    %v3907 = vsub.f32 %v3882, %v3853
    %v3908 = vsub.f32 %v3882, %v3854
    %v3909 = vsub.f32 %v3886, %v3853
    %v3910 = vsub.f32 %v3886, %v3854
    %v3911 = vmin.f32 %v3786, %v3895
    %v3912 = vmin.f32 %v3787, %v3896
    %v3913 = vmin.f32 %v3788, %v3897
    %v3914 = vmin.f32 %v3789, %v3898
    %v3915 = vmin.f32 %v3790, %v3899
    %v3916 = vmin.f32 %v3791, %v3900
    %v3917 = vmin.f32 %v3792, %v3901
    %v3918 = vmin.f32 %v3793, %v3902
    %v3919 = vmin.f32 %v3794, %v3903
    %v3920 = vmin.f32 %v3795, %v3904
    %v3921 = vmin.f32 %v3796, %v3905
    %v3922 = vmin.f32 %v3797, %v3906
    %v3923 = vmin.f32 %v3798, %v3907
    %v3924 = vmin.f32 %v3799, %v3908
    %v3925 = vmin.f32 %v3800, %v3909
    %v3926 = vmin.f32 %v3801, %v3910
    %v3927 = vld [vmem:[%s98 + $0x10] sm:$0xff]
    %v3929 = vcombine.high %v3927, %v3927
    %v3931 = vunpack.c.l.s4 1966171168
    %v3932 = vunpack.c.0.s8 %v3931
    %v3933 = vlaneseq
    %v3934 = vshrl.u32 %v3933, 7
    %v3935 = vsub.s32 %v3932, %v3934
    %v3936 = vrot.slane %v3927, %v3935
    %v3938 = vunpack.c.l.s4 1966171168
    %v3939 = vunpack.c.0.s8 %v3938
    %v3940 = vlaneseq
    %v3941 = vshrl.u32 %v3940, 7
    %v3942 = vsub.s32 %v3939, %v3941
    %v3943 = vrot.slane %v3929, %v3942
    %v3944 = vcombine.high %v3936, %v3936
    %v3945 = vcombine.high %v3943, %v3943
    %v3947 = vunpack.c.l.s4 1966171168
    %v3948 = vunpack.c.0.s8 %v3947
    %v3949 = vlaneseq
    %v3950 = vshrl.u32 %v3949, 7
    %v3951 = vsub.s32 %v3948, %v3950
    %v3952 = vrot.slane %v3936, %v3951
    %v3954 = vunpack.c.l.s4 1966171168
    %v3955 = vunpack.c.0.s8 %v3954
    %v3956 = vlaneseq
    %v3957 = vshrl.u32 %v3956, 7
    %v3958 = vsub.s32 %v3955, %v3957
    %v3959 = vrot.slane %v3943, %v3958
    %v3961 = vunpack.c.l.s4 1966171168
    %v3962 = vunpack.c.0.s8 %v3961
    %v3963 = vlaneseq
    %v3964 = vshrl.u32 %v3963, 7
    %v3965 = vsub.s32 %v3962, %v3964
    %v3966 = vrot.slane %v3944, %v3965
    %v3968 = vunpack.c.l.s4 1966171168
    %v3969 = vunpack.c.0.s8 %v3968
    %v3970 = vlaneseq
    %v3971 = vshrl.u32 %v3970, 7
    %v3972 = vsub.s32 %v3969, %v3971
    %v3973 = vrot.slane %v3945, %v3972
    %v3974 = vcombine.high %v3952, %v3952
    %v3975 = vcombine.high %v3959, %v3959
    %v3976 = vcombine.high %v3966, %v3966
    %v3977 = vcombine.high %v3973, %v3973
    %v3978 = vld [vmem:[#allocation9 + $0x90] sm:$0xff]
    %v3979 = vld [vmem:[#allocation9 + $0xd0] sm:$0xff]
    %v3980 = vlaneseq
    %v3981 = vshrl.u32 %v3980, 7
    %v3982 = vsub.s32 0, %v3981
    %v3983 = vrot.slane %v3952, %v3982
    %v3984 = vlaneseq
    %v3985 = vshrl.u32 %v3984, 7
    %v3986 = vsub.s32 0, %v3985
    %v3987 = vrot.slane %v3966, %v3986
    %v3988 = vlaneseq
    %v3989 = vshrl.u32 %v3988, 7
    %v3990 = vsub.s32 0, %v3989
    %v3991 = vrot.slane %v3974, %v3990
    %v3992 = vlaneseq
    %v3993 = vshrl.u32 %v3992, 7
    %v3994 = vsub.s32 0, %v3993
    %v3995 = vrot.slane %v3976, %v3994
    %v3996 = vlaneseq
    %v3997 = vshrl.u32 %v3996, 7
    %v3998 = vsub.s32 0, %v3997
    %v3999 = vrot.slane %v3959, %v3998
    %v4000 = vlaneseq
    %v4001 = vshrl.u32 %v4000, 7
    %v4002 = vsub.s32 0, %v4001
    %v4003 = vrot.slane %v3973, %v4002
    %v4004 = vlaneseq
    %v4005 = vshrl.u32 %v4004, 7
    %v4006 = vsub.s32 0, %v4005
    %v4007 = vrot.slane %v3975, %v4006
    %v4008 = vlaneseq
    %v4009 = vshrl.u32 %v4008, 7
    %v4010 = vsub.s32 0, %v4009
    %v4011 = vrot.slane %v3977, %v4010
    %v4020 = vsub.f32 %v3983, %v3978
    %v4021 = vsub.f32 %v3983, %v3979
    %v4022 = vsub.f32 %v3987, %v3978
    %v4023 = vsub.f32 %v3987, %v3979
    %v4024 = vsub.f32 %v3991, %v3978
    %v4025 = vsub.f32 %v3991, %v3979
    %v4026 = vsub.f32 %v3995, %v3978
    %v4027 = vsub.f32 %v3995, %v3979
    %v4028 = vsub.f32 %v3999, %v3978
    %v4029 = vsub.f32 %v3999, %v3979
    %v4030 = vsub.f32 %v4003, %v3978
    %v4031 = vsub.f32 %v4003, %v3979
    %v4032 = vsub.f32 %v4007, %v3978
    %v4033 = vsub.f32 %v4007, %v3979
    %v4034 = vsub.f32 %v4011, %v3978
    %v4035 = vsub.f32 %v4011, %v3979
    %v4036 = vmin.f32 %v3911, %v4020
    %v4037 = vmin.f32 %v3912, %v4021
    %v4038 = vmin.f32 %v3913, %v4022
    %v4039 = vmin.f32 %v3914, %v4023
    %v4040 = vmin.f32 %v3915, %v4024
    %v4041 = vmin.f32 %v3916, %v4025
    %v4042 = vmin.f32 %v3917, %v4026
    %v4043 = vmin.f32 %v3918, %v4027
    %v4044 = vmin.f32 %v3919, %v4028
    %v4045 = vmin.f32 %v3920, %v4029
    %v4046 = vmin.f32 %v3921, %v4030
    %v4047 = vmin.f32 %v3922, %v4031
    %v4048 = vmin.f32 %v3923, %v4032
    %v4049 = vmin.f32 %v3924, %v4033
    %v4050 = vmin.f32 %v3925, %v4034
    %v4051 = vmin.f32 %v3926, %v4035
    %v4052 = vld [vmem:[%s98 + $0x18] sm:$0xff]
    %v4054 = vcombine.high %v4052, %v4052
    %v4056 = vunpack.c.l.s4 1966171168
    %v4057 = vunpack.c.0.s8 %v4056
    %v4058 = vlaneseq
    %v4059 = vshrl.u32 %v4058, 7
    %v4060 = vsub.s32 %v4057, %v4059
    %v4061 = vrot.slane %v4052, %v4060
    %v4063 = vunpack.c.l.s4 1966171168
    %v4064 = vunpack.c.0.s8 %v4063
    %v4065 = vlaneseq
    %v4066 = vshrl.u32 %v4065, 7
    %v4067 = vsub.s32 %v4064, %v4066
    %v4068 = vrot.slane %v4054, %v4067
    %v4069 = vcombine.high %v4061, %v4061
    %v4070 = vcombine.high %v4068, %v4068
    %v4072 = vunpack.c.l.s4 1966171168
    %v4073 = vunpack.c.0.s8 %v4072
    %v4074 = vlaneseq
    %v4075 = vshrl.u32 %v4074, 7
    %v4076 = vsub.s32 %v4073, %v4075
    %v4077 = vrot.slane %v4061, %v4076
    %v4079 = vunpack.c.l.s4 1966171168
    %v4080 = vunpack.c.0.s8 %v4079
    %v4081 = vlaneseq
    %v4082 = vshrl.u32 %v4081, 7
    %v4083 = vsub.s32 %v4080, %v4082
    %v4084 = vrot.slane %v4068, %v4083
    %v4086 = vunpack.c.l.s4 1966171168
    %v4087 = vunpack.c.0.s8 %v4086
    %v4088 = vlaneseq
    %v4089 = vshrl.u32 %v4088, 7
    %v4090 = vsub.s32 %v4087, %v4089
    %v4091 = vrot.slane %v4069, %v4090
    %v4093 = vunpack.c.l.s4 1966171168
    %v4094 = vunpack.c.0.s8 %v4093
    %v4095 = vlaneseq
    %v4096 = vshrl.u32 %v4095, 7
    %v4097 = vsub.s32 %v4094, %v4096
    %v4098 = vrot.slane %v4070, %v4097
    %v4099 = vcombine.high %v4077, %v4077
    %v4100 = vcombine.high %v4084, %v4084
    %v4101 = vcombine.high %v4091, %v4091
    %v4102 = vcombine.high %v4098, %v4098
    %v4103 = vld [vmem:[#allocation9 + $0x98] sm:$0xff]
    %v4104 = vld [vmem:[#allocation9 + $0xd8] sm:$0xff]
    %v4105 = vlaneseq
    %v4106 = vshrl.u32 %v4105, 7
    %v4107 = vsub.s32 0, %v4106
    %v4108 = vrot.slane %v4077, %v4107
    %v4109 = vlaneseq
    %v4110 = vshrl.u32 %v4109, 7
    %v4111 = vsub.s32 0, %v4110
    %v4112 = vrot.slane %v4091, %v4111
    %v4113 = vlaneseq
    %v4114 = vshrl.u32 %v4113, 7
    %v4115 = vsub.s32 0, %v4114
    %v4116 = vrot.slane %v4099, %v4115
    %v4117 = vlaneseq
    %v4118 = vshrl.u32 %v4117, 7
    %v4119 = vsub.s32 0, %v4118
    %v4120 = vrot.slane %v4101, %v4119
    %v4121 = vlaneseq
    %v4122 = vshrl.u32 %v4121, 7
    %v4123 = vsub.s32 0, %v4122
    %v4124 = vrot.slane %v4084, %v4123
    %v4125 = vlaneseq
    %v4126 = vshrl.u32 %v4125, 7
    %v4127 = vsub.s32 0, %v4126
    %v4128 = vrot.slane %v4098, %v4127
    %v4129 = vlaneseq
    %v4130 = vshrl.u32 %v4129, 7
    %v4131 = vsub.s32 0, %v4130
    %v4132 = vrot.slane %v4100, %v4131
    %v4133 = vlaneseq
    %v4134 = vshrl.u32 %v4133, 7
    %v4135 = vsub.s32 0, %v4134
    %v4136 = vrot.slane %v4102, %v4135
    %v4145 = vsub.f32 %v4108, %v4103
    %v4146 = vsub.f32 %v4108, %v4104
    %v4147 = vsub.f32 %v4112, %v4103
    %v4148 = vsub.f32 %v4112, %v4104
    %v4149 = vsub.f32 %v4116, %v4103
    %v4150 = vsub.f32 %v4116, %v4104
    %v4151 = vsub.f32 %v4120, %v4103
    %v4152 = vsub.f32 %v4120, %v4104
    %v4153 = vsub.f32 %v4124, %v4103
    %v4154 = vsub.f32 %v4124, %v4104
    %v4155 = vsub.f32 %v4128, %v4103
    %v4156 = vsub.f32 %v4128, %v4104
    %v4157 = vsub.f32 %v4132, %v4103
    %v4158 = vsub.f32 %v4132, %v4104
    %v4159 = vsub.f32 %v4136, %v4103
    %v4160 = vsub.f32 %v4136, %v4104
    %v4161 = vmin.f32 %v4036, %v4145
    %v4162 = vmin.f32 %v4037, %v4146
    %v4163 = vmin.f32 %v4038, %v4147
    %v4164 = vmin.f32 %v4039, %v4148
    %v4165 = vmin.f32 %v4040, %v4149
    %v4166 = vmin.f32 %v4041, %v4150
    %v4167 = vmin.f32 %v4042, %v4151
    %v4168 = vmin.f32 %v4043, %v4152
    %v4169 = vmin.f32 %v4044, %v4153
    %v4170 = vmin.f32 %v4045, %v4154
    %v4171 = vmin.f32 %v4046, %v4155
    %v4172 = vmin.f32 %v4047, %v4156
    %v4173 = vmin.f32 %v4048, %v4157
    %v4174 = vmin.f32 %v4049, %v4158
    %v4175 = vmin.f32 %v4050, %v4159
    %v4176 = vmin.f32 %v4051, %v4160
    %v4177 = vld [vmem:[%s98 + $0x20] sm:$0xff]
    %v4179 = vcombine.high %v4177, %v4177
    %v4181 = vunpack.c.l.s4 1966171168
    %v4182 = vunpack.c.0.s8 %v4181
    %v4183 = vlaneseq
    %v4184 = vshrl.u32 %v4183, 7
    %v4185 = vsub.s32 %v4182, %v4184
    %v4186 = vrot.slane %v4177, %v4185
    %v4188 = vunpack.c.l.s4 1966171168
    %v4189 = vunpack.c.0.s8 %v4188
    %v4190 = vlaneseq
    %v4191 = vshrl.u32 %v4190, 7
    %v4192 = vsub.s32 %v4189, %v4191
    %v4193 = vrot.slane %v4179, %v4192
    %v4194 = vcombine.high %v4186, %v4186
    %v4195 = vcombine.high %v4193, %v4193
    %v4197 = vunpack.c.l.s4 1966171168
    %v4198 = vunpack.c.0.s8 %v4197
    %v4199 = vlaneseq
    %v4200 = vshrl.u32 %v4199, 7
    %v4201 = vsub.s32 %v4198, %v4200
    %v4202 = vrot.slane %v4186, %v4201
    %v4204 = vunpack.c.l.s4 1966171168
    %v4205 = vunpack.c.0.s8 %v4204
    %v4206 = vlaneseq
    %v4207 = vshrl.u32 %v4206, 7
    %v4208 = vsub.s32 %v4205, %v4207
    %v4209 = vrot.slane %v4193, %v4208
    %v4211 = vunpack.c.l.s4 1966171168
    %v4212 = vunpack.c.0.s8 %v4211
    %v4213 = vlaneseq
    %v4214 = vshrl.u32 %v4213, 7
    %v4215 = vsub.s32 %v4212, %v4214
    %v4216 = vrot.slane %v4194, %v4215
    %v4218 = vunpack.c.l.s4 1966171168
    %v4219 = vunpack.c.0.s8 %v4218
    %v4220 = vlaneseq
    %v4221 = vshrl.u32 %v4220, 7
    %v4222 = vsub.s32 %v4219, %v4221
    %v4223 = vrot.slane %v4195, %v4222
    %v4224 = vcombine.high %v4202, %v4202
    %v4225 = vcombine.high %v4209, %v4209
    %v4226 = vcombine.high %v4216, %v4216
    %v4227 = vcombine.high %v4223, %v4223
    %v4228 = vld [vmem:[#allocation9 + $0xa0] sm:$0xff]
    %v4229 = vld [vmem:[#allocation9 + $0xe0] sm:$0xff]
    %v4230 = vlaneseq
    %v4231 = vshrl.u32 %v4230, 7
    %v4232 = vsub.s32 0, %v4231
    %v4233 = vrot.slane %v4202, %v4232
    %v4234 = vlaneseq
    %v4235 = vshrl.u32 %v4234, 7
    %v4236 = vsub.s32 0, %v4235
    %v4237 = vrot.slane %v4216, %v4236
    %v4238 = vlaneseq
    %v4239 = vshrl.u32 %v4238, 7
    %v4240 = vsub.s32 0, %v4239
    %v4241 = vrot.slane %v4224, %v4240
    %v4242 = vlaneseq
    %v4243 = vshrl.u32 %v4242, 7
    %v4244 = vsub.s32 0, %v4243
    %v4245 = vrot.slane %v4226, %v4244
    %v4246 = vlaneseq
    %v4247 = vshrl.u32 %v4246, 7
    %v4248 = vsub.s32 0, %v4247
    %v4249 = vrot.slane %v4209, %v4248
    %v4250 = vlaneseq
    %v4251 = vshrl.u32 %v4250, 7
    %v4252 = vsub.s32 0, %v4251
    %v4253 = vrot.slane %v4223, %v4252
    %v4254 = vlaneseq
    %v4255 = vshrl.u32 %v4254, 7
    %v4256 = vsub.s32 0, %v4255
    %v4257 = vrot.slane %v4225, %v4256
    %v4258 = vlaneseq
    %v4259 = vshrl.u32 %v4258, 7
    %v4260 = vsub.s32 0, %v4259
    %v4261 = vrot.slane %v4227, %v4260
    %v4270 = vsub.f32 %v4233, %v4228
    %v4271 = vsub.f32 %v4233, %v4229
    %v4272 = vsub.f32 %v4237, %v4228
    %v4273 = vsub.f32 %v4237, %v4229
    %v4274 = vsub.f32 %v4241, %v4228
    %v4275 = vsub.f32 %v4241, %v4229
    %v4276 = vsub.f32 %v4245, %v4228
    %v4277 = vsub.f32 %v4245, %v4229
    %v4278 = vsub.f32 %v4249, %v4228
    %v4279 = vsub.f32 %v4249, %v4229
    %v4280 = vsub.f32 %v4253, %v4228
    %v4281 = vsub.f32 %v4253, %v4229
    %v4282 = vsub.f32 %v4257, %v4228
    %v4283 = vsub.f32 %v4257, %v4229
    %v4284 = vsub.f32 %v4261, %v4228
    %v4285 = vsub.f32 %v4261, %v4229
    %v4286 = vmin.f32 %v4161, %v4270
    %v4287 = vmin.f32 %v4162, %v4271
    %v4288 = vmin.f32 %v4163, %v4272
    %v4289 = vmin.f32 %v4164, %v4273
    %v4290 = vmin.f32 %v4165, %v4274
    %v4291 = vmin.f32 %v4166, %v4275
    %v4292 = vmin.f32 %v4167, %v4276
    %v4293 = vmin.f32 %v4168, %v4277
    %v4294 = vmin.f32 %v4169, %v4278
    %v4295 = vmin.f32 %v4170, %v4279
    %v4296 = vmin.f32 %v4171, %v4280
    %v4297 = vmin.f32 %v4172, %v4281
    %v4298 = vmin.f32 %v4173, %v4282
    %v4299 = vmin.f32 %v4174, %v4283
    %v4300 = vmin.f32 %v4175, %v4284
    %v4301 = vmin.f32 %v4176, %v4285
    %v4302 = vld [vmem:[%s98 + $0x28] sm:$0xff]
    %v4304 = vcombine.high %v4302, %v4302
    %v4306 = vunpack.c.l.s4 1966171168
    %v4307 = vunpack.c.0.s8 %v4306
    %v4308 = vlaneseq
    %v4309 = vshrl.u32 %v4308, 7
    %v4310 = vsub.s32 %v4307, %v4309
    %v4311 = vrot.slane %v4302, %v4310
    %v4313 = vunpack.c.l.s4 1966171168
    %v4314 = vunpack.c.0.s8 %v4313
    %v4315 = vlaneseq
    %v4316 = vshrl.u32 %v4315, 7
    %v4317 = vsub.s32 %v4314, %v4316
    %v4318 = vrot.slane %v4304, %v4317
    %v4319 = vcombine.high %v4311, %v4311
    %v4320 = vcombine.high %v4318, %v4318
    %v4322 = vunpack.c.l.s4 1966171168
    %v4323 = vunpack.c.0.s8 %v4322
    %v4324 = vlaneseq
    %v4325 = vshrl.u32 %v4324, 7
    %v4326 = vsub.s32 %v4323, %v4325
    %v4327 = vrot.slane %v4311, %v4326
    %v4329 = vunpack.c.l.s4 1966171168
    %v4330 = vunpack.c.0.s8 %v4329
    %v4331 = vlaneseq
    %v4332 = vshrl.u32 %v4331, 7
    %v4333 = vsub.s32 %v4330, %v4332
    %v4334 = vrot.slane %v4318, %v4333
    %v4336 = vunpack.c.l.s4 1966171168
    %v4337 = vunpack.c.0.s8 %v4336
    %v4338 = vlaneseq
    %v4339 = vshrl.u32 %v4338, 7
    %v4340 = vsub.s32 %v4337, %v4339
    %v4341 = vrot.slane %v4319, %v4340
    %v4343 = vunpack.c.l.s4 1966171168
    %v4344 = vunpack.c.0.s8 %v4343
    %v4345 = vlaneseq
    %v4346 = vshrl.u32 %v4345, 7
    %v4347 = vsub.s32 %v4344, %v4346
    %v4348 = vrot.slane %v4320, %v4347
    %v4349 = vcombine.high %v4327, %v4327
    %v4350 = vcombine.high %v4334, %v4334
    %v4351 = vcombine.high %v4341, %v4341
    %v4352 = vcombine.high %v4348, %v4348
    %v4353 = vld [vmem:[#allocation9 + $0xa8] sm:$0xff]
    %v4354 = vld [vmem:[#allocation9 + $0xe8] sm:$0xff]
    %v4355 = vlaneseq
    %v4356 = vshrl.u32 %v4355, 7
    %v4357 = vsub.s32 0, %v4356
    %v4358 = vrot.slane %v4327, %v4357
    %v4359 = vlaneseq
    %v4360 = vshrl.u32 %v4359, 7
    %v4361 = vsub.s32 0, %v4360
    %v4362 = vrot.slane %v4341, %v4361
    %v4363 = vlaneseq
    %v4364 = vshrl.u32 %v4363, 7
    %v4365 = vsub.s32 0, %v4364
    %v4366 = vrot.slane %v4349, %v4365
    %v4367 = vlaneseq
    %v4368 = vshrl.u32 %v4367, 7
    %v4369 = vsub.s32 0, %v4368
    %v4370 = vrot.slane %v4351, %v4369
    %v4371 = vlaneseq
    %v4372 = vshrl.u32 %v4371, 7
    %v4373 = vsub.s32 0, %v4372
    %v4374 = vrot.slane %v4334, %v4373
    %v4375 = vlaneseq
    %v4376 = vshrl.u32 %v4375, 7
    %v4377 = vsub.s32 0, %v4376
    %v4378 = vrot.slane %v4348, %v4377
    %v4379 = vlaneseq
    %v4380 = vshrl.u32 %v4379, 7
    %v4381 = vsub.s32 0, %v4380
    %v4382 = vrot.slane %v4350, %v4381
    %v4383 = vlaneseq
    %v4384 = vshrl.u32 %v4383, 7
    %v4385 = vsub.s32 0, %v4384
    %v4386 = vrot.slane %v4352, %v4385
    %v4395 = vsub.f32 %v4358, %v4353
    %v4396 = vsub.f32 %v4358, %v4354
    %v4397 = vsub.f32 %v4362, %v4353
    %v4398 = vsub.f32 %v4362, %v4354
    %v4399 = vsub.f32 %v4366, %v4353
    %v4400 = vsub.f32 %v4366, %v4354
    %v4401 = vsub.f32 %v4370, %v4353
    %v4402 = vsub.f32 %v4370, %v4354
    %v4403 = vsub.f32 %v4374, %v4353
    %v4404 = vsub.f32 %v4374, %v4354
    %v4405 = vsub.f32 %v4378, %v4353
    %v4406 = vsub.f32 %v4378, %v4354
    %v4407 = vsub.f32 %v4382, %v4353
    %v4408 = vsub.f32 %v4382, %v4354
    %v4409 = vsub.f32 %v4386, %v4353
    %v4410 = vsub.f32 %v4386, %v4354
    %v4411 = vmin.f32 %v4286, %v4395
    %v4412 = vmin.f32 %v4287, %v4396
    %v4413 = vmin.f32 %v4288, %v4397
    %v4414 = vmin.f32 %v4289, %v4398
    %v4415 = vmin.f32 %v4290, %v4399
    %v4416 = vmin.f32 %v4291, %v4400
    %v4417 = vmin.f32 %v4292, %v4401
    %v4418 = vmin.f32 %v4293, %v4402
    %v4419 = vmin.f32 %v4294, %v4403
    %v4420 = vmin.f32 %v4295, %v4404
    %v4421 = vmin.f32 %v4296, %v4405
    %v4422 = vmin.f32 %v4297, %v4406
    %v4423 = vmin.f32 %v4298, %v4407
    %v4424 = vmin.f32 %v4299, %v4408
    %v4425 = vmin.f32 %v4300, %v4409
    %v4426 = vmin.f32 %v4301, %v4410
    %v4427 = vld [vmem:[%s98 + $0x30] sm:$0xff]
    %v4429 = vcombine.high %v4427, %v4427
    %v4431 = vunpack.c.l.s4 1966171168
    %v4432 = vunpack.c.0.s8 %v4431
    %v4433 = vlaneseq
    %v4434 = vshrl.u32 %v4433, 7
    %v4435 = vsub.s32 %v4432, %v4434
    %v4436 = vrot.slane %v4427, %v4435
    %v4438 = vunpack.c.l.s4 1966171168
    %v4439 = vunpack.c.0.s8 %v4438
    %v4440 = vlaneseq
    %v4441 = vshrl.u32 %v4440, 7
    %v4442 = vsub.s32 %v4439, %v4441
    %v4443 = vrot.slane %v4429, %v4442
    %v4444 = vcombine.high %v4436, %v4436
    %v4445 = vcombine.high %v4443, %v4443
    %v4447 = vunpack.c.l.s4 1966171168
    %v4448 = vunpack.c.0.s8 %v4447
    %v4449 = vlaneseq
    %v4450 = vshrl.u32 %v4449, 7
    %v4451 = vsub.s32 %v4448, %v4450
    %v4452 = vrot.slane %v4436, %v4451
    %v4454 = vunpack.c.l.s4 1966171168
    %v4455 = vunpack.c.0.s8 %v4454
    %v4456 = vlaneseq
    %v4457 = vshrl.u32 %v4456, 7
    %v4458 = vsub.s32 %v4455, %v4457
    %v4459 = vrot.slane %v4443, %v4458
    %v4461 = vunpack.c.l.s4 1966171168
    %v4462 = vunpack.c.0.s8 %v4461
    %v4463 = vlaneseq
    %v4464 = vshrl.u32 %v4463, 7
    %v4465 = vsub.s32 %v4462, %v4464
    %v4466 = vrot.slane %v4444, %v4465
    %v4468 = vunpack.c.l.s4 1966171168
    %v4469 = vunpack.c.0.s8 %v4468
    %v4470 = vlaneseq
    %v4471 = vshrl.u32 %v4470, 7
    %v4472 = vsub.s32 %v4469, %v4471
    %v4473 = vrot.slane %v4445, %v4472
    %v4474 = vcombine.high %v4452, %v4452
    %v4475 = vcombine.high %v4459, %v4459
    %v4476 = vcombine.high %v4466, %v4466
    %v4477 = vcombine.high %v4473, %v4473
    %v4478 = vld [vmem:[#allocation9 + $0xb0] sm:$0xff]
    %v4479 = vld [vmem:[#allocation9 + $0xf0] sm:$0xff]
    %v4480 = vlaneseq
    %v4481 = vshrl.u32 %v4480, 7
    %v4482 = vsub.s32 0, %v4481
    %v4483 = vrot.slane %v4452, %v4482
    %v4484 = vlaneseq
    %v4485 = vshrl.u32 %v4484, 7
    %v4486 = vsub.s32 0, %v4485
    %v4487 = vrot.slane %v4466, %v4486
    %v4488 = vlaneseq
    %v4489 = vshrl.u32 %v4488, 7
    %v4490 = vsub.s32 0, %v4489
    %v4491 = vrot.slane %v4474, %v4490
    %v4492 = vlaneseq
    %v4493 = vshrl.u32 %v4492, 7
    %v4494 = vsub.s32 0, %v4493
    %v4495 = vrot.slane %v4476, %v4494
    %v4496 = vlaneseq
    %v4497 = vshrl.u32 %v4496, 7
    %v4498 = vsub.s32 0, %v4497
    %v4499 = vrot.slane %v4459, %v4498
    %v4500 = vlaneseq
    %v4501 = vshrl.u32 %v4500, 7
    %v4502 = vsub.s32 0, %v4501
    %v4503 = vrot.slane %v4473, %v4502
    %v4504 = vlaneseq
    %v4505 = vshrl.u32 %v4504, 7
    %v4506 = vsub.s32 0, %v4505
    %v4507 = vrot.slane %v4475, %v4506
    %v4508 = vlaneseq
    %v4509 = vshrl.u32 %v4508, 7
    %v4510 = vsub.s32 0, %v4509
    %v4511 = vrot.slane %v4477, %v4510
    %v4520 = vsub.f32 %v4483, %v4478
    %v4521 = vsub.f32 %v4483, %v4479
    %v4522 = vsub.f32 %v4487, %v4478
    %v4523 = vsub.f32 %v4487, %v4479
    %v4524 = vsub.f32 %v4491, %v4478
    %v4525 = vsub.f32 %v4491, %v4479
    %v4526 = vsub.f32 %v4495, %v4478
    %v4527 = vsub.f32 %v4495, %v4479
    %v4528 = vsub.f32 %v4499, %v4478
    %v4529 = vsub.f32 %v4499, %v4479
    %v4530 = vsub.f32 %v4503, %v4478
    %v4531 = vsub.f32 %v4503, %v4479
    %v4532 = vsub.f32 %v4507, %v4478
    %v4533 = vsub.f32 %v4507, %v4479
    %v4534 = vsub.f32 %v4511, %v4478
    %v4535 = vsub.f32 %v4511, %v4479
    %v4536 = vmin.f32 %v4411, %v4520
    %v4537 = vmin.f32 %v4412, %v4521
    %v4538 = vmin.f32 %v4413, %v4522
    %v4539 = vmin.f32 %v4414, %v4523
    %v4540 = vmin.f32 %v4415, %v4524
    %v4541 = vmin.f32 %v4416, %v4525
    %v4542 = vmin.f32 %v4417, %v4526
    %v4543 = vmin.f32 %v4418, %v4527
    %v4544 = vmin.f32 %v4419, %v4528
    %v4545 = vmin.f32 %v4420, %v4529
    %v4546 = vmin.f32 %v4421, %v4530
    %v4547 = vmin.f32 %v4422, %v4531
    %v4548 = vmin.f32 %v4423, %v4532
    %v4549 = vmin.f32 %v4424, %v4533
    %v4550 = vmin.f32 %v4425, %v4534
    %v4551 = vmin.f32 %v4426, %v4535
    %v4552 = vld [vmem:[%s98 + $0x38] sm:$0xff]
    %v4554 = vcombine.high %v4552, %v4552
    %v4556 = vunpack.c.l.s4 1966171168
    %v4557 = vunpack.c.0.s8 %v4556
    %v4558 = vlaneseq
    %v4559 = vshrl.u32 %v4558, 7
    %v4560 = vsub.s32 %v4557, %v4559
    %v4561 = vrot.slane %v4552, %v4560
    %v4563 = vunpack.c.l.s4 1966171168
    %v4564 = vunpack.c.0.s8 %v4563
    %v4565 = vlaneseq
    %v4566 = vshrl.u32 %v4565, 7
    %v4567 = vsub.s32 %v4564, %v4566
    %v4568 = vrot.slane %v4554, %v4567
    %v4569 = vcombine.high %v4561, %v4561
    %v4570 = vcombine.high %v4568, %v4568
    %v4572 = vunpack.c.l.s4 1966171168
    %v4573 = vunpack.c.0.s8 %v4572
    %v4574 = vlaneseq
    %v4575 = vshrl.u32 %v4574, 7
    %v4576 = vsub.s32 %v4573, %v4575
    %v4577 = vrot.slane %v4561, %v4576
    %v4579 = vunpack.c.l.s4 1966171168
    %v4580 = vunpack.c.0.s8 %v4579
    %v4581 = vlaneseq
    %v4582 = vshrl.u32 %v4581, 7
    %v4583 = vsub.s32 %v4580, %v4582
    %v4584 = vrot.slane %v4568, %v4583
    %v4586 = vunpack.c.l.s4 1966171168
    %v4587 = vunpack.c.0.s8 %v4586
    %v4588 = vlaneseq
    %v4589 = vshrl.u32 %v4588, 7
    %v4590 = vsub.s32 %v4587, %v4589
    %v4591 = vrot.slane %v4569, %v4590
    %v4593 = vunpack.c.l.s4 1966171168
    %v4594 = vunpack.c.0.s8 %v4593
    %v4595 = vlaneseq
    %v4596 = vshrl.u32 %v4595, 7
    %v4597 = vsub.s32 %v4594, %v4596
    %v4598 = vrot.slane %v4570, %v4597
    %v4599 = vcombine.high %v4577, %v4577
    %v4600 = vcombine.high %v4584, %v4584
    %v4601 = vcombine.high %v4591, %v4591
    %v4602 = vcombine.high %v4598, %v4598
    %v4603 = vld [vmem:[#allocation9 + $0xb8] sm:$0xff]
    %v4604 = vld [vmem:[#allocation9 + $0xf8] sm:$0xff]
    %v4605 = vlaneseq
    %v4606 = vshrl.u32 %v4605, 7
    %v4607 = vsub.s32 0, %v4606
    %v4608 = vrot.slane %v4577, %v4607
    %v4609 = vlaneseq
    %v4610 = vshrl.u32 %v4609, 7
    %v4611 = vsub.s32 0, %v4610
    %v4612 = vrot.slane %v4591, %v4611
    %v4613 = vlaneseq
    %v4614 = vshrl.u32 %v4613, 7
    %v4615 = vsub.s32 0, %v4614
    %v4616 = vrot.slane %v4599, %v4615
    %v4617 = vlaneseq
    %v4618 = vshrl.u32 %v4617, 7
    %v4619 = vsub.s32 0, %v4618
    %v4620 = vrot.slane %v4601, %v4619
    %v4621 = vlaneseq
    %v4622 = vshrl.u32 %v4621, 7
    %v4623 = vsub.s32 0, %v4622
    %v4624 = vrot.slane %v4584, %v4623
    %v4625 = vlaneseq
    %v4626 = vshrl.u32 %v4625, 7
    %v4627 = vsub.s32 0, %v4626
    %v4628 = vrot.slane %v4598, %v4627
    %v4629 = vlaneseq
    %v4630 = vshrl.u32 %v4629, 7
    %v4631 = vsub.s32 0, %v4630
    %v4632 = vrot.slane %v4600, %v4631
    %v4633 = vlaneseq
    %v4634 = vshrl.u32 %v4633, 7
    %v4635 = vsub.s32 0, %v4634
    %v4636 = vrot.slane %v4602, %v4635
    %v4645 = vsub.f32 %v4608, %v4603
    %v4646 = vsub.f32 %v4608, %v4604
    %v4647 = vsub.f32 %v4612, %v4603
    %v4648 = vsub.f32 %v4612, %v4604
    %v4649 = vsub.f32 %v4616, %v4603
    %v4650 = vsub.f32 %v4616, %v4604
    %v4651 = vsub.f32 %v4620, %v4603
    %v4652 = vsub.f32 %v4620, %v4604
    %v4653 = vsub.f32 %v4624, %v4603
    %v4654 = vsub.f32 %v4624, %v4604
    %v4655 = vsub.f32 %v4628, %v4603
    %v4656 = vsub.f32 %v4628, %v4604
    %v4657 = vsub.f32 %v4632, %v4603
    %v4658 = vsub.f32 %v4632, %v4604
    %v4659 = vsub.f32 %v4636, %v4603
    %v4660 = vsub.f32 %v4636, %v4604
    %v4661 = vmin.f32 %v4536, %v4645
    %v4662 = vmin.f32 %v4537, %v4646
    %v4663 = vmin.f32 %v4538, %v4647
    %v4664 = vmin.f32 %v4539, %v4648
    %v4665 = vmin.f32 %v4540, %v4649
    %v4666 = vmin.f32 %v4541, %v4650
    %v4667 = vmin.f32 %v4542, %v4651
    %v4668 = vmin.f32 %v4543, %v4652
    %v4669 = vmin.f32 %v4544, %v4653
    %v4670 = vmin.f32 %v4545, %v4654
    %v4671 = vmin.f32 %v4546, %v4655
    %v4672 = vmin.f32 %v4547, %v4656
    %v4673 = vmin.f32 %v4548, %v4657
    %v4674 = vmin.f32 %v4549, %v4658
    %v4675 = vmin.f32 %v4550, %v4659
    %v4676 = vmin.f32 %v4551, %v4660
    %4677 = vmin.xlane.f32.xlu0 %v4661
    %v4678 = vpop.xlane.xlu0 %4677
    %4679 = vmin.xlane.f32.xlu0 %v4662
    %v4680 = vpop.xlane.xlu0 %4679
    %4681 = vmin.xlane.f32.xlu0 %v4663
    %v4682 = vpop.xlane.xlu0 %4681
    %4683 = vmin.xlane.f32.xlu0 %v4664
    %v4684 = vpop.xlane.xlu0 %4683
    %4685 = vmin.xlane.f32.xlu0 %v4665
    %v4686 = vpop.xlane.xlu0 %4685
    %4687 = vmin.xlane.f32.xlu0 %v4666
    %v4688 = vpop.xlane.xlu0 %4687
    %4689 = vmin.xlane.f32.xlu0 %v4667
    %v4690 = vpop.xlane.xlu0 %4689
    %4691 = vmin.xlane.f32.xlu0 %v4668
    %v4692 = vpop.xlane.xlu0 %4691
    %4693 = vmin.xlane.f32.xlu0 %v4669
    %v4694 = vpop.xlane.xlu0 %4693
    %4695 = vmin.xlane.f32.xlu0 %v4670
    %v4696 = vpop.xlane.xlu0 %4695
    %4697 = vmin.xlane.f32.xlu0 %v4671
    %v4698 = vpop.xlane.xlu0 %4697
    %4699 = vmin.xlane.f32.xlu0 %v4672
    %v4700 = vpop.xlane.xlu0 %4699
    %4701 = vmin.xlane.f32.xlu0 %v4673
    %v4702 = vpop.xlane.xlu0 %4701
    %4703 = vmin.xlane.f32.xlu0 %v4674
    %v4704 = vpop.xlane.xlu0 %4703
    %4705 = vmin.xlane.f32.xlu0 %v4675
    %v4706 = vpop.xlane.xlu0 %4705
    %4707 = vmin.xlane.f32.xlu0 %v4676
    %v4708 = vpop.xlane.xlu0 %4707
    %v4709 = vld [vmem:[%s4] sm:$0x1]
    %v4710 = vsub.f32 0.0, %v4709
    %v4712 = vlaneseq
    %v4713 = vshrl.u32 %v4712, 7
    %v4714 = vsub.s32 0, %v4713
    %v4715 = vrot.slane %v4710, %v4714
    %s4717 = sor.u32 256, 16
    %4718 = vbcast.lane.b32.xlu0 %v4715, %s4717
    %v4719 = vpop.permute.xlu0 %4718
    %s4721 = sor.u32 256, 24
    %4722 = vbcast.lane.b32.xlu0 %v4715, %s4721
    %v4723 = vpop.permute.xlu0 %4722
    %v4726 = vmin.f32 %v4678, %v4719
    %v4727 = vmin.f32 %v4680, %v4723
    %v4728 = vmin.f32 %v4682, %v4719
    %v4729 = vmin.f32 %v4684, %v4723
    %v4730 = vmin.f32 %v4686, %v4719
    %v4731 = vmin.f32 %v4688, %v4723
    %v4732 = vmin.f32 %v4690, %v4719
    %v4733 = vmin.f32 %v4692, %v4723
    %v4734 = vmin.f32 %v4694, %v4719
    %v4735 = vmin.f32 %v4696, %v4723
    %v4736 = vmin.f32 %v4698, %v4719
    %v4737 = vmin.f32 %v4700, %v4723
    %v4738 = vmin.f32 %v4702, %v4719
    %v4739 = vmin.f32 %v4704, %v4723
    %v4740 = vmin.f32 %v4706, %v4719
    %v4741 = vmin.f32 %v4708, %v4723
    %4758 = vset.pattern.permute.xlu0 0
    %4759 = vperm.xlu0 %4758, %v4726
    %v4760 = vpop.permute.xlu0 %4759
    %4761 = vset.pattern.permute.xlu0 0
    %4762 = vperm.xlu0 %4761, %v4727
    %v4763 = vpop.permute.xlu0 %4762
    %4764 = vset.pattern.permute.xlu0 0
    %4765 = vperm.xlu0 %4764, %v4728
    %v4766 = vpop.permute.xlu0 %4765
    %4767 = vset.pattern.permute.xlu0 0
    %4768 = vperm.xlu0 %4767, %v4729
    %v4769 = vpop.permute.xlu0 %4768
    %4770 = vset.pattern.permute.xlu0 0
    %4771 = vperm.xlu0 %4770, %v4730
    %v4772 = vpop.permute.xlu0 %4771
    %4773 = vset.pattern.permute.xlu0 0
    %4774 = vperm.xlu0 %4773, %v4731
    %v4775 = vpop.permute.xlu0 %4774
    %4776 = vset.pattern.permute.xlu0 0
    %4777 = vperm.xlu0 %4776, %v4732
    %v4778 = vpop.permute.xlu0 %4777
    %4779 = vset.pattern.permute.xlu0 0
    %4780 = vperm.xlu0 %4779, %v4733
    %v4781 = vpop.permute.xlu0 %4780
    %4782 = vset.pattern.permute.xlu0 0
    %4783 = vperm.xlu0 %4782, %v4734
    %v4784 = vpop.permute.xlu0 %4783
    %4785 = vset.pattern.permute.xlu0 0
    %4786 = vperm.xlu0 %4785, %v4735
    %v4787 = vpop.permute.xlu0 %4786
    %4788 = vset.pattern.permute.xlu0 0
    %4789 = vperm.xlu0 %4788, %v4736
    %v4790 = vpop.permute.xlu0 %4789
    %4791 = vset.pattern.permute.xlu0 0
    %4792 = vperm.xlu0 %4791, %v4737
    %v4793 = vpop.permute.xlu0 %4792
    %4794 = vset.pattern.permute.xlu0 0
    %4795 = vperm.xlu0 %4794, %v4738
    %v4796 = vpop.permute.xlu0 %4795
    %4797 = vset.pattern.permute.xlu0 0
    %4798 = vperm.xlu0 %4797, %v4739
    %v4799 = vpop.permute.xlu0 %4798
    %4800 = vset.pattern.permute.xlu0 0
    %4801 = vperm.xlu0 %4800, %v4740
    %v4802 = vpop.permute.xlu0 %4801
    %4803 = vset.pattern.permute.xlu0 0
    %4804 = vperm.xlu0 %4803, %v4741
    %v4805 = vpop.permute.xlu0 %4804
    %v4806 = vlaneseq
    %v4807 = vshrl.u32 %v4806, 7
    %v4808 = vsub.s32 %v2415, %v4807
    %v4809 = vrot.slane %v4760, %v4808
    %v4810 = vlaneseq
    %v4811 = vshrl.u32 %v4810, 7
    %v4812 = vsub.s32 %v2420, %v4811
    %v4813 = vrot.slane %v4763, %v4812
    %v4814 = vsel %vm2425, %v4813, %v4809
    %v4815 = vlaneseq
    %v4816 = vshrl.u32 %v4815, 7
    %v4817 = vsub.s32 %v2415, %v4816
    %v4818 = vrot.slane %v4766, %v4817
    %v4819 = vlaneseq
    %v4820 = vshrl.u32 %v4819, 7
    %v4821 = vsub.s32 %v2420, %v4820
    %v4822 = vrot.slane %v4769, %v4821
    %v4823 = vsel %vm2425, %v4822, %v4818
    %v4824 = vlaneseq
    %v4825 = vshrl.u32 %v4824, 7
    %v4826 = vsub.s32 %v2415, %v4825
    %v4827 = vrot.slane %v4772, %v4826
    %v4828 = vlaneseq
    %v4829 = vshrl.u32 %v4828, 7
    %v4830 = vsub.s32 %v2420, %v4829
    %v4831 = vrot.slane %v4775, %v4830
    %v4832 = vsel %vm2425, %v4831, %v4827
    %v4833 = vlaneseq
    %v4834 = vshrl.u32 %v4833, 7
    %v4835 = vsub.s32 %v2415, %v4834
    %v4836 = vrot.slane %v4778, %v4835
    %v4837 = vlaneseq
    %v4838 = vshrl.u32 %v4837, 7
    %v4839 = vsub.s32 %v2420, %v4838
    %v4840 = vrot.slane %v4781, %v4839
    %v4841 = vsel %vm2425, %v4840, %v4836
    %v4842 = vlaneseq
    %v4843 = vshrl.u32 %v4842, 7
    %v4844 = vsub.s32 %v2415, %v4843
    %v4845 = vrot.slane %v4784, %v4844
    %v4846 = vlaneseq
    %v4847 = vshrl.u32 %v4846, 7
    %v4848 = vsub.s32 %v2420, %v4847
    %v4849 = vrot.slane %v4787, %v4848
    %v4850 = vsel %vm2425, %v4849, %v4845
    %v4851 = vlaneseq
    %v4852 = vshrl.u32 %v4851, 7
    %v4853 = vsub.s32 %v2415, %v4852
    %v4854 = vrot.slane %v4790, %v4853
    %v4855 = vlaneseq
    %v4856 = vshrl.u32 %v4855, 7
    %v4857 = vsub.s32 %v2420, %v4856
    %v4858 = vrot.slane %v4793, %v4857
    %v4859 = vsel %vm2425, %v4858, %v4854
    %v4860 = vlaneseq
    %v4861 = vshrl.u32 %v4860, 7
    %v4862 = vsub.s32 %v2415, %v4861
    %v4863 = vrot.slane %v4796, %v4862
    %v4864 = vlaneseq
    %v4865 = vshrl.u32 %v4864, 7
    %v4866 = vsub.s32 %v2420, %v4865
    %v4867 = vrot.slane %v4799, %v4866
    %v4868 = vsel %vm2425, %v4867, %v4863
    %v4869 = vlaneseq
    %v4870 = vshrl.u32 %v4869, 7
    %v4871 = vsub.s32 %v2415, %v4870
    %v4872 = vrot.slane %v4802, %v4871
    %v4873 = vlaneseq
    %v4874 = vshrl.u32 %v4873, 7
    %v4875 = vsub.s32 %v2420, %v4874
    %v4876 = vrot.slane %v4805, %v4875
    %v4877 = vsel %vm2425, %v4876, %v4872
    %v4878 = vsel %vm1286, %v4823, %v4814
    %v4879 = vsel %vm1288, %v4832, %v4878
    %v4880 = vsel %vm1290, %v4841, %v4879
    %v4881 = vsel %vm1292, %v4850, %v4880
    %v4882 = vsel %vm1294, %v4859, %v4881
    %v4883 = vsel %vm1296, %v4868, %v4882
    %v4884 = vsel %vm1298, %v4877, %v4883
    %4886 = vst.msk [vmem:[#allocation3] sm:$0xff] %vm2498, %v4884
    %v4887 = vld [vmem:[#allocation3] sm:$0xff]
    %v4888 = vld [vmem:[#allocation10] sm:$0xff]
    %v4889 = vld [vmem:[#allocation10 + $0x8] sm:$0xff]
    %v4890 = vld [vmem:[#allocation10 + $0x10] sm:$0xff]
    %v4891 = vld [vmem:[#allocation10 + $0x18] sm:$0xff]
    %v4892 = vld [vmem:[#allocation2] sm:$0xff]
    %v4893 = vld [vmem:[#allocation12] sm:$0xff]
    %v4894 = vld [vmem:[#allocation12 + $0x8] sm:$0xff]
    %v4895 = vld [vmem:[#allocation12 + $0x10] sm:$0xff]
    %v4896 = vld [vmem:[#allocation12 + $0x18] sm:$0xff]
    %vm4897 = vcmask 261120
    %v4899 = vsel %vm4897, %v4892, 0
    %4901 = vmatprep.subr.mxu0 0.0
    %4902 = vmatpush1.msra.mxu0 0.0
    %4903 = vmatprep.subr.mxu0 0.0
    %4904 = vmatpush1.msra.mxu0 0.0
    %4905 = vmatprep.subr.mxu0 0.0
    %4906 = vmatpush1.msra.mxu0 0.0
    %4907 = vmatprep.subr.mxu0 0.0
    %4908 = vmatpush1.msra.mxu0 0.0
    %4909 = vmatprep.subr.mxu0 0.0
    %4910 = vmatpush1.msra.mxu0 0.0
    %4911 = vmatprep.subr.mxu0 0.0
    %4912 = vmatpush1.msra.mxu0 0.0
    %4913 = vmatprep.subr.mxu0 0.0
    %4914 = vmatpush1.msra.mxu0 0.0
    %4915 = vmatprep.subr.mxu0 0.0
    %4916 = vmatpush1.msra.mxu0 0.0
    %4917 = vmatprep.subr.mxu0 0.0
    %4918 = vmatpush1.msra.mxu0 0.0
    %4919 = vmatprep.subr.mxu0 0.0
    %4920 = vmatpush1.msra.mxu0 0.0
    %4921 = vmatprep.subr.mxu0 0.0
    %4922 = vmatpush1.msra.mxu0 0.0
    %4923 = vmatprep.subr.mxu0 0.0
    %4924 = vmatpush1.msra.mxu0 0.0
    %4925 = vmatprep.subr.mxu0 0.0
    %4926 = vmatpush1.msra.mxu0 %v4896
    %4927 = vmatprep.subr.mxu0 0.0
    %4928 = vmatpush1.msra.mxu0 %v4895
    %4929 = vmatprep.subr.mxu0 0.0
    %4930 = vmatpush1.msra.mxu0 %v4894
    %4931 = vmatprep.subr.mxu0 0.0
    %4932 = vmatpush1.msra.mxu0 %v4893
    %4933 = vmatprep.subr.mxu0 0.0
    %4934 = vmatpush2.msra.mxu0 0.0
    %4935 = vmatprep.subr.mxu0 0.0
    %4936 = vmatpush2.msra.mxu0 0.0
    %4937 = vmatprep.subr.mxu0 0.0
    %4938 = vmatpush2.msra.mxu0 0.0
    %4939 = vmatprep.subr.mxu0 0.0
    %4940 = vmatpush2.msra.mxu0 0.0
    %4941 = vmatprep.subr.mxu0 0.0
    %4942 = vmatpush2.msra.mxu0 0.0
    %4943 = vmatprep.subr.mxu0 0.0
    %4944 = vmatpush2.msra.mxu0 0.0
    %4945 = vmatprep.subr.mxu0 0.0
    %4946 = vmatpush2.msra.mxu0 0.0
    %4947 = vmatprep.subr.mxu0 0.0
    %4948 = vmatpush2.msra.mxu0 0.0
    %4949 = vmatprep.subr.mxu0 0.0
    %4950 = vmatpush2.msra.mxu0 0.0
    %4951 = vmatprep.subr.mxu0 0.0
    %4952 = vmatpush2.msra.mxu0 0.0
    %4953 = vmatprep.subr.mxu0 0.0
    %4954 = vmatpush2.msra.mxu0 0.0
    %4955 = vmatprep.subr.mxu0 0.0
    %4956 = vmatpush2.msra.mxu0 0.0
    %4957 = vmatprep.subr.mxu0 0.0
    %4958 = vmatpush2.msra.mxu0 0.0
    %4959 = vmatprep.subr.mxu0 0.0
    %4960 = vmatpush2.msra.mxu0 0.0
    %4961 = vmatprep.subr.mxu0 0.0
    %4962 = vmatpush2.msra.mxu0 0.0
    %4963 = vmatprep.subr.mxu0 0.0
    %4964 = vmatpush2.msra.mxu0 0.0
    %4965 = vmatprep.mubr.f32.mxu0 0.0
    %4966 = vmatmul.mubr.f32.gmra.mxu0 %v4899
    %v4967 = vpop.f32.mrf.mxu0
    %v4968 = vadd.f32 0.0, %v4967
    %v4969 = vpop.f32.mrf.mxu0
    %4970 = vdwg.mxu0
    %v4972 = vsel %vm4897, %v4887, 0
    %4974 = vmatprep.subr.mxu0 0.0
    %4975 = vmatpush1.msra.mxu0 0.0
    %4976 = vmatprep.subr.mxu0 0.0
    %4977 = vmatpush1.msra.mxu0 0.0
    %4978 = vmatprep.subr.mxu0 0.0
    %4979 = vmatpush1.msra.mxu0 0.0
    %4980 = vmatprep.subr.mxu0 0.0
    %4981 = vmatpush1.msra.mxu0 0.0
    %4982 = vmatprep.subr.mxu0 0.0
    %4983 = vmatpush1.msra.mxu0 0.0
    %4984 = vmatprep.subr.mxu0 0.0
    %4985 = vmatpush1.msra.mxu0 0.0
    %4986 = vmatprep.subr.mxu0 0.0
    %4987 = vmatpush1.msra.mxu0 0.0
    %4988 = vmatprep.subr.mxu0 0.0
    %4989 = vmatpush1.msra.mxu0 0.0
    %4990 = vmatprep.subr.mxu0 0.0
    %4991 = vmatpush1.msra.mxu0 0.0
    %4992 = vmatprep.subr.mxu0 0.0
    %4993 = vmatpush1.msra.mxu0 0.0
    %4994 = vmatprep.subr.mxu0 0.0
    %4995 = vmatpush1.msra.mxu0 0.0
    %4996 = vmatprep.subr.mxu0 0.0
    %4997 = vmatpush1.msra.mxu0 0.0
    %4998 = vmatprep.subr.mxu0 0.0
    %4999 = vmatpush1.msra.mxu0 %v4891
    %5000 = vmatprep.subr.mxu0 0.0
    %5001 = vmatpush1.msra.mxu0 %v4890
    %5002 = vmatprep.subr.mxu0 0.0
    %5003 = vmatpush1.msra.mxu0 %v4889
    %5004 = vmatprep.subr.mxu0 0.0
    %5005 = vmatpush1.msra.mxu0 %v4888
    %5006 = vmatprep.subr.mxu0 0.0
    %5007 = vmatpush2.msra.mxu0 0.0
    %5008 = vmatprep.subr.mxu0 0.0
    %5009 = vmatpush2.msra.mxu0 0.0
    %5010 = vmatprep.subr.mxu0 0.0
    %5011 = vmatpush2.msra.mxu0 0.0
    %5012 = vmatprep.subr.mxu0 0.0
    %5013 = vmatpush2.msra.mxu0 0.0
    %5014 = vmatprep.subr.mxu0 0.0
    %5015 = vmatpush2.msra.mxu0 0.0
    %5016 = vmatprep.subr.mxu0 0.0
    %5017 = vmatpush2.msra.mxu0 0.0
    %5018 = vmatprep.subr.mxu0 0.0
    %5019 = vmatpush2.msra.mxu0 0.0
    %5020 = vmatprep.subr.mxu0 0.0
    %5021 = vmatpush2.msra.mxu0 0.0
    %5022 = vmatprep.subr.mxu0 0.0
    %5023 = vmatpush2.msra.mxu0 0.0
    %5024 = vmatprep.subr.mxu0 0.0
    %5025 = vmatpush2.msra.mxu0 0.0
    %5026 = vmatprep.subr.mxu0 0.0
    %5027 = vmatpush2.msra.mxu0 0.0
    %5028 = vmatprep.subr.mxu0 0.0
    %5029 = vmatpush2.msra.mxu0 0.0
    %5030 = vmatprep.subr.mxu0 0.0
    %5031 = vmatpush2.msra.mxu0 0.0
    %5032 = vmatprep.subr.mxu0 0.0
    %5033 = vmatpush2.msra.mxu0 0.0
    %5034 = vmatprep.subr.mxu0 0.0
    %5035 = vmatpush2.msra.mxu0 0.0
    %5036 = vmatprep.subr.mxu0 0.0
    %5037 = vmatpush2.msra.mxu0 0.0
    %5038 = vmatprep.mubr.f32.mxu0 0.0
    %5039 = vmatmul.mubr.f32.gmra.mxu0 %v4972
    %v5040 = vpop.f32.mrf.mxu0
    %v5041 = vadd.f32 %v4968, %v5040
    %v5042 = vpop.f32.mrf.mxu0
    %5043 = vdwg.mxu0
    %v5044 = vld [vmem:[%s7] sm:$0x1]
    %v5046 = vlaneseq
    %v5047 = vshrl.u32 %v5046, 7
    %v5048 = vsub.s32 0, %v5047
    %v5049 = vrot.slane %v5044, %v5048
    %v5051 = vadd.f32 %v5041, %v5049
    %5052 = vst [vmem:[#allocation13] sm:$0xff] %v5051
    // Predicated region
    $region54: #{tpu_custom_call.1} parent=1 // pred_check
      _
    $region55: #{tpu_custom_call.1} parent=1 // pred_check_branch
      %5054 = sbr.rel (0) target = $region57
    $region56: #{tpu_custom_call.1} parent=1 // pred_region
      %s5056 = ssub.s32 128, 128
      %5057 = vsyncadd [#allocation6], %s5056
      %s5059 = sshll.u32 [#allocation13], 4
      %s5060 = int_to_ptr.vmem [resolvable:$true] %s5059
      %5062 = dma.vmem_to_hbm [thread:$0]  %s5060, 128, %s8, [#allocation6]
    $region57: #{tpu_custom_call.1} parent=1 // pred_fallthru
      _
    // Predicated region
    $region58: #{tpu_custom_call.1} parent=1 // pred_check
      _
    $region59: #{tpu_custom_call.1} parent=1 // pred_check_branch
      %5064 = sbr.rel (0) target = $region61
    $region60: #{tpu_custom_call.1} parent=1 // pred_region
      %5065 = dma.done [#allocation6], 128
    $region61: #{tpu_custom_call.1} parent=1 // pred_fallthru
      _
    %5066 = vsyncpa [#allocation5], 1
    %5067 = vsyncpa [#allocation8], 1
    %5068 = vsyncpa [#allocation11], 1
    %5069 = vsyncpa [#allocation6], 1

</llo_original>
